<compile_context>
chip_gen: v5e
topology: v5e:2x2
jax: 0.10.0
libtpu: 0.0.40
codegen_flags: <defaults>
</compile_context>

<pallas_src>
import jax
import jax.numpy as jnp
from jax.experimental import pallas as pl
from jax.experimental.pallas import tpu as pltpu


def _encoder_kernel(xph_ref, w1_ref, b1_ref, w2_ref, b2_ref, w3_ref, b3_ref,
                    out_ref, a1_ref):
    # xph_ref: (1, 120, 8, 1)  phase-split padded input for this image:
    #   row (rh*4 + rw)*15 + a, col b  holds  xpad[2a+rh, 4b+rw]
    #   (xpad = 30x30 zero-padded 28x28 image, W padded to 32).
    # a1_ref scratch: (16, 8, 32) = (padded H, padded W-pair, 2*16 paired chans)
    w1 = w1_ref[...]          # (9, 16)   rows ordered (kh, kw)
    b1 = b1_ref[...]          # (1, 16)
    w2 = w2_ref[...]          # (144, 32) rows ordered (kh, kw, cin)
    b2 = b2_ref[...]          # (1, 32)

    # ---- conv1 + ReLU: 18 VPU broadcast-MACs, output in W-pair-grouped form ----
    halves = []
    for p in range(2):                      # p = parity of the output column
        acc = None
        for kh in range(3):
            for kw in range(3):
                s = 2 * p + kw              # offset inside a 4-wide input group
                row0 = ((kh % 2) * 4 + (s % 4)) * 15 + kh // 2
                col0 = s // 4
                tap = xph_ref[0, row0:row0 + 14, col0:col0 + 7, :]      # (14,7,1)
                contrib = tap * w1[kh * 3 + kw:kh * 3 + kw + 1, :]      # (14,7,16)
                acc = contrib if acc is None else acc + contrib
        halves.append(jnp.maximum(acc + b1, 0.0))
    a1pair = jnp.concatenate(halves, axis=-1)                           # (14,7,32)

    # Store with the zero padding conv2 needs (border rows/pair stay zero).
    a1_ref[...] = jnp.zeros_like(a1_ref)
    a1_ref[1:15, 1:8, :] = a1pair

    # ---- conv2 + ReLU, fused with flatten + linear + ReLU ----
    flat_pieces = []
    for i in range(7):                      # conv2 output row
        pieces = []
        for kh in range(3):
            r = a1_ref[2 * i + kh]          # (8, 32)
            pieces.append(r[0:7, 16:32])    # kw = 0 : column 2j-1
            pieces.append(r[1:8, 0:16])     # kw = 1 : column 2j
            pieces.append(r[1:8, 16:32])    # kw = 2 : column 2j+1
        patch = jnp.concatenate(pieces, axis=-1)                        # (7, 144)
        row = jnp.dot(patch, w2, preferred_element_type=jnp.float32)    # (7, 32)
        row = jnp.maximum(row + b2, 0.0)
        for wcol in range(7):
            flat_pieces.append(row[wcol:wcol + 1, :])                   # (1, 32)
    flat = jnp.concatenate(flat_pieces, axis=-1)                        # (1, 1568)

    out3 = jnp.dot(flat, w3_ref[...], preferred_element_type=jnp.float32)
    out_ref[0] = jnp.maximum(out3 + b3_ref[...], 0.0)                   # (1, L)


def _phase_split_input(x):
    """x: (B,1,28,28) -> (B,120,8,1): mod-2 (H) x mod-4 (W) phase split of the
    zero-padded image, so every conv1 tap is a contiguous slice in-kernel."""
    B = x.shape[0]
    xpad = jnp.pad(x[:, 0], ((0, 0), (1, 1), (1, 3)))    # (B, 30, 32)
    xp = xpad.reshape(B, 15, 2, 8, 4)                    # [b, a, rh, wb, rw]
    xp = xp.transpose(0, 2, 4, 1, 3)                     # (B, 2, 4, 15, 8)
    return xp.reshape(B, 120, 8)[..., None]              # (B, 120, 8, 1)


def prepare_params(params):
    """One-time (trace-time) weight reshapes: PyTorch layout -> kernel layout."""
    w1, b1, w2, b2, w3, b3 = params
    latent = w3.shape[0]
    w1r = jnp.transpose(w1, (2, 3, 1, 0)).reshape(9, 16)          # (kh,kw) x cout
    w2r = jnp.transpose(w2, (2, 3, 1, 0)).reshape(144, 32)        # (kh,kw,cin) x cout
    w3p = jnp.transpose(w3.reshape(latent, 32, 7, 7),
                        (2, 3, 1, 0)).reshape(1568, latent)       # (h,w,c) x latent
    return (w1r, b1.reshape(1, 16), w2r, b2.reshape(1, 32),
            w3p, b3.reshape(1, latent))


@jax.jit
def encoder_forward(x, prep):
    w1r, b1r, w2r, b2r, w3p, b3r = prep
    B = x.shape[0]
    latent = w3p.shape[1]
    xph = _phase_split_input(x)
    out = pl.pallas_call(
        _encoder_kernel,
        out_shape=jax.ShapeDtypeStruct((B, 1, latent), jnp.float32),
        grid=(B,),
        in_specs=[
            pl.BlockSpec((1, 120, 8, 1), lambda b: (b, 0, 0, 0)),
            pl.BlockSpec((9, 16), lambda b: (0, 0)),
            pl.BlockSpec((1, 16), lambda b: (0, 0)),
            pl.BlockSpec((144, 32), lambda b: (0, 0)),
            pl.BlockSpec((1, 32), lambda b: (0, 0)),
            pl.BlockSpec((1568, latent), lambda b: (0, 0)),
            pl.BlockSpec((1, latent), lambda b: (0, 0)),
        ],
        out_specs=pl.BlockSpec((1, 1, latent), lambda b: (b, 0, 0)),
        scratch_shapes=[pltpu.VMEM((16, 8, 32), jnp.float32)],
        compiler_params=pltpu.CompilerParams(
            dimension_semantics=("parallel",)),
    )(xph, w1r, b1r, w2r, b2r, w3p, b3r)
    return out.reshape(B, latent)


def init_params(key, latent):
    ks = jax.random.split(key, 6)
    w1 = jax.random.normal(ks[0], (16, 1, 3, 3), jnp.float32) * 0.1
    b1 = jax.random.normal(ks[1], (16,), jnp.float32) * 0.1
    w2 = jax.random.normal(ks[2], (32, 16, 3, 3), jnp.float32) * 0.05
    b2 = jax.random.normal(ks[3], (32,), jnp.float32) * 0.05
    w3 = jax.random.normal(ks[4], (latent, 32 * 7 * 7), jnp.float32) * 0.02
    b3 = jax.random.normal(ks[5], (latent,), jnp.float32) * 0.02
    return (w1, b1, w2, b2, w3, b3)


def reference_forward(x, params):
    """Pure-JAX reference mirroring the PyTorch forward."""
    w1, b1, w2, b2, w3, b3 = params

    def conv(x, w, b):
        y = jax.lax.conv_general_dilated(
            x, w, window_strides=(2, 2), padding=((1, 1), (1, 1)),
            dimension_numbers=("NCHW", "OIHW", "NCHW"))
        return jax.nn.relu(y + b[None, :, None, None])

    x = conv(x, w1, b1)
    x = conv(x, w2, b2)
    x = x.reshape(x.shape[0], -1)
    return jax.nn.relu(x @ w3.T + b3)


if __name__ == "__main__":
    latent_dimension = 32
    key = jax.random.PRNGKey(0)
    kx, kp = jax.random.split(key)
    # The linear layer hardcodes 32*7*7, which (with two stride-2 convs)
    # implies a 28x28 single-channel input (MNIST-sized).
    x = jax.random.normal(kx, (2, 1, 28, 28), jnp.float32)
    params = init_params(kp, latent_dimension)
    prep = prepare_params(params)

    out = jax.block_until_ready(encoder_forward(x, prep))
    ref = jax.block_until_ready(reference_forward(x, params))

    assert out.shape == (2, latent_dimension), out.shape
    assert jnp.allclose(out, ref, rtol=1e-4, atol=2e-4), \
        float(jnp.max(jnp.abs(out - ref)))
    print("KERNEL_OK")
</pallas_src>

<mosaic_0001>
module attributes {stable_mosaic.version = 11 : i64} {
  func.func @_encoder_kernel(%arg0: i32, %arg1: memref<1x120x8x1xf32, #tpu.memory_space<vmem>>, %arg2: memref<9x16xf32, #tpu.memory_space<vmem>>, %arg3: memref<1x16xf32, #tpu.memory_space<vmem>>, %arg4: memref<144x32xf32, #tpu.memory_space<vmem>>, %arg5: memref<1x32xf32, #tpu.memory_space<vmem>>, %arg6: memref<1568x32xf32, #tpu.memory_space<vmem>>, %arg7: memref<1x32xf32, #tpu.memory_space<vmem>>, %arg8: memref<1x1x32xf32, #tpu.memory_space<vmem>>, %arg9: memref<16x8x32xf32, #tpu.memory_space<vmem>>) attributes {dimension_semantics = [#tpu.dimension_semantics<parallel>], iteration_bounds = array<i64: 2>, scalar_prefetch = 0 : i64, scratch_operands = 1 : i64, tpu.core_type = #tpu.core_type<tc>, window_params = [{transform_indices = @transform_0, window_bounds = array<i64: 1, 120, 8, 1>}, {pipeline_mode = #tpu.pipeline_mode<synchronous>, transform_indices = @transform_1, window_bounds = array<i64: 9, 16>}, {pipeline_mode = #tpu.pipeline_mode<synchronous>, transform_indices = @transform_2, window_bounds = array<i64: 1, 16>}, {pipeline_mode = #tpu.pipeline_mode<synchronous>, transform_indices = @transform_3, window_bounds = array<i64: 144, 32>}, {pipeline_mode = #tpu.pipeline_mode<synchronous>, transform_indices = @transform_4, window_bounds = array<i64: 1, 32>}, {pipeline_mode = #tpu.pipeline_mode<synchronous>, transform_indices = @transform_5, window_bounds = array<i64: 1568, 32>}, {pipeline_mode = #tpu.pipeline_mode<synchronous>, transform_indices = @transform_6, window_bounds = array<i64: 1, 32>}, {transform_indices = @transform_7, window_bounds = array<i64: 1, 1, 32>}]} {
    %c0 = arith.constant 0 : index
    %c0_0 = arith.constant 0 : index
    %0 = vector.load %arg2[%c0, %c0_0] : memref<9x16xf32, #tpu.memory_space<vmem>>, vector<9x16xf32>
    %c0_1 = arith.constant 0 : index
    %c0_2 = arith.constant 0 : index
    %1 = vector.load %arg3[%c0_1, %c0_2] : memref<1x16xf32, #tpu.memory_space<vmem>>, vector<1x16xf32>
    %c0_3 = arith.constant 0 : index
    %c0_4 = arith.constant 0 : index
    %2 = vector.load %arg4[%c0_3, %c0_4] : memref<144x32xf32, #tpu.memory_space<vmem>>, vector<144x32xf32>
    %c0_5 = arith.constant 0 : index
    %c0_6 = arith.constant 0 : index
    %3 = vector.load %arg5[%c0_5, %c0_6] : memref<1x32xf32, #tpu.memory_space<vmem>>, vector<1x32xf32>
    %c0_7 = arith.constant 0 : index
    %c0_8 = arith.constant 0 : index
    %c0_9 = arith.constant 0 : index
    %c0_10 = arith.constant 0 : index
    %4 = vector.load %arg1[%c0_7, %c0_8, %c0_9, %c0_10] : memref<1x120x8x1xf32, #tpu.memory_space<vmem>>, vector<1x14x7x1xf32>
    %5 = vector.shape_cast %4 : vector<1x14x7x1xf32> to vector<14x7x1xf32>
    %6 = vector.extract_strided_slice %0 {offsets = [0, 0], sizes = [1, 16], strides = [1, 1]} : vector<9x16xf32> to vector<1x16xf32>
    %7 = vector.shape_cast %6 : vector<1x16xf32> to vector<1x1x16xf32>
    %8 = vector.broadcast %5 : vector<14x7x1xf32> to vector<14x7x16xf32>
    %9 = vector.broadcast %7 : vector<1x1x16xf32> to vector<14x7x16xf32>
    %10 = arith.mulf %8, %9 : vector<14x7x16xf32>
    %c0_11 = arith.constant 0 : index
    %c15 = arith.constant 15 : index
    %c0_12 = arith.constant 0 : index
    %c0_13 = arith.constant 0 : index
    %11 = vector.load %arg1[%c0_11, %c15, %c0_12, %c0_13] : memref<1x120x8x1xf32, #tpu.memory_space<vmem>>, vector<1x14x7x1xf32>
    %12 = vector.shape_cast %11 : vector<1x14x7x1xf32> to vector<14x7x1xf32>
    %13 = vector.extract_strided_slice %0 {offsets = [1, 0], sizes = [1, 16], strides = [1, 1]} : vector<9x16xf32> to vector<1x16xf32>
    %14 = vector.shape_cast %13 : vector<1x16xf32> to vector<1x1x16xf32>
    %15 = vector.broadcast %12 : vector<14x7x1xf32> to vector<14x7x16xf32>
    %16 = vector.broadcast %14 : vector<1x1x16xf32> to vector<14x7x16xf32>
    %17 = arith.mulf %15, %16 : vector<14x7x16xf32>
    %18 = arith.addf %10, %17 : vector<14x7x16xf32>
    %c0_14 = arith.constant 0 : index
    %c30 = arith.constant 30 : index
    %c0_15 = arith.constant 0 : index
    %c0_16 = arith.constant 0 : index
    %19 = vector.load %arg1[%c0_14, %c30, %c0_15, %c0_16] : memref<1x120x8x1xf32, #tpu.memory_space<vmem>>, vector<1x14x7x1xf32>
    %20 = vector.shape_cast %19 : vector<1x14x7x1xf32> to vector<14x7x1xf32>
    %21 = vector.extract_strided_slice %0 {offsets = [2, 0], sizes = [1, 16], strides = [1, 1]} : vector<9x16xf32> to vector<1x16xf32>
    %22 = vector.shape_cast %21 : vector<1x16xf32> to vector<1x1x16xf32>
    %23 = vector.broadcast %20 : vector<14x7x1xf32> to vector<14x7x16xf32>
    %24 = vector.broadcast %22 : vector<1x1x16xf32> to vector<14x7x16xf32>
    %25 = arith.mulf %23, %24 : vector<14x7x16xf32>
    %26 = arith.addf %18, %25 : vector<14x7x16xf32>
    %c0_17 = arith.constant 0 : index
    %c60 = arith.constant 60 : index
    %c0_18 = arith.constant 0 : index
    %c0_19 = arith.constant 0 : index
    %27 = vector.load %arg1[%c0_17, %c60, %c0_18, %c0_19] : memref<1x120x8x1xf32, #tpu.memory_space<vmem>>, vector<1x14x7x1xf32>
    %28 = vector.shape_cast %27 : vector<1x14x7x1xf32> to vector<14x7x1xf32>
    %29 = vector.extract_strided_slice %0 {offsets = [3, 0], sizes = [1, 16], strides = [1, 1]} : vector<9x16xf32> to vector<1x16xf32>
    %30 = vector.shape_cast %29 : vector<1x16xf32> to vector<1x1x16xf32>
    %31 = vector.broadcast %28 : vector<14x7x1xf32> to vector<14x7x16xf32>
    %32 = vector.broadcast %30 : vector<1x1x16xf32> to vector<14x7x16xf32>
    %33 = arith.mulf %31, %32 : vector<14x7x16xf32>
    %34 = arith.addf %26, %33 : vector<14x7x16xf32>
    %c0_20 = arith.constant 0 : index
    %c75 = arith.constant 75 : index
    %c0_21 = arith.constant 0 : index
    %c0_22 = arith.constant 0 : index
    %35 = vector.load %arg1[%c0_20, %c75, %c0_21, %c0_22] : memref<1x120x8x1xf32, #tpu.memory_space<vmem>>, vector<1x14x7x1xf32>
    %36 = vector.shape_cast %35 : vector<1x14x7x1xf32> to vector<14x7x1xf32>
    %37 = vector.extract_strided_slice %0 {offsets = [4, 0], sizes = [1, 16], strides = [1, 1]} : vector<9x16xf32> to vector<1x16xf32>
    %38 = vector.shape_cast %37 : vector<1x16xf32> to vector<1x1x16xf32>
    %39 = vector.broadcast %36 : vector<14x7x1xf32> to vector<14x7x16xf32>
    %40 = vector.broadcast %38 : vector<1x1x16xf32> to vector<14x7x16xf32>
    %41 = arith.mulf %39, %40 : vector<14x7x16xf32>
    %42 = arith.addf %34, %41 : vector<14x7x16xf32>
    %c0_23 = arith.constant 0 : index
    %c90 = arith.constant 90 : index
    %c0_24 = arith.constant 0 : index
    %c0_25 = arith.constant 0 : index
    %43 = vector.load %arg1[%c0_23, %c90, %c0_24, %c0_25] : memref<1x120x8x1xf32, #tpu.memory_space<vmem>>, vector<1x14x7x1xf32>
    %44 = vector.shape_cast %43 : vector<1x14x7x1xf32> to vector<14x7x1xf32>
    %45 = vector.extract_strided_slice %0 {offsets = [5, 0], sizes = [1, 16], strides = [1, 1]} : vector<9x16xf32> to vector<1x16xf32>
    %46 = vector.shape_cast %45 : vector<1x16xf32> to vector<1x1x16xf32>
    %47 = vector.broadcast %44 : vector<14x7x1xf32> to vector<14x7x16xf32>
    %48 = vector.broadcast %46 : vector<1x1x16xf32> to vector<14x7x16xf32>
    %49 = arith.mulf %47, %48 : vector<14x7x16xf32>
    %50 = arith.addf %42, %49 : vector<14x7x16xf32>
    %c0_26 = arith.constant 0 : index
    %c1 = arith.constant 1 : index
    %c0_27 = arith.constant 0 : index
    %c0_28 = arith.constant 0 : index
    %51 = vector.load %arg1[%c0_26, %c1, %c0_27, %c0_28] : memref<1x120x8x1xf32, #tpu.memory_space<vmem>>, vector<1x14x7x1xf32>
    %52 = vector.shape_cast %51 : vector<1x14x7x1xf32> to vector<14x7x1xf32>
    %53 = vector.extract_strided_slice %0 {offsets = [6, 0], sizes = [1, 16], strides = [1, 1]} : vector<9x16xf32> to vector<1x16xf32>
    %54 = vector.shape_cast %53 : vector<1x16xf32> to vector<1x1x16xf32>
    %55 = vector.broadcast %52 : vector<14x7x1xf32> to vector<14x7x16xf32>
    %56 = vector.broadcast %54 : vector<1x1x16xf32> to vector<14x7x16xf32>
    %57 = arith.mulf %55, %56 : vector<14x7x16xf32>
    %58 = arith.addf %50, %57 : vector<14x7x16xf32>
    %c0_29 = arith.constant 0 : index
    %c16 = arith.constant 16 : index
    %c0_30 = arith.constant 0 : index
    %c0_31 = arith.constant 0 : index
    %59 = vector.load %arg1[%c0_29, %c16, %c0_30, %c0_31] : memref<1x120x8x1xf32, #tpu.memory_space<vmem>>, vector<1x14x7x1xf32>
    %60 = vector.shape_cast %59 : vector<1x14x7x1xf32> to vector<14x7x1xf32>
    %61 = vector.extract_strided_slice %0 {offsets = [7, 0], sizes = [1, 16], strides = [1, 1]} : vector<9x16xf32> to vector<1x16xf32>
    %62 = vector.shape_cast %61 : vector<1x16xf32> to vector<1x1x16xf32>
    %63 = vector.broadcast %60 : vector<14x7x1xf32> to vector<14x7x16xf32>
    %64 = vector.broadcast %62 : vector<1x1x16xf32> to vector<14x7x16xf32>
    %65 = arith.mulf %63, %64 : vector<14x7x16xf32>
    %66 = arith.addf %58, %65 : vector<14x7x16xf32>
    %c0_32 = arith.constant 0 : index
    %c31 = arith.constant 31 : index
    %c0_33 = arith.constant 0 : index
    %c0_34 = arith.constant 0 : index
    %67 = vector.load %arg1[%c0_32, %c31, %c0_33, %c0_34] : memref<1x120x8x1xf32, #tpu.memory_space<vmem>>, vector<1x14x7x1xf32>
    %68 = vector.shape_cast %67 : vector<1x14x7x1xf32> to vector<14x7x1xf32>
    %69 = vector.extract_strided_slice %0 {offsets = [8, 0], sizes = [1, 16], strides = [1, 1]} : vector<9x16xf32> to vector<1x16xf32>
    %70 = vector.shape_cast %69 : vector<1x16xf32> to vector<1x1x16xf32>
    %71 = vector.broadcast %68 : vector<14x7x1xf32> to vector<14x7x16xf32>
    %72 = vector.broadcast %70 : vector<1x1x16xf32> to vector<14x7x16xf32>
    %73 = arith.mulf %71, %72 : vector<14x7x16xf32>
    %74 = arith.addf %66, %73 : vector<14x7x16xf32>
    %75 = vector.shape_cast %1 : vector<1x16xf32> to vector<1x1x16xf32>
    %76 = vector.broadcast %75 : vector<1x1x16xf32> to vector<14x7x16xf32>
    %77 = arith.addf %74, %76 : vector<14x7x16xf32>
    %cst = arith.constant 0.000000e+00 : f32
    %78 = vector.broadcast %cst : f32 to vector<14x7x16xf32>
    %79 = arith.maximumf %77, %78 : vector<14x7x16xf32>
    %c0_35 = arith.constant 0 : index
    %c30_36 = arith.constant 30 : index
    %c0_37 = arith.constant 0 : index
    %c0_38 = arith.constant 0 : index
    %80 = vector.load %arg1[%c0_35, %c30_36, %c0_37, %c0_38] : memref<1x120x8x1xf32, #tpu.memory_space<vmem>>, vector<1x14x7x1xf32>
    %81 = vector.shape_cast %80 : vector<1x14x7x1xf32> to vector<14x7x1xf32>
    %82 = vector.extract_strided_slice %0 {offsets = [0, 0], sizes = [1, 16], strides = [1, 1]} : vector<9x16xf32> to vector<1x16xf32>
    %83 = vector.shape_cast %82 : vector<1x16xf32> to vector<1x1x16xf32>
    %84 = vector.broadcast %81 : vector<14x7x1xf32> to vector<14x7x16xf32>
    %85 = vector.broadcast %83 : vector<1x1x16xf32> to vector<14x7x16xf32>
    %86 = arith.mulf %84, %85 : vector<14x7x16xf32>
    %c0_39 = arith.constant 0 : index
    %c45 = arith.constant 45 : index
    %c0_40 = arith.constant 0 : index
    %c0_41 = arith.constant 0 : index
    %87 = vector.load %arg1[%c0_39, %c45, %c0_40, %c0_41] : memref<1x120x8x1xf32, #tpu.memory_space<vmem>>, vector<1x14x7x1xf32>
    %88 = vector.shape_cast %87 : vector<1x14x7x1xf32> to vector<14x7x1xf32>
    %89 = vector.extract_strided_slice %0 {offsets = [1, 0], sizes = [1, 16], strides = [1, 1]} : vector<9x16xf32> to vector<1x16xf32>
    %90 = vector.shape_cast %89 : vector<1x16xf32> to vector<1x1x16xf32>
    %91 = vector.broadcast %88 : vector<14x7x1xf32> to vector<14x7x16xf32>
    %92 = vector.broadcast %90 : vector<1x1x16xf32> to vector<14x7x16xf32>
    %93 = arith.mulf %91, %92 : vector<14x7x16xf32>
    %94 = arith.addf %86, %93 : vector<14x7x16xf32>
    %c0_42 = arith.constant 0 : index
    %c0_43 = arith.constant 0 : index
    %c1_44 = arith.constant 1 : index
    %c0_45 = arith.constant 0 : index
    %95 = vector.load %arg1[%c0_42, %c0_43, %c1_44, %c0_45] : memref<1x120x8x1xf32, #tpu.memory_space<vmem>>, vector<1x14x7x1xf32>
    %96 = vector.shape_cast %95 : vector<1x14x7x1xf32> to vector<14x7x1xf32>
    %97 = vector.extract_strided_slice %0 {offsets = [2, 0], sizes = [1, 16], strides = [1, 1]} : vector<9x16xf32> to vector<1x16xf32>
    %98 = vector.shape_cast %97 : vector<1x16xf32> to vector<1x1x16xf32>
    %99 = vector.broadcast %96 : vector<14x7x1xf32> to vector<14x7x16xf32>
    %100 = vector.broadcast %98 : vector<1x1x16xf32> to vector<14x7x16xf32>
    %101 = arith.mulf %99, %100 : vector<14x7x16xf32>
    %102 = arith.addf %94, %101 : vector<14x7x16xf32>
    %c0_46 = arith.constant 0 : index
    %c90_47 = arith.constant 90 : index
    %c0_48 = arith.constant 0 : index
    %c0_49 = arith.constant 0 : index
    %103 = vector.load %arg1[%c0_46, %c90_47, %c0_48, %c0_49] : memref<1x120x8x1xf32, #tpu.memory_space<vmem>>, vector<1x14x7x1xf32>
    %104 = vector.shape_cast %103 : vector<1x14x7x1xf32> to vector<14x7x1xf32>
    %105 = vector.extract_strided_slice %0 {offsets = [3, 0], sizes = [1, 16], strides = [1, 1]} : vector<9x16xf32> to vector<1x16xf32>
    %106 = vector.shape_cast %105 : vector<1x16xf32> to vector<1x1x16xf32>
    %107 = vector.broadcast %104 : vector<14x7x1xf32> to vector<14x7x16xf32>
    %108 = vector.broadcast %106 : vector<1x1x16xf32> to vector<14x7x16xf32>
    %109 = arith.mulf %107, %108 : vector<14x7x16xf32>
    %110 = arith.addf %102, %109 : vector<14x7x16xf32>
    %c0_50 = arith.constant 0 : index
    %c105 = arith.constant 105 : index
    %c0_51 = arith.constant 0 : index
    %c0_52 = arith.constant 0 : index
    %111 = vector.load %arg1[%c0_50, %c105, %c0_51, %c0_52] : memref<1x120x8x1xf32, #tpu.memory_space<vmem>>, vector<1x14x7x1xf32>
    %112 = vector.shape_cast %111 : vector<1x14x7x1xf32> to vector<14x7x1xf32>
    %113 = vector.extract_strided_slice %0 {offsets = [4, 0], sizes = [1, 16], strides = [1, 1]} : vector<9x16xf32> to vector<1x16xf32>
    %114 = vector.shape_cast %113 : vector<1x16xf32> to vector<1x1x16xf32>
    %115 = vector.broadcast %112 : vector<14x7x1xf32> to vector<14x7x16xf32>
    %116 = vector.broadcast %114 : vector<1x1x16xf32> to vector<14x7x16xf32>
    %117 = arith.mulf %115, %116 : vector<14x7x16xf32>
    %118 = arith.addf %110, %117 : vector<14x7x16xf32>
    %c0_53 = arith.constant 0 : index
    %c60_54 = arith.constant 60 : index
    %c1_55 = arith.constant 1 : index
    %c0_56 = arith.constant 0 : index
    %119 = vector.load %arg1[%c0_53, %c60_54, %c1_55, %c0_56] : memref<1x120x8x1xf32, #tpu.memory_space<vmem>>, vector<1x14x7x1xf32>
    %120 = vector.shape_cast %119 : vector<1x14x7x1xf32> to vector<14x7x1xf32>
    %121 = vector.extract_strided_slice %0 {offsets = [5, 0], sizes = [1, 16], strides = [1, 1]} : vector<9x16xf32> to vector<1x16xf32>
    %122 = vector.shape_cast %121 : vector<1x16xf32> to vector<1x1x16xf32>
    %123 = vector.broadcast %120 : vector<14x7x1xf32> to vector<14x7x16xf32>
    %124 = vector.broadcast %122 : vector<1x1x16xf32> to vector<14x7x16xf32>
    %125 = arith.mulf %123, %124 : vector<14x7x16xf32>
    %126 = arith.addf %118, %125 : vector<14x7x16xf32>
    %c0_57 = arith.constant 0 : index
    %c31_58 = arith.constant 31 : index
    %c0_59 = arith.constant 0 : index
    %c0_60 = arith.constant 0 : index
    %127 = vector.load %arg1[%c0_57, %c31_58, %c0_59, %c0_60] : memref<1x120x8x1xf32, #tpu.memory_space<vmem>>, vector<1x14x7x1xf32>
    %128 = vector.shape_cast %127 : vector<1x14x7x1xf32> to vector<14x7x1xf32>
    %129 = vector.extract_strided_slice %0 {offsets = [6, 0], sizes = [1, 16], strides = [1, 1]} : vector<9x16xf32> to vector<1x16xf32>
    %130 = vector.shape_cast %129 : vector<1x16xf32> to vector<1x1x16xf32>
    %131 = vector.broadcast %128 : vector<14x7x1xf32> to vector<14x7x16xf32>
    %132 = vector.broadcast %130 : vector<1x1x16xf32> to vector<14x7x16xf32>
    %133 = arith.mulf %131, %132 : vector<14x7x16xf32>
    %134 = arith.addf %126, %133 : vector<14x7x16xf32>
    %c0_61 = arith.constant 0 : index
    %c46 = arith.constant 46 : index
    %c0_62 = arith.constant 0 : index
    %c0_63 = arith.constant 0 : index
    %135 = vector.load %arg1[%c0_61, %c46, %c0_62, %c0_63] : memref<1x120x8x1xf32, #tpu.memory_space<vmem>>, vector<1x14x7x1xf32>
    %136 = vector.shape_cast %135 : vector<1x14x7x1xf32> to vector<14x7x1xf32>
    %137 = vector.extract_strided_slice %0 {offsets = [7, 0], sizes = [1, 16], strides = [1, 1]} : vector<9x16xf32> to vector<1x16xf32>
    %138 = vector.shape_cast %137 : vector<1x16xf32> to vector<1x1x16xf32>
    %139 = vector.broadcast %136 : vector<14x7x1xf32> to vector<14x7x16xf32>
    %140 = vector.broadcast %138 : vector<1x1x16xf32> to vector<14x7x16xf32>
    %141 = arith.mulf %139, %140 : vector<14x7x16xf32>
    %142 = arith.addf %134, %141 : vector<14x7x16xf32>
    %c0_64 = arith.constant 0 : index
    %c1_65 = arith.constant 1 : index
    %c1_66 = arith.constant 1 : index
    %c0_67 = arith.constant 0 : index
    %143 = vector.load %arg1[%c0_64, %c1_65, %c1_66, %c0_67] : memref<1x120x8x1xf32, #tpu.memory_space<vmem>>, vector<1x14x7x1xf32>
    %144 = vector.shape_cast %143 : vector<1x14x7x1xf32> to vector<14x7x1xf32>
    %145 = vector.extract_strided_slice %0 {offsets = [8, 0], sizes = [1, 16], strides = [1, 1]} : vector<9x16xf32> to vector<1x16xf32>
    %146 = vector.shape_cast %145 : vector<1x16xf32> to vector<1x1x16xf32>
    %147 = vector.broadcast %144 : vector<14x7x1xf32> to vector<14x7x16xf32>
    %148 = vector.broadcast %146 : vector<1x1x16xf32> to vector<14x7x16xf32>
    %149 = arith.mulf %147, %148 : vector<14x7x16xf32>
    %150 = arith.addf %142, %149 : vector<14x7x16xf32>
    %151 = vector.shape_cast %1 : vector<1x16xf32> to vector<1x1x16xf32>
    %152 = vector.broadcast %151 : vector<1x1x16xf32> to vector<14x7x16xf32>
    %153 = arith.addf %150, %152 : vector<14x7x16xf32>
    %cst_68 = arith.constant 0.000000e+00 : f32
    %154 = vector.broadcast %cst_68 : f32 to vector<14x7x16xf32>
    %155 = arith.maximumf %153, %154 : vector<14x7x16xf32>
    %156 = tpu.concatenate %79, %155 in 2 : vector<14x7x16xf32>, vector<14x7x16xf32> -> vector<14x7x32xf32>
    %cst_69 = arith.constant 0.000000e+00 : f32
    %157 = vector.broadcast %cst_69 : f32 to vector<16x8x32xf32>
    %c0_70 = arith.constant 0 : index
    %c0_71 = arith.constant 0 : index
    %c0_72 = arith.constant 0 : index
    %158 = vector.load %arg9[%c0_70, %c0_71, %c0_72] : memref<16x8x32xf32, #tpu.memory_space<vmem>>, vector<16x8x32xf32>
    tpu.vector_store %arg9[%c0_70, %c0_71, %c0_72], %157 {strides = array<i32>} : memref<16x8x32xf32, #tpu.memory_space<vmem>>, vector<16x8x32xf32>,
    %c1_73 = arith.constant 1 : index
    %c1_74 = arith.constant 1 : index
    %c0_75 = arith.constant 0 : index
    %159 = vector.load %arg9[%c1_73, %c1_74, %c0_75] : memref<16x8x32xf32, #tpu.memory_space<vmem>>, vector<14x7x32xf32>
    tpu.vector_store %arg9[%c1_73, %c1_74, %c0_75], %156 {strides = array<i32>} : memref<16x8x32xf32, #tpu.memory_space<vmem>>, vector<14x7x32xf32>,
    %c0_76 = arith.constant 0 : index
    %c0_77 = arith.constant 0 : index
    %c0_78 = arith.constant 0 : index
    %160 = vector.load %arg9[%c0_76, %c0_77, %c0_78] : memref<16x8x32xf32, #tpu.memory_space<vmem>>, vector<1x8x32xf32>
    %161 = vector.shape_cast %160 : vector<1x8x32xf32> to vector<8x32xf32>
    %162 = vector.extract_strided_slice %161 {offsets = [0, 16], sizes = [7, 16], strides = [1, 1]} : vector<8x32xf32> to vector<7x16xf32>
    %163 = vector.extract_strided_slice %161 {offsets = [1, 0], sizes = [7, 16], strides = [1, 1]} : vector<8x32xf32> to vector<7x16xf32>
    %164 = vector.extract_strided_slice %161 {offsets = [1, 16], sizes = [7, 16], strides = [1, 1]} : vector<8x32xf32> to vector<7x16xf32>
    %c1_79 = arith.constant 1 : index
    %c0_80 = arith.constant 0 : index
    %c0_81 = arith.constant 0 : index
    %165 = vector.load %arg9[%c1_79, %c0_80, %c0_81] : memref<16x8x32xf32, #tpu.memory_space<vmem>>, vector<1x8x32xf32>
    %166 = vector.shape_cast %165 : vector<1x8x32xf32> to vector<8x32xf32>
    %167 = vector.extract_strided_slice %166 {offsets = [0, 16], sizes = [7, 16], strides = [1, 1]} : vector<8x32xf32> to vector<7x16xf32>
    %168 = vector.extract_strided_slice %166 {offsets = [1, 0], sizes = [7, 16], strides = [1, 1]} : vector<8x32xf32> to vector<7x16xf32>
    %169 = vector.extract_strided_slice %166 {offsets = [1, 16], sizes = [7, 16], strides = [1, 1]} : vector<8x32xf32> to vector<7x16xf32>
    %c2 = arith.constant 2 : index
    %c0_82 = arith.constant 0 : index
    %c0_83 = arith.constant 0 : index
    %170 = vector.load %arg9[%c2, %c0_82, %c0_83] : memref<16x8x32xf32, #tpu.memory_space<vmem>>, vector<1x8x32xf32>
    %171 = vector.shape_cast %170 : vector<1x8x32xf32> to vector<8x32xf32>
    %172 = vector.extract_strided_slice %171 {offsets = [0, 16], sizes = [7, 16], strides = [1, 1]} : vector<8x32xf32> to vector<7x16xf32>
    %173 = vector.extract_strided_slice %171 {offsets = [1, 0], sizes = [7, 16], strides = [1, 1]} : vector<8x32xf32> to vector<7x16xf32>
    %174 = vector.extract_strided_slice %171 {offsets = [1, 16], sizes = [7, 16], strides = [1, 1]} : vector<8x32xf32> to vector<7x16xf32>
    %175 = tpu.concatenate %162, %163, %164, %167, %168, %169, %172, %173, %174 in 1 : vector<7x16xf32>, vector<7x16xf32>, vector<7x16xf32>, vector<7x16xf32>, vector<7x16xf32>, vector<7x16xf32>, vector<7x16xf32>, vector<7x16xf32>, vector<7x16xf32> -> vector<7x144xf32>
    %cst_84 = arith.constant dense<0.000000e+00> : vector<7x32xf32>
    %176 = tpu.matmul %175, %2, %cst_84 {dimension_numbers = #tpu.dot_dimension_numbers<[1], [0], [0], [1], [0, 0, 1, 1], [], []>} : vector<7x144xf32>, vector<144x32xf32>, vector<7x32xf32> -> vector<7x32xf32>
    %177 = vector.broadcast %3 : vector<1x32xf32> to vector<7x32xf32>
    %178 = arith.addf %176, %177 : vector<7x32xf32>
    %cst_85 = arith.constant 0.000000e+00 : f32
    %179 = vector.broadcast %cst_85 : f32 to vector<7x32xf32>
    %180 = arith.maximumf %178, %179 : vector<7x32xf32>
    %181 = vector.extract_strided_slice %180 {offsets = [0, 0], sizes = [1, 32], strides = [1, 1]} : vector<7x32xf32> to vector<1x32xf32>
    %182 = vector.extract_strided_slice %180 {offsets = [1, 0], sizes = [1, 32], strides = [1, 1]} : vector<7x32xf32> to vector<1x32xf32>
    %183 = vector.extract_strided_slice %180 {offsets = [2, 0], sizes = [1, 32], strides = [1, 1]} : vector<7x32xf32> to vector<1x32xf32>
    %184 = vector.extract_strided_slice %180 {offsets = [3, 0], sizes = [1, 32], strides = [1, 1]} : vector<7x32xf32> to vector<1x32xf32>
    %185 = vector.extract_strided_slice %180 {offsets = [4, 0], sizes = [1, 32], strides = [1, 1]} : vector<7x32xf32> to vector<1x32xf32>
    %186 = vector.extract_strided_slice %180 {offsets = [5, 0], sizes = [1, 32], strides = [1, 1]} : vector<7x32xf32> to vector<1x32xf32>
    %187 = vector.extract_strided_slice %180 {offsets = [6, 0], sizes = [1, 32], strides = [1, 1]} : vector<7x32xf32> to vector<1x32xf32>
    %c2_86 = arith.constant 2 : index
    %c0_87 = arith.constant 0 : index
    %c0_88 = arith.constant 0 : index
    %188 = vector.load %arg9[%c2_86, %c0_87, %c0_88] : memref<16x8x32xf32, #tpu.memory_space<vmem>>, vector<1x8x32xf32>
    %189 = vector.shape_cast %188 : vector<1x8x32xf32> to vector<8x32xf32>
    %190 = vector.extract_strided_slice %189 {offsets = [0, 16], sizes = [7, 16], strides = [1, 1]} : vector<8x32xf32> to vector<7x16xf32>
    %191 = vector.extract_strided_slice %189 {offsets = [1, 0], sizes = [7, 16], strides = [1, 1]} : vector<8x32xf32> to vector<7x16xf32>
    %192 = vector.extract_strided_slice %189 {offsets = [1, 16], sizes = [7, 16], strides = [1, 1]} : vector<8x32xf32> to vector<7x16xf32>
    %c3 = arith.constant 3 : index
    %c0_89 = arith.constant 0 : index
    %c0_90 = arith.constant 0 : index
    %193 = vector.load %arg9[%c3, %c0_89, %c0_90] : memref<16x8x32xf32, #tpu.memory_space<vmem>>, vector<1x8x32xf32>
    %194 = vector.shape_cast %193 : vector<1x8x32xf32> to vector<8x32xf32>
    %195 = vector.extract_strided_slice %194 {offsets = [0, 16], sizes = [7, 16], strides = [1, 1]} : vector<8x32xf32> to vector<7x16xf32>
    %196 = vector.extract_strided_slice %194 {offsets = [1, 0], sizes = [7, 16], strides = [1, 1]} : vector<8x32xf32> to vector<7x16xf32>
    %197 = vector.extract_strided_slice %194 {offsets = [1, 16], sizes = [7, 16], strides = [1, 1]} : vector<8x32xf32> to vector<7x16xf32>
    %c4 = arith.constant 4 : index
    %c0_91 = arith.constant 0 : index
    %c0_92 = arith.constant 0 : index
    %198 = vector.load %arg9[%c4, %c0_91, %c0_92] : memref<16x8x32xf32, #tpu.memory_space<vmem>>, vector<1x8x32xf32>
    %199 = vector.shape_cast %198 : vector<1x8x32xf32> to vector<8x32xf32>
    %200 = vector.extract_strided_slice %199 {offsets = [0, 16], sizes = [7, 16], strides = [1, 1]} : vector<8x32xf32> to vector<7x16xf32>
    %201 = vector.extract_strided_slice %199 {offsets = [1, 0], sizes = [7, 16], strides = [1, 1]} : vector<8x32xf32> to vector<7x16xf32>
    %202 = vector.extract_strided_slice %199 {offsets = [1, 16], sizes = [7, 16], strides = [1, 1]} : vector<8x32xf32> to vector<7x16xf32>
    %203 = tpu.concatenate %190, %191, %192, %195, %196, %197, %200, %201, %202 in 1 : vector<7x16xf32>, vector<7x16xf32>, vector<7x16xf32>, vector<7x16xf32>, vector<7x16xf32>, vector<7x16xf32>, vector<7x16xf32>, vector<7x16xf32>, vector<7x16xf32> -> vector<7x144xf32>
    %cst_93 = arith.constant dense<0.000000e+00> : vector<7x32xf32>
    %204 = tpu.matmul %203, %2, %cst_93 {dimension_numbers = #tpu.dot_dimension_numbers<[1], [0], [0], [1], [0, 0, 1, 1], [], []>} : vector<7x144xf32>, vector<144x32xf32>, vector<7x32xf32> -> vector<7x32xf32>
    %205 = vector.broadcast %3 : vector<1x32xf32> to vector<7x32xf32>
    %206 = arith.addf %204, %205 : vector<7x32xf32>
    %cst_94 = arith.constant 0.000000e+00 : f32
    %207 = vector.broadcast %cst_94 : f32 to vector<7x32xf32>
    %208 = arith.maximumf %206, %207 : vector<7x32xf32>
    %209 = vector.extract_strided_slice %208 {offsets = [0, 0], sizes = [1, 32], strides = [1, 1]} : vector<7x32xf32> to vector<1x32xf32>
    %210 = vector.extract_strided_slice %208 {offsets = [1, 0], sizes = [1, 32], strides = [1, 1]} : vector<7x32xf32> to vector<1x32xf32>
    %211 = vector.extract_strided_slice %208 {offsets = [2, 0], sizes = [1, 32], strides = [1, 1]} : vector<7x32xf32> to vector<1x32xf32>
    %212 = vector.extract_strided_slice %208 {offsets = [3, 0], sizes = [1, 32], strides = [1, 1]} : vector<7x32xf32> to vector<1x32xf32>
    %213 = vector.extract_strided_slice %208 {offsets = [4, 0], sizes = [1, 32], strides = [1, 1]} : vector<7x32xf32> to vector<1x32xf32>
    %214 = vector.extract_strided_slice %208 {offsets = [5, 0], sizes = [1, 32], strides = [1, 1]} : vector<7x32xf32> to vector<1x32xf32>
    %215 = vector.extract_strided_slice %208 {offsets = [6, 0], sizes = [1, 32], strides = [1, 1]} : vector<7x32xf32> to vector<1x32xf32>
    %c4_95 = arith.constant 4 : index
    %c0_96 = arith.constant 0 : index
    %c0_97 = arith.constant 0 : index
    %216 = vector.load %arg9[%c4_95, %c0_96, %c0_97] : memref<16x8x32xf32, #tpu.memory_space<vmem>>, vector<1x8x32xf32>
    %217 = vector.shape_cast %216 : vector<1x8x32xf32> to vector<8x32xf32>
    %218 = vector.extract_strided_slice %217 {offsets = [0, 16], sizes = [7, 16], strides = [1, 1]} : vector<8x32xf32> to vector<7x16xf32>
    %219 = vector.extract_strided_slice %217 {offsets = [1, 0], sizes = [7, 16], strides = [1, 1]} : vector<8x32xf32> to vector<7x16xf32>
    %220 = vector.extract_strided_slice %217 {offsets = [1, 16], sizes = [7, 16], strides = [1, 1]} : vector<8x32xf32> to vector<7x16xf32>
    %c5 = arith.constant 5 : index
    %c0_98 = arith.constant 0 : index
    %c0_99 = arith.constant 0 : index
    %221 = vector.load %arg9[%c5, %c0_98, %c0_99] : memref<16x8x32xf32, #tpu.memory_space<vmem>>, vector<1x8x32xf32>
    %222 = vector.shape_cast %221 : vector<1x8x32xf32> to vector<8x32xf32>
    %223 = vector.extract_strided_slice %222 {offsets = [0, 16], sizes = [7, 16], strides = [1, 1]} : vector<8x32xf32> to vector<7x16xf32>
    %224 = vector.extract_strided_slice %222 {offsets = [1, 0], sizes = [7, 16], strides = [1, 1]} : vector<8x32xf32> to vector<7x16xf32>
    %225 = vector.extract_strided_slice %222 {offsets = [1, 16], sizes = [7, 16], strides = [1, 1]} : vector<8x32xf32> to vector<7x16xf32>
    %c6 = arith.constant 6 : index
    %c0_100 = arith.constant 0 : index
    %c0_101 = arith.constant 0 : index
    %226 = vector.load %arg9[%c6, %c0_100, %c0_101] : memref<16x8x32xf32, #tpu.memory_space<vmem>>, vector<1x8x32xf32>
    %227 = vector.shape_cast %226 : vector<1x8x32xf32> to vector<8x32xf32>
    %228 = vector.extract_strided_slice %227 {offsets = [0, 16], sizes = [7, 16], strides = [1, 1]} : vector<8x32xf32> to vector<7x16xf32>
    %229 = vector.extract_strided_slice %227 {offsets = [1, 0], sizes = [7, 16], strides = [1, 1]} : vector<8x32xf32> to vector<7x16xf32>
    %230 = vector.extract_strided_slice %227 {offsets = [1, 16], sizes = [7, 16], strides = [1, 1]} : vector<8x32xf32> to vector<7x16xf32>
    %231 = tpu.concatenate %218, %219, %220, %223, %224, %225, %228, %229, %230 in 1 : vector<7x16xf32>, vector<7x16xf32>, vector<7x16xf32>, vector<7x16xf32>, vector<7x16xf32>, vector<7x16xf32>, vector<7x16xf32>, vector<7x16xf32>, vector<7x16xf32> -> vector<7x144xf32>
    %cst_102 = arith.constant dense<0.000000e+00> : vector<7x32xf32>
    %232 = tpu.matmul %231, %2, %cst_102 {dimension_numbers = #tpu.dot_dimension_numbers<[1], [0], [0], [1], [0, 0, 1, 1], [], []>} : vector<7x144xf32>, vector<144x32xf32>, vector<7x32xf32> -> vector<7x32xf32>
    %233 = vector.broadcast %3 : vector<1x32xf32> to vector<7x32xf32>
    %234 = arith.addf %232, %233 : vector<7x32xf32>
    %cst_103 = arith.constant 0.000000e+00 : f32
    %235 = vector.broadcast %cst_103 : f32 to vector<7x32xf32>
    %236 = arith.maximumf %234, %235 : vector<7x32xf32>
    %237 = vector.extract_strided_slice %236 {offsets = [0, 0], sizes = [1, 32], strides = [1, 1]} : vector<7x32xf32> to vector<1x32xf32>
    %238 = vector.extract_strided_slice %236 {offsets = [1, 0], sizes = [1, 32], strides = [1, 1]} : vector<7x32xf32> to vector<1x32xf32>
    %239 = vector.extract_strided_slice %236 {offsets = [2, 0], sizes = [1, 32], strides = [1, 1]} : vector<7x32xf32> to vector<1x32xf32>
    %240 = vector.extract_strided_slice %236 {offsets = [3, 0], sizes = [1, 32], strides = [1, 1]} : vector<7x32xf32> to vector<1x32xf32>
    %241 = vector.extract_strided_slice %236 {offsets = [4, 0], sizes = [1, 32], strides = [1, 1]} : vector<7x32xf32> to vector<1x32xf32>
    %242 = vector.extract_strided_slice %236 {offsets = [5, 0], sizes = [1, 32], strides = [1, 1]} : vector<7x32xf32> to vector<1x32xf32>
    %243 = vector.extract_strided_slice %236 {offsets = [6, 0], sizes = [1, 32], strides = [1, 1]} : vector<7x32xf32> to vector<1x32xf32>
    %c6_104 = arith.constant 6 : index
    %c0_105 = arith.constant 0 : index
    %c0_106 = arith.constant 0 : index
    %244 = vector.load %arg9[%c6_104, %c0_105, %c0_106] : memref<16x8x32xf32, #tpu.memory_space<vmem>>, vector<1x8x32xf32>
    %245 = vector.shape_cast %244 : vector<1x8x32xf32> to vector<8x32xf32>
    %246 = vector.extract_strided_slice %245 {offsets = [0, 16], sizes = [7, 16], strides = [1, 1]} : vector<8x32xf32> to vector<7x16xf32>
    %247 = vector.extract_strided_slice %245 {offsets = [1, 0], sizes = [7, 16], strides = [1, 1]} : vector<8x32xf32> to vector<7x16xf32>
    %248 = vector.extract_strided_slice %245 {offsets = [1, 16], sizes = [7, 16], strides = [1, 1]} : vector<8x32xf32> to vector<7x16xf32>
    %c7 = arith.constant 7 : index
    %c0_107 = arith.constant 0 : index
    %c0_108 = arith.constant 0 : index
    %249 = vector.load %arg9[%c7, %c0_107, %c0_108] : memref<16x8x32xf32, #tpu.memory_space<vmem>>, vector<1x8x32xf32>
    %250 = vector.shape_cast %249 : vector<1x8x32xf32> to vector<8x32xf32>
    %251 = vector.extract_strided_slice %250 {offsets = [0, 16], sizes = [7, 16], strides = [1, 1]} : vector<8x32xf32> to vector<7x16xf32>
    %252 = vector.extract_strided_slice %250 {offsets = [1, 0], sizes = [7, 16], strides = [1, 1]} : vector<8x32xf32> to vector<7x16xf32>
    %253 = vector.extract_strided_slice %250 {offsets = [1, 16], sizes = [7, 16], strides = [1, 1]} : vector<8x32xf32> to vector<7x16xf32>
    %c8 = arith.constant 8 : index
    %c0_109 = arith.constant 0 : index
    %c0_110 = arith.constant 0 : index
    %254 = vector.load %arg9[%c8, %c0_109, %c0_110] : memref<16x8x32xf32, #tpu.memory_space<vmem>>, vector<1x8x32xf32>
    %255 = vector.shape_cast %254 : vector<1x8x32xf32> to vector<8x32xf32>
    %256 = vector.extract_strided_slice %255 {offsets = [0, 16], sizes = [7, 16], strides = [1, 1]} : vector<8x32xf32> to vector<7x16xf32>
    %257 = vector.extract_strided_slice %255 {offsets = [1, 0], sizes = [7, 16], strides = [1, 1]} : vector<8x32xf32> to vector<7x16xf32>
    %258 = vector.extract_strided_slice %255 {offsets = [1, 16], sizes = [7, 16], strides = [1, 1]} : vector<8x32xf32> to vector<7x16xf32>
    %259 = tpu.concatenate %246, %247, %248, %251, %252, %253, %256, %257, %258 in 1 : vector<7x16xf32>, vector<7x16xf32>, vector<7x16xf32>, vector<7x16xf32>, vector<7x16xf32>, vector<7x16xf32>, vector<7x16xf32>, vector<7x16xf32>, vector<7x16xf32> -> vector<7x144xf32>
    %cst_111 = arith.constant dense<0.000000e+00> : vector<7x32xf32>
    %260 = tpu.matmul %259, %2, %cst_111 {dimension_numbers = #tpu.dot_dimension_numbers<[1], [0], [0], [1], [0, 0, 1, 1], [], []>} : vector<7x144xf32>, vector<144x32xf32>, vector<7x32xf32> -> vector<7x32xf32>
    %261 = vector.broadcast %3 : vector<1x32xf32> to vector<7x32xf32>
    %262 = arith.addf %260, %261 : vector<7x32xf32>
    %cst_112 = arith.constant 0.000000e+00 : f32
    %263 = vector.broadcast %cst_112 : f32 to vector<7x32xf32>
    %264 = arith.maximumf %262, %263 : vector<7x32xf32>
    %265 = vector.extract_strided_slice %264 {offsets = [0, 0], sizes = [1, 32], strides = [1, 1]} : vector<7x32xf32> to vector<1x32xf32>
    %266 = vector.extract_strided_slice %264 {offsets = [1, 0], sizes = [1, 32], strides = [1, 1]} : vector<7x32xf32> to vector<1x32xf32>
    %267 = vector.extract_strided_slice %264 {offsets = [2, 0], sizes = [1, 32], strides = [1, 1]} : vector<7x32xf32> to vector<1x32xf32>
    %268 = vector.extract_strided_slice %264 {offsets = [3, 0], sizes = [1, 32], strides = [1, 1]} : vector<7x32xf32> to vector<1x32xf32>
    %269 = vector.extract_strided_slice %264 {offsets = [4, 0], sizes = [1, 32], strides = [1, 1]} : vector<7x32xf32> to vector<1x32xf32>
    %270 = vector.extract_strided_slice %264 {offsets = [5, 0], sizes = [1, 32], strides = [1, 1]} : vector<7x32xf32> to vector<1x32xf32>
    %271 = vector.extract_strided_slice %264 {offsets = [6, 0], sizes = [1, 32], strides = [1, 1]} : vector<7x32xf32> to vector<1x32xf32>
    %c8_113 = arith.constant 8 : index
    %c0_114 = arith.constant 0 : index
    %c0_115 = arith.constant 0 : index
    %272 = vector.load %arg9[%c8_113, %c0_114, %c0_115] : memref<16x8x32xf32, #tpu.memory_space<vmem>>, vector<1x8x32xf32>
    %273 = vector.shape_cast %272 : vector<1x8x32xf32> to vector<8x32xf32>
    %274 = vector.extract_strided_slice %273 {offsets = [0, 16], sizes = [7, 16], strides = [1, 1]} : vector<8x32xf32> to vector<7x16xf32>
    %275 = vector.extract_strided_slice %273 {offsets = [1, 0], sizes = [7, 16], strides = [1, 1]} : vector<8x32xf32> to vector<7x16xf32>
    %276 = vector.extract_strided_slice %273 {offsets = [1, 16], sizes = [7, 16], strides = [1, 1]} : vector<8x32xf32> to vector<7x16xf32>
    %c9 = arith.constant 9 : index
    %c0_116 = arith.constant 0 : index
    %c0_117 = arith.constant 0 : index
    %277 = vector.load %arg9[%c9, %c0_116, %c0_117] : memref<16x8x32xf32, #tpu.memory_space<vmem>>, vector<1x8x32xf32>
    %278 = vector.shape_cast %277 : vector<1x8x32xf32> to vector<8x32xf32>
    %279 = vector.extract_strided_slice %278 {offsets = [0, 16], sizes = [7, 16], strides = [1, 1]} : vector<8x32xf32> to vector<7x16xf32>
    %280 = vector.extract_strided_slice %278 {offsets = [1, 0], sizes = [7, 16], strides = [1, 1]} : vector<8x32xf32> to vector<7x16xf32>
    %281 = vector.extract_strided_slice %278 {offsets = [1, 16], sizes = [7, 16], strides = [1, 1]} : vector<8x32xf32> to vector<7x16xf32>
    %c10 = arith.constant 10 : index
    %c0_118 = arith.constant 0 : index
    %c0_119 = arith.constant 0 : index
    %282 = vector.load %arg9[%c10, %c0_118, %c0_119] : memref<16x8x32xf32, #tpu.memory_space<vmem>>, vector<1x8x32xf32>
    %283 = vector.shape_cast %282 : vector<1x8x32xf32> to vector<8x32xf32>
    %284 = vector.extract_strided_slice %283 {offsets = [0, 16], sizes = [7, 16], strides = [1, 1]} : vector<8x32xf32> to vector<7x16xf32>
    %285 = vector.extract_strided_slice %283 {offsets = [1, 0], sizes = [7, 16], strides = [1, 1]} : vector<8x32xf32> to vector<7x16xf32>
    %286 = vector.extract_strided_slice %283 {offsets = [1, 16], sizes = [7, 16], strides = [1, 1]} : vector<8x32xf32> to vector<7x16xf32>
    %287 = tpu.concatenate %274, %275, %276, %279, %280, %281, %284, %285, %286 in 1 : vector<7x16xf32>, vector<7x16xf32>, vector<7x16xf32>, vector<7x16xf32>, vector<7x16xf32>, vector<7x16xf32>, vector<7x16xf32>, vector<7x16xf32>, vector<7x16xf32> -> vector<7x144xf32>
    %cst_120 = arith.constant dense<0.000000e+00> : vector<7x32xf32>
    %288 = tpu.matmul %287, %2, %cst_120 {dimension_numbers = #tpu.dot_dimension_numbers<[1], [0], [0], [1], [0, 0, 1, 1], [], []>} : vector<7x144xf32>, vector<144x32xf32>, vector<7x32xf32> -> vector<7x32xf32>
    %289 = vector.broadcast %3 : vector<1x32xf32> to vector<7x32xf32>
    %290 = arith.addf %288, %289 : vector<7x32xf32>
    %cst_121 = arith.constant 0.000000e+00 : f32
    %291 = vector.broadcast %cst_121 : f32 to vector<7x32xf32>
    %292 = arith.maximumf %290, %291 : vector<7x32xf32>
    %293 = vector.extract_strided_slice %292 {offsets = [0, 0], sizes = [1, 32], strides = [1, 1]} : vector<7x32xf32> to vector<1x32xf32>
    %294 = vector.extract_strided_slice %292 {offsets = [1, 0], sizes = [1, 32], strides = [1, 1]} : vector<7x32xf32> to vector<1x32xf32>
    %295 = vector.extract_strided_slice %292 {offsets = [2, 0], sizes = [1, 32], strides = [1, 1]} : vector<7x32xf32> to vector<1x32xf32>
    %296 = vector.extract_strided_slice %292 {offsets = [3, 0], sizes = [1, 32], strides = [1, 1]} : vector<7x32xf32> to vector<1x32xf32>
    %297 = vector.extract_strided_slice %292 {offsets = [4, 0], sizes = [1, 32], strides = [1, 1]} : vector<7x32xf32> to vector<1x32xf32>
    %298 = vector.extract_strided_slice %292 {offsets = [5, 0], sizes = [1, 32], strides = [1, 1]} : vector<7x32xf32> to vector<1x32xf32>
    %299 = vector.extract_strided_slice %292 {offsets = [6, 0], sizes = [1, 32], strides = [1, 1]} : vector<7x32xf32> to vector<1x32xf32>
    %c10_122 = arith.constant 10 : index
    %c0_123 = arith.constant 0 : index
    %c0_124 = arith.constant 0 : index
    %300 = vector.load %arg9[%c10_122, %c0_123, %c0_124] : memref<16x8x32xf32, #tpu.memory_space<vmem>>, vector<1x8x32xf32>
    %301 = vector.shape_cast %300 : vector<1x8x32xf32> to vector<8x32xf32>
    %302 = vector.extract_strided_slice %301 {offsets = [0, 16], sizes = [7, 16], strides = [1, 1]} : vector<8x32xf32> to vector<7x16xf32>
    %303 = vector.extract_strided_slice %301 {offsets = [1, 0], sizes = [7, 16], strides = [1, 1]} : vector<8x32xf32> to vector<7x16xf32>
    %304 = vector.extract_strided_slice %301 {offsets = [1, 16], sizes = [7, 16], strides = [1, 1]} : vector<8x32xf32> to vector<7x16xf32>
    %c11 = arith.constant 11 : index
    %c0_125 = arith.constant 0 : index
    %c0_126 = arith.constant 0 : index
    %305 = vector.load %arg9[%c11, %c0_125, %c0_126] : memref<16x8x32xf32, #tpu.memory_space<vmem>>, vector<1x8x32xf32>
    %306 = vector.shape_cast %305 : vector<1x8x32xf32> to vector<8x32xf32>
    %307 = vector.extract_strided_slice %306 {offsets = [0, 16], sizes = [7, 16], strides = [1, 1]} : vector<8x32xf32> to vector<7x16xf32>
    %308 = vector.extract_strided_slice %306 {offsets = [1, 0], sizes = [7, 16], strides = [1, 1]} : vector<8x32xf32> to vector<7x16xf32>
    %309 = vector.extract_strided_slice %306 {offsets = [1, 16], sizes = [7, 16], strides = [1, 1]} : vector<8x32xf32> to vector<7x16xf32>
    %c12 = arith.constant 12 : index
    %c0_127 = arith.constant 0 : index
    %c0_128 = arith.constant 0 : index
    %310 = vector.load %arg9[%c12, %c0_127, %c0_128] : memref<16x8x32xf32, #tpu.memory_space<vmem>>, vector<1x8x32xf32>
    %311 = vector.shape_cast %310 : vector<1x8x32xf32> to vector<8x32xf32>
    %312 = vector.extract_strided_slice %311 {offsets = [0, 16], sizes = [7, 16], strides = [1, 1]} : vector<8x32xf32> to vector<7x16xf32>
    %313 = vector.extract_strided_slice %311 {offsets = [1, 0], sizes = [7, 16], strides = [1, 1]} : vector<8x32xf32> to vector<7x16xf32>
    %314 = vector.extract_strided_slice %311 {offsets = [1, 16], sizes = [7, 16], strides = [1, 1]} : vector<8x32xf32> to vector<7x16xf32>
    %315 = tpu.concatenate %302, %303, %304, %307, %308, %309, %312, %313, %314 in 1 : vector<7x16xf32>, vector<7x16xf32>, vector<7x16xf32>, vector<7x16xf32>, vector<7x16xf32>, vector<7x16xf32>, vector<7x16xf32>, vector<7x16xf32>, vector<7x16xf32> -> vector<7x144xf32>
    %cst_129 = arith.constant dense<0.000000e+00> : vector<7x32xf32>
    %316 = tpu.matmul %315, %2, %cst_129 {dimension_numbers = #tpu.dot_dimension_numbers<[1], [0], [0], [1], [0, 0, 1, 1], [], []>} : vector<7x144xf32>, vector<144x32xf32>, vector<7x32xf32> -> vector<7x32xf32>
    %317 = vector.broadcast %3 : vector<1x32xf32> to vector<7x32xf32>
    %318 = arith.addf %316, %317 : vector<7x32xf32>
    %cst_130 = arith.constant 0.000000e+00 : f32
    %319 = vector.broadcast %cst_130 : f32 to vector<7x32xf32>
    %320 = arith.maximumf %318, %319 : vector<7x32xf32>
    %321 = vector.extract_strided_slice %320 {offsets = [0, 0], sizes = [1, 32], strides = [1, 1]} : vector<7x32xf32> to vector<1x32xf32>
    %322 = vector.extract_strided_slice %320 {offsets = [1, 0], sizes = [1, 32], strides = [1, 1]} : vector<7x32xf32> to vector<1x32xf32>
    %323 = vector.extract_strided_slice %320 {offsets = [2, 0], sizes = [1, 32], strides = [1, 1]} : vector<7x32xf32> to vector<1x32xf32>
    %324 = vector.extract_strided_slice %320 {offsets = [3, 0], sizes = [1, 32], strides = [1, 1]} : vector<7x32xf32> to vector<1x32xf32>
    %325 = vector.extract_strided_slice %320 {offsets = [4, 0], sizes = [1, 32], strides = [1, 1]} : vector<7x32xf32> to vector<1x32xf32>
    %326 = vector.extract_strided_slice %320 {offsets = [5, 0], sizes = [1, 32], strides = [1, 1]} : vector<7x32xf32> to vector<1x32xf32>
    %327 = vector.extract_strided_slice %320 {offsets = [6, 0], sizes = [1, 32], strides = [1, 1]} : vector<7x32xf32> to vector<1x32xf32>
    %c12_131 = arith.constant 12 : index
    %c0_132 = arith.constant 0 : index
    %c0_133 = arith.constant 0 : index
    %328 = vector.load %arg9[%c12_131, %c0_132, %c0_133] : memref<16x8x32xf32, #tpu.memory_space<vmem>>, vector<1x8x32xf32>
    %329 = vector.shape_cast %328 : vector<1x8x32xf32> to vector<8x32xf32>
    %330 = vector.extract_strided_slice %329 {offsets = [0, 16], sizes = [7, 16], strides = [1, 1]} : vector<8x32xf32> to vector<7x16xf32>
    %331 = vector.extract_strided_slice %329 {offsets = [1, 0], sizes = [7, 16], strides = [1, 1]} : vector<8x32xf32> to vector<7x16xf32>
    %332 = vector.extract_strided_slice %329 {offsets = [1, 16], sizes = [7, 16], strides = [1, 1]} : vector<8x32xf32> to vector<7x16xf32>
    %c13 = arith.constant 13 : index
    %c0_134 = arith.constant 0 : index
    %c0_135 = arith.constant 0 : index
    %333 = vector.load %arg9[%c13, %c0_134, %c0_135] : memref<16x8x32xf32, #tpu.memory_space<vmem>>, vector<1x8x32xf32>
    %334 = vector.shape_cast %333 : vector<1x8x32xf32> to vector<8x32xf32>
    %335 = vector.extract_strided_slice %334 {offsets = [0, 16], sizes = [7, 16], strides = [1, 1]} : vector<8x32xf32> to vector<7x16xf32>
    %336 = vector.extract_strided_slice %334 {offsets = [1, 0], sizes = [7, 16], strides = [1, 1]} : vector<8x32xf32> to vector<7x16xf32>
    %337 = vector.extract_strided_slice %334 {offsets = [1, 16], sizes = [7, 16], strides = [1, 1]} : vector<8x32xf32> to vector<7x16xf32>
    %c14 = arith.constant 14 : index
    %c0_136 = arith.constant 0 : index
    %c0_137 = arith.constant 0 : index
    %338 = vector.load %arg9[%c14, %c0_136, %c0_137] : memref<16x8x32xf32, #tpu.memory_space<vmem>>, vector<1x8x32xf32>
    %339 = vector.shape_cast %338 : vector<1x8x32xf32> to vector<8x32xf32>
    %340 = vector.extract_strided_slice %339 {offsets = [0, 16], sizes = [7, 16], strides = [1, 1]} : vector<8x32xf32> to vector<7x16xf32>
    %341 = vector.extract_strided_slice %339 {offsets = [1, 0], sizes = [7, 16], strides = [1, 1]} : vector<8x32xf32> to vector<7x16xf32>
    %342 = vector.extract_strided_slice %339 {offsets = [1, 16], sizes = [7, 16], strides = [1, 1]} : vector<8x32xf32> to vector<7x16xf32>
    %343 = tpu.concatenate %330, %331, %332, %335, %336, %337, %340, %341, %342 in 1 : vector<7x16xf32>, vector<7x16xf32>, vector<7x16xf32>, vector<7x16xf32>, vector<7x16xf32>, vector<7x16xf32>, vector<7x16xf32>, vector<7x16xf32>, vector<7x16xf32> -> vector<7x144xf32>
    %cst_138 = arith.constant dense<0.000000e+00> : vector<7x32xf32>
    %344 = tpu.matmul %343, %2, %cst_138 {dimension_numbers = #tpu.dot_dimension_numbers<[1], [0], [0], [1], [0, 0, 1, 1], [], []>} : vector<7x144xf32>, vector<144x32xf32>, vector<7x32xf32> -> vector<7x32xf32>
    %345 = vector.broadcast %3 : vector<1x32xf32> to vector<7x32xf32>
    %346 = arith.addf %344, %345 : vector<7x32xf32>
    %cst_139 = arith.constant 0.000000e+00 : f32
    %347 = vector.broadcast %cst_139 : f32 to vector<7x32xf32>
    %348 = arith.maximumf %346, %347 : vector<7x32xf32>
    %349 = vector.extract_strided_slice %348 {offsets = [0, 0], sizes = [1, 32], strides = [1, 1]} : vector<7x32xf32> to vector<1x32xf32>
    %350 = vector.extract_strided_slice %348 {offsets = [1, 0], sizes = [1, 32], strides = [1, 1]} : vector<7x32xf32> to vector<1x32xf32>
    %351 = vector.extract_strided_slice %348 {offsets = [2, 0], sizes = [1, 32], strides = [1, 1]} : vector<7x32xf32> to vector<1x32xf32>
    %352 = vector.extract_strided_slice %348 {offsets = [3, 0], sizes = [1, 32], strides = [1, 1]} : vector<7x32xf32> to vector<1x32xf32>
    %353 = vector.extract_strided_slice %348 {offsets = [4, 0], sizes = [1, 32], strides = [1, 1]} : vector<7x32xf32> to vector<1x32xf32>
    %354 = vector.extract_strided_slice %348 {offsets = [5, 0], sizes = [1, 32], strides = [1, 1]} : vector<7x32xf32> to vector<1x32xf32>
    %355 = vector.extract_strided_slice %348 {offsets = [6, 0], sizes = [1, 32], strides = [1, 1]} : vector<7x32xf32> to vector<1x32xf32>
    %356 = tpu.concatenate %181, %182, %183, %184, %185, %186, %187, %209, %210, %211, %212, %213, %214, %215, %237, %238 in 1 : vector<1x32xf32>, vector<1x32xf32>, vector<1x32xf32>, vector<1x32xf32>, vector<1x32xf32>, vector<1x32xf32>, vector<1x32xf32>, vector<1x32xf32>, vector<1x32xf32>, vector<1x32xf32>, vector<1x32xf32>, vector<1x32xf32>, vector<1x32xf32>, vector<1x32xf32>, vector<1x32xf32>, vector<1x32xf32> -> vector<1x512xf32>
    %357 = tpu.concatenate %239, %240, %241, %242, %243, %265, %266, %267, %268, %269, %270, %271, %293, %294, %295, %296 in 1 : vector<1x32xf32>, vector<1x32xf32>, vector<1x32xf32>, vector<1x32xf32>, vector<1x32xf32>, vector<1x32xf32>, vector<1x32xf32>, vector<1x32xf32>, vector<1x32xf32>, vector<1x32xf32>, vector<1x32xf32>, vector<1x32xf32>, vector<1x32xf32>, vector<1x32xf32>, vector<1x32xf32>, vector<1x32xf32> -> vector<1x512xf32>
    %358 = tpu.concatenate %297, %298, %299, %321, %322, %323, %324, %325, %326, %327, %349, %350, %351, %352, %353, %354 in 1 : vector<1x32xf32>, vector<1x32xf32>, vector<1x32xf32>, vector<1x32xf32>, vector<1x32xf32>, vector<1x32xf32>, vector<1x32xf32>, vector<1x32xf32>, vector<1x32xf32>, vector<1x32xf32>, vector<1x32xf32>, vector<1x32xf32>, vector<1x32xf32>, vector<1x32xf32>, vector<1x32xf32>, vector<1x32xf32> -> vector<1x512xf32>
    %359 = tpu.concatenate %356, %357, %358, %355 in 1 : vector<1x512xf32>, vector<1x512xf32>, vector<1x512xf32>, vector<1x32xf32> -> vector<1x1568xf32>
    %c0_140 = arith.constant 0 : index
    %c0_141 = arith.constant 0 : index
    %360 = vector.load %arg6[%c0_140, %c0_141] : memref<1568x32xf32, #tpu.memory_space<vmem>>, vector<1568x32xf32>
    %cst_142 = arith.constant dense<0.000000e+00> : vector<1x32xf32>
    %361 = tpu.matmul %359, %360, %cst_142 {dimension_numbers = #tpu.dot_dimension_numbers<[1], [0], [0], [1], [0, 0, 1, 1], [], []>} : vector<1x1568xf32>, vector<1568x32xf32>, vector<1x32xf32> -> vector<1x32xf32>
    %c0_143 = arith.constant 0 : index
    %c0_144 = arith.constant 0 : index
    %362 = vector.load %arg7[%c0_143, %c0_144] : memref<1x32xf32, #tpu.memory_space<vmem>>, vector<1x32xf32>
    %363 = arith.addf %361, %362 : vector<1x32xf32>
    %cst_145 = arith.constant 0.000000e+00 : f32
    %364 = vector.broadcast %cst_145 : f32 to vector<1x32xf32>
    %365 = arith.maximumf %363, %364 : vector<1x32xf32>
    %c0_146 = arith.constant 0 : index
    %c0_147 = arith.constant 0 : index
    %c0_148 = arith.constant 0 : index
    %366 = vector.load %arg8[%c0_146, %c0_147, %c0_148] : memref<1x1x32xf32, #tpu.memory_space<vmem>>, vector<1x1x32xf32>
    %367 = vector.shape_cast %366 : vector<1x1x32xf32> to vector<1x32xf32>
    %368 = vector.shape_cast %365 : vector<1x32xf32> to vector<1x1x32xf32>
    tpu.vector_store %arg8[%c0_146, %c0_147, %c0_148], %368 {strides = array<i32>} : memref<1x1x32xf32, #tpu.memory_space<vmem>>, vector<1x1x32xf32>,
    return
  }
  func.func @transform_0(%arg0: i32) -> (i32, i32, i32, i32) {
    %c0_i32 = arith.constant 0 : i32
    %c0_i32_0 = arith.constant 0 : i32
    %c0_i32_1 = arith.constant 0 : i32
    %c0_i32_2 = arith.constant 0 : i32
    return %arg0, %c0_i32, %c0_i32_0, %c0_i32_1 : i32, i32, i32, i32
  }
  func.func @transform_1(%arg0: i32) -> (i32, i32) {
    %c0_i32 = arith.constant 0 : i32
    %c0_i32_0 = arith.constant 0 : i32
    %c0_i32_1 = arith.constant 0 : i32
    return %c0_i32, %c0_i32_0 : i32, i32
  }
  func.func @transform_2(%arg0: i32) -> (i32, i32) {
    %c0_i32 = arith.constant 0 : i32
    %c0_i32_0 = arith.constant 0 : i32
    %c0_i32_1 = arith.constant 0 : i32
    return %c0_i32, %c0_i32_0 : i32, i32
  }
  func.func @transform_3(%arg0: i32) -> (i32, i32) {
    %c0_i32 = arith.constant 0 : i32
    %c0_i32_0 = arith.constant 0 : i32
    %c0_i32_1 = arith.constant 0 : i32
    return %c0_i32, %c0_i32_0 : i32, i32
  }
  func.func @transform_4(%arg0: i32) -> (i32, i32) {
    %c0_i32 = arith.constant 0 : i32
    %c0_i32_0 = arith.constant 0 : i32
    %c0_i32_1 = arith.constant 0 : i32
    return %c0_i32, %c0_i32_0 : i32, i32
  }
  func.func @transform_5(%arg0: i32) -> (i32, i32) {
    %c0_i32 = arith.constant 0 : i32
    %c0_i32_0 = arith.constant 0 : i32
    %c0_i32_1 = arith.constant 0 : i32
    return %c0_i32, %c0_i32_0 : i32, i32
  }
  func.func @transform_6(%arg0: i32) -> (i32, i32) {
    %c0_i32 = arith.constant 0 : i32
    %c0_i32_0 = arith.constant 0 : i32
    %c0_i32_1 = arith.constant 0 : i32
    return %c0_i32, %c0_i32_0 : i32, i32
  }
  func.func @transform_7(%arg0: i32) -> (i32, i32, i32) {
    %c0_i32 = arith.constant 0 : i32
    %c0_i32_0 = arith.constant 0 : i32
    %c0_i32_1 = arith.constant 0 : i32
    return %arg0, %c0_i32, %c0_i32_0 : i32, i32, i32
  }
}

</mosaic_0001>

<llo_original>
// kernel: encoder_forward.1
$region0: #{encoder_forward.1}
  #allocation0 [shape = 'u32[]', space=smem, size = 0x4, offset = 0x4, fixed_abs, tag = 'smem constant byte address 0x4 - core index']
  #allocation1 [shape = 'u32[72,128]{1,0:T(1,128)}', space=vmem, size = 0x9000, scoped, tag = 'internal scratch']
  #allocation2 [shape = 'f32[16,8,32]{2,1,0:T(8,128)}', space=vmem, size = 0x10000, scoped, tag = 'scratch operand']
  %s0 = inlined_call_operand.vmem [shape: f32[2,120,8,1], index: 0, kind: input, shape index: {}]
  %s1 = inlined_call_operand.vmem [shape: f32[9,16], index: 1, kind: input, shape index: {}]
  %s2 = inlined_call_operand.vmem [shape: f32[1,16], index: 2, kind: input, shape index: {}]
  %s3 = inlined_call_operand.vmem [shape: f32[144,32], index: 3, kind: input, shape index: {}]
  %s4 = inlined_call_operand.vmem [shape: f32[1,32], index: 4, kind: input, shape index: {}]
  %s5 = inlined_call_operand.vmem [shape: f32[1568,32], index: 5, kind: input, shape index: {}]
  %s6 = inlined_call_operand.vmem [shape: f32[1,32], index: 6, kind: input, shape index: {}]
  %s7 = inlined_call_operand.hbm [shape: f32[2,1,32], index: 7, kind: output, shape index: {}]
  %s8 = sld [smem:[#allocation0]]
  $region61: #{encoder_forward.1} parent=0
    _
  %s10 = ssub.s32 1, %s8
  %s11 = scalar_select 0, %s10, %s8
  $region1: #{encoder_forward.1} parent=0
    #allocation3 [shape = 'u8[1024]{0}', space=vmem, size = 0x400, scoped, tag = 'output window, operand 0']
    #allocation4 [shape = 's32[2]{0}', space=sflag, size = 0x8, scoped, tag = 'scoped memory for encoder_forward.1']
    %12 = vsyncpa [#allocation4], 0
    %s13 = scalar_lea.sflag [#allocation4], 1
    %14 = vsyncpa %s13, 0
    loop: start=0, step=1, limit=4
    $region2: #{encoder_forward.1} parent=1 // loop_pre_header
      _
    $region3: #{encoder_forward.1} parent=1 // loop_header
      %s16 = sphi 0, %s20
      %p17 = scmp.ge.s32.totalorder %s16, 4
      %s26 = sphi 0, %s28
      %s29 = sphi 0, %s26
      %s30 = sphi 0, %s29
      %s46 = sphi 0, %s30
      %s50 = sphi 0, %s50
      %s52 = sphi 0, %s50
      %s53 = sphi 0, %s52
      %s67 = sphi 0, %s53
      %s71 = sphi 0, %s71
      %s73 = sphi 0, %s71
      %s74 = sphi 0, %s73
      %s88 = sphi 0, %s74
      %s92 = sphi 0, %s92
      %s94 = sphi 0, %s92
      %s95 = sphi 0, %s94
      %s109 = sphi 0, %s95
      %s113 = sphi 0, %s113
      %s115 = sphi 0, %s113
      %s116 = sphi 0, %s115
      %s130 = sphi 0, %s116
      %s134 = sphi 0, %s134
      %s136 = sphi 0, %s134
      %s137 = sphi 0, %s136
      %s151 = sphi 0, %s137
      %s155 = sphi 0, %s155
      %s157 = sphi 0, %s155
      %s158 = sphi 0, %s157
      %s172 = sphi 0, %s158
      %s178 = sphi 0, %s180
      %s181 = sphi 0, %s178
      %s182 = sphi 0, %s181
      %s198 = sphi 0, %s182
    $region4: #{encoder_forward.1} parent=1 // loop_header_branch
      %19 = sbr.rel (%p17) target = $region8
    $region5: #{encoder_forward.1} parent=1 // loop_body
      %s21 = ssub.s32 %s16, 1
      %s22 = ssub.s32 %s16, 2
      %s23 = sadd.s32 %s16, 1
      %s24 = ssub.s32 %s16, %s23
      %p25 = scmp.eq.s32.totalorder %s24, 0
      %s27 = sadd.s32 %s26, 1
      %s28 = scalar_select %p25, %s26, %s27
      %p31 = pneg %p25
      %p32 = scmp.eq.s32.totalorder %s16, 1
      %p33 = por %p31, %p32
      %p34 = scmp.ne.s32.totalorder %s26, %s29
      %p35 = scmp.eq.s32.totalorder %s16, 0
      %p36 = por %p34, %p35
      %p37 = scmp.ne.s32.totalorder %s26, %s29
      %p38 = scmp.eq.s32.totalorder %s21, 1
      %p39 = por %p37, %p38
      %p40 = scmp.ne.s32.totalorder %s29, %s30
      %p41 = scmp.eq.s32.totalorder %s21, 0
      %p42 = por %p40, %p41
      %p43 = scmp.ne.s32.totalorder %s29, %s30
      %p44 = scmp.eq.s32.totalorder %s22, 1
      %p45 = por %p43, %p44
      %p47 = scmp.ne.s32.totalorder %s30, %s46
      %p48 = scmp.eq.s32.totalorder %s22, 0
      %p49 = por %p47, %p48
      %s51 = sadd.s32 %s50, 1
      %p54 = scmp.eq.s32.totalorder %s16, 1
      %p55 = scmp.ne.s32.totalorder %s50, %s52
      %p56 = scmp.eq.s32.totalorder %s16, 0
      %p57 = por %p55, %p56
      %p58 = scmp.ne.s32.totalorder %s50, %s52
      %p59 = scmp.eq.s32.totalorder %s21, 1
      %p60 = por %p58, %p59
      %p61 = scmp.ne.s32.totalorder %s52, %s53
      %p62 = scmp.eq.s32.totalorder %s21, 0
      %p63 = por %p61, %p62
      %p64 = scmp.ne.s32.totalorder %s52, %s53
      %p65 = scmp.eq.s32.totalorder %s22, 1
      %p66 = por %p64, %p65
      %p68 = scmp.ne.s32.totalorder %s53, %s67
      %p69 = scmp.eq.s32.totalorder %s22, 0
      %p70 = por %p68, %p69
      %s72 = sadd.s32 %s71, 1
      %p75 = scmp.eq.s32.totalorder %s16, 1
      %p76 = scmp.ne.s32.totalorder %s71, %s73
      %p77 = scmp.eq.s32.totalorder %s16, 0
      %p78 = por %p76, %p77
      %p79 = scmp.ne.s32.totalorder %s71, %s73
      %p80 = scmp.eq.s32.totalorder %s21, 1
      %p81 = por %p79, %p80
      %p82 = scmp.ne.s32.totalorder %s73, %s74
      %p83 = scmp.eq.s32.totalorder %s21, 0
      %p84 = por %p82, %p83
      %p85 = scmp.ne.s32.totalorder %s73, %s74
      %p86 = scmp.eq.s32.totalorder %s22, 1
      %p87 = por %p85, %p86
      %p89 = scmp.ne.s32.totalorder %s74, %s88
      %p90 = scmp.eq.s32.totalorder %s22, 0
      %p91 = por %p89, %p90
      %s93 = sadd.s32 %s92, 1
      %p96 = scmp.eq.s32.totalorder %s16, 1
      %p97 = scmp.ne.s32.totalorder %s92, %s94
      %p98 = scmp.eq.s32.totalorder %s16, 0
      %p99 = por %p97, %p98
      %p100 = scmp.ne.s32.totalorder %s92, %s94
      %p101 = scmp.eq.s32.totalorder %s21, 1
      %p102 = por %p100, %p101
      %p103 = scmp.ne.s32.totalorder %s94, %s95
      %p104 = scmp.eq.s32.totalorder %s21, 0
      %p105 = por %p103, %p104
      %p106 = scmp.ne.s32.totalorder %s94, %s95
      %p107 = scmp.eq.s32.totalorder %s22, 1
      %p108 = por %p106, %p107
      %p110 = scmp.ne.s32.totalorder %s95, %s109
      %p111 = scmp.eq.s32.totalorder %s22, 0
      %p112 = por %p110, %p111
      %s114 = sadd.s32 %s113, 1
      %p117 = scmp.eq.s32.totalorder %s16, 1
      %p118 = scmp.ne.s32.totalorder %s113, %s115
      %p119 = scmp.eq.s32.totalorder %s16, 0
      %p120 = por %p118, %p119
      %p121 = scmp.ne.s32.totalorder %s113, %s115
      %p122 = scmp.eq.s32.totalorder %s21, 1
      %p123 = por %p121, %p122
      %p124 = scmp.ne.s32.totalorder %s115, %s116
      %p125 = scmp.eq.s32.totalorder %s21, 0
      %p126 = por %p124, %p125
      %p127 = scmp.ne.s32.totalorder %s115, %s116
      %p128 = scmp.eq.s32.totalorder %s22, 1
      %p129 = por %p127, %p128
      %p131 = scmp.ne.s32.totalorder %s116, %s130
      %p132 = scmp.eq.s32.totalorder %s22, 0
      %p133 = por %p131, %p132
      %s135 = sadd.s32 %s134, 1
      %p138 = scmp.eq.s32.totalorder %s16, 1
      %p139 = scmp.ne.s32.totalorder %s134, %s136
      %p140 = scmp.eq.s32.totalorder %s16, 0
      %p141 = por %p139, %p140
      %p142 = scmp.ne.s32.totalorder %s134, %s136
      %p143 = scmp.eq.s32.totalorder %s21, 1
      %p144 = por %p142, %p143
      %p145 = scmp.ne.s32.totalorder %s136, %s137
      %p146 = scmp.eq.s32.totalorder %s21, 0
      %p147 = por %p145, %p146
      %p148 = scmp.ne.s32.totalorder %s136, %s137
      %p149 = scmp.eq.s32.totalorder %s22, 1
      %p150 = por %p148, %p149
      %p152 = scmp.ne.s32.totalorder %s137, %s151
      %p153 = scmp.eq.s32.totalorder %s22, 0
      %p154 = por %p152, %p153
      %s156 = sadd.s32 %s155, 1
      %p159 = scmp.eq.s32.totalorder %s16, 1
      %p160 = scmp.ne.s32.totalorder %s155, %s157
      %p161 = scmp.eq.s32.totalorder %s16, 0
      %p162 = por %p160, %p161
      %p163 = scmp.ne.s32.totalorder %s155, %s157
      %p164 = scmp.eq.s32.totalorder %s21, 1
      %p165 = por %p163, %p164
      %p166 = scmp.ne.s32.totalorder %s157, %s158
      %p167 = scmp.eq.s32.totalorder %s21, 0
      %p168 = por %p166, %p167
      %p169 = scmp.ne.s32.totalorder %s157, %s158
      %p170 = scmp.eq.s32.totalorder %s22, 1
      %p171 = por %p169, %p170
      %p173 = scmp.ne.s32.totalorder %s158, %s172
      %p174 = scmp.eq.s32.totalorder %s22, 0
      %p175 = por %p173, %p174
      %s176 = ssub.s32 %s16, %s23
      %p177 = scmp.eq.s32.totalorder %s176, 0
      %s179 = sadd.s32 %s178, 1
      %s180 = scalar_select %p177, %s178, %s179
      %p183 = pneg %p177
      %p184 = scmp.eq.s32.totalorder %s16, 1
      %p185 = por %p183, %p184
      %p186 = scmp.ne.s32.totalorder %s178, %s181
      %p187 = scmp.eq.s32.totalorder %s16, 0
      %p188 = por %p186, %p187
      %p189 = scmp.ne.s32.totalorder %s178, %s181
      %p190 = scmp.eq.s32.totalorder %s21, 1
      %p191 = por %p189, %p190
      %p192 = scmp.ne.s32.totalorder %s181, %s182
      %p193 = scmp.eq.s32.totalorder %s21, 0
      %p194 = por %p192, %p193
      %p195 = scmp.ne.s32.totalorder %s181, %s182
      %p196 = scmp.eq.s32.totalorder %s22, 1
      %p197 = por %p195, %p196
      %p199 = scmp.ne.s32.totalorder %s182, %s198
      %p200 = scmp.eq.s32.totalorder %s22, 0
      %p201 = por %p199, %p200
      %p202 = scmp.le.s32.totalorder 1, %s16
      %p203 = scmp.lt.s32.totalorder %s16, 3
      %p204 = pnand %p202, %p203
      %p205 = pneg %p204
      // Predicated region
      $region9: #{encoder_forward.1} parent=5 // pred_check
        _
      $region10: #{encoder_forward.1} parent=5 // pred_check_branch
        %207 = sbr.rel (%p204) target = $region12
      $region11: #{encoder_forward.1} parent=5 // pred_region
        %s208 = ssub.s32 %s16, 1
        // Predicated region
        $region13: #{encoder_forward.1} parent=11 // pred_check
          %p209 = pneg %p63
        $region14: #{encoder_forward.1} parent=11 // pred_check_branch
          %211 = sbr.rel (%p209) target = $region16
        $region15: #{encoder_forward.1} parent=11 // pred_region
          _
        $region16: #{encoder_forward.1} parent=11 // pred_fallthru
          _
        // Predicated region
        $region17: #{encoder_forward.1} parent=11 // pred_check
          %p212 = pneg %p84
        $region18: #{encoder_forward.1} parent=11 // pred_check_branch
          %214 = sbr.rel (%p212) target = $region20
        $region19: #{encoder_forward.1} parent=11 // pred_region
          _
        $region20: #{encoder_forward.1} parent=11 // pred_fallthru
          _
        // Predicated region
        $region21: #{encoder_forward.1} parent=11 // pred_check
          %p215 = pneg %p105
        $region22: #{encoder_forward.1} parent=11 // pred_check_branch
          %217 = sbr.rel (%p215) target = $region24
        $region23: #{encoder_forward.1} parent=11 // pred_region
          _
        $region24: #{encoder_forward.1} parent=11 // pred_fallthru
          _
        // Predicated region
        $region25: #{encoder_forward.1} parent=11 // pred_check
          %p218 = pneg %p126
        $region26: #{encoder_forward.1} parent=11 // pred_check_branch
          %220 = sbr.rel (%p218) target = $region28
        $region27: #{encoder_forward.1} parent=11 // pred_region
          _
        $region28: #{encoder_forward.1} parent=11 // pred_fallthru
          _
        // Predicated region
        $region29: #{encoder_forward.1} parent=11 // pred_check
          %p221 = pneg %p147
        $region30: #{encoder_forward.1} parent=11 // pred_check_branch
          %223 = sbr.rel (%p221) target = $region32
        $region31: #{encoder_forward.1} parent=11 // pred_region
          _
        $region32: #{encoder_forward.1} parent=11 // pred_fallthru
          _
        // Predicated region
        $region33: #{encoder_forward.1} parent=11 // pred_check
          %p224 = pneg %p168
        $region34: #{encoder_forward.1} parent=11 // pred_check_branch
          %226 = sbr.rel (%p224) target = $region36
        $region35: #{encoder_forward.1} parent=11 // pred_region
          _
        $region36: #{encoder_forward.1} parent=11 // pred_fallthru
          _
      $region12: #{encoder_forward.1} parent=5 // pred_fallthru
        _
      %p227 = scmp.lt.s32.totalorder %s16, 2
      // Predicated region
      $region37: #{encoder_forward.1} parent=5 // pred_check
        %p228 = pneg %p227
      $region38: #{encoder_forward.1} parent=5 // pred_check_branch
        %230 = sbr.rel (%p228) target = $region40
      $region39: #{encoder_forward.1} parent=5 // pred_region
        // Predicated region
        $region41: #{encoder_forward.1} parent=39 // pred_check
          %p231 = pneg %p36
        $region42: #{encoder_forward.1} parent=39 // pred_check_branch
          %233 = sbr.rel (%p231) target = $region44
        $region43: #{encoder_forward.1} parent=39 // pred_region
          %p234 = scmp.lt.s32.totalorder %s16, 1
          %s235 = scalar_select %p234, %s16, 1
          %s236 = smul.addr %s235, 120
          %s237 = smul.addr %s236, 8
          %s238 = scalar_lea.vmem %s0, %s237
        $region44: #{encoder_forward.1} parent=39 // pred_fallthru
          _
      $region40: #{encoder_forward.1} parent=5 // pred_fallthru
        _
      %p239 = scmp.le.s32.totalorder 1, %s16
      %p240 = scmp.lt.s32.totalorder %s16, 3
      %p241 = pnand %p239, %p240
      %p242 = pneg %p241
      // Predicated region
      $region45: #{encoder_forward.1} parent=5 // pred_check
        _
      $region46: #{encoder_forward.1} parent=5 // pred_check_branch
        %244 = sbr.rel (%p241) target = $region48
      $region47: #{encoder_forward.1} parent=5 // pred_region
        %s245 = ssub.s32 %s16, 1
        %p246 = scmp.lt.s32.totalorder %s21, 1
        %s247 = scalar_select %p246, %s21, 1
        %s248 = smul.addr %s247, 120
        %s249 = smul.addr %s248, 8
        %s250 = scalar_lea.vmem %s0, %s249
        %p251 = pneg %p42
        %p252 = pneg %p39
        %p253 = pneg %p63
        %p254 = pneg %p60
        %p255 = pneg %p84
        %p256 = pneg %p81
        %p257 = pneg %p105
        %p258 = pneg %p102
        %p259 = pneg %p126
        %p260 = pneg %p123
        %p261 = pneg %p147
        %p262 = pneg %p144
        %p263 = pneg %p168
        %p264 = pneg %p165
        %p265 = pneg %p194
        %p266 = pneg %p191
        %s267 = sand.u32 %s181, 1
        %s268 = scalar_lea.sflag [#allocation4], %s267
        %s269 = sand.u32 %s181, 1
        %s270 = scalar_lea.vmem [#allocation3], %s269
        %p271 = scmp.lt.s32.totalorder %s21, 1
        %s272 = scalar_select %p271, %s21, 1
        %s273 = smul.addr %s272, 120
        %s274 = smul.addr %s273, 8
        %s275 = scalar_lea.vmem %s0, %s274
        %v276 = vld [vmem:[%s1] sm:$0xff]
        %v277 = vld [vmem:[%s1 + $0x8] sm:$0x1]
        %v278 = vld [vmem:[%s2] sm:$0x1]
        %v279 = vld [vmem:[%s3] sm:$0xff]
        %v280 = vld [vmem:[%s3 + $0x8] sm:$0xff]
        %v281 = vld [vmem:[%s3 + $0x10] sm:$0xff]
        %v282 = vld [vmem:[%s3 + $0x18] sm:$0xff]
        %v283 = vld [vmem:[%s3 + $0x20] sm:$0xff]
        %v284 = vld [vmem:[%s3 + $0x28] sm:$0xff]
        %v285 = vld [vmem:[%s3 + $0x30] sm:$0xff]
        %v286 = vld [vmem:[%s3 + $0x38] sm:$0xff]
        %v287 = vld [vmem:[%s3 + $0x40] sm:$0xff]
        %v288 = vld [vmem:[%s3 + $0x48] sm:$0xff]
        %v289 = vld [vmem:[%s3 + $0x50] sm:$0xff]
        %v290 = vld [vmem:[%s3 + $0x58] sm:$0xff]
        %v291 = vld [vmem:[%s3 + $0x60] sm:$0xff]
        %v292 = vld [vmem:[%s3 + $0x68] sm:$0xff]
        %v293 = vld [vmem:[%s3 + $0x70] sm:$0xff]
        %v294 = vld [vmem:[%s3 + $0x78] sm:$0xff]
        %v295 = vld [vmem:[%s3 + $0x80] sm:$0xff]
        %v296 = vld [vmem:[%s3 + $0x88] sm:$0xff]
        %v297 = vld [vmem:[%s4] sm:$0x1]
        %v298 = vld [vmem:[%s275] sm:$0x7f]
        %v299 = vld [vmem:[%s275 + $0x8] sm:$0x7f]
        %v300 = vld [vmem:[%s275 + $0x10] sm:$0x7f]
        %v301 = vld [vmem:[%s275 + $0x18] sm:$0x7f]
        %v302 = vld [vmem:[%s275 + $0x20] sm:$0x7f]
        %v303 = vld [vmem:[%s275 + $0x28] sm:$0x7f]
        %v304 = vld [vmem:[%s275 + $0x30] sm:$0x7f]
        %v305 = vld [vmem:[%s275 + $0x38] sm:$0x7f]
        %v306 = vld [vmem:[%s275 + $0x40] sm:$0x7f]
        %v307 = vld [vmem:[%s275 + $0x48] sm:$0x7f]
        %v308 = vld [vmem:[%s275 + $0x50] sm:$0x7f]
        %v309 = vld [vmem:[%s275 + $0x58] sm:$0x7f]
        %v310 = vld [vmem:[%s275 + $0x60] sm:$0x7f]
        %v311 = vld [vmem:[%s275 + $0x68] sm:$0x7f]
        %313 = vset.pattern.permute.xlu0 0
        %314 = vperm.xlu0 %313, %v298
        %v315 = vpop.permute.xlu0 %314
        %318 = vset.pattern.permute.xlu0 0
        %319 = vperm.xlu0 %318, %v299
        %v320 = vpop.permute.xlu0 %319
        %323 = vset.pattern.permute.xlu0 0
        %324 = vperm.xlu0 %323, %v300
        %v325 = vpop.permute.xlu0 %324
        %328 = vset.pattern.permute.xlu0 0
        %329 = vperm.xlu0 %328, %v301
        %v330 = vpop.permute.xlu0 %329
        %333 = vset.pattern.permute.xlu0 0
        %334 = vperm.xlu0 %333, %v302
        %v335 = vpop.permute.xlu0 %334
        %338 = vset.pattern.permute.xlu0 0
        %339 = vperm.xlu0 %338, %v303
        %v340 = vpop.permute.xlu0 %339
        %343 = vset.pattern.permute.xlu0 0
        %344 = vperm.xlu0 %343, %v304
        %v345 = vpop.permute.xlu0 %344
        %348 = vset.pattern.permute.xlu0 0
        %349 = vperm.xlu0 %348, %v305
        %v350 = vpop.permute.xlu0 %349
        %353 = vset.pattern.permute.xlu0 0
        %354 = vperm.xlu0 %353, %v306
        %v355 = vpop.permute.xlu0 %354
        %358 = vset.pattern.permute.xlu0 0
        %359 = vperm.xlu0 %358, %v307
        %v360 = vpop.permute.xlu0 %359
        %363 = vset.pattern.permute.xlu0 0
        %364 = vperm.xlu0 %363, %v308
        %v365 = vpop.permute.xlu0 %364
        %368 = vset.pattern.permute.xlu0 0
        %369 = vperm.xlu0 %368, %v309
        %v370 = vpop.permute.xlu0 %369
        %373 = vset.pattern.permute.xlu0 0
        %374 = vperm.xlu0 %373, %v310
        %v375 = vpop.permute.xlu0 %374
        %378 = vset.pattern.permute.xlu0 0
        %379 = vperm.xlu0 %378, %v311
        %v380 = vpop.permute.xlu0 %379
        %v382 = vperm.slane %v276, 0
        %v383 = vmul.f32 %v315, %v382
        %v384 = vmul.f32 %v320, %v382
        %v385 = vmul.f32 %v325, %v382
        %v386 = vmul.f32 %v330, %v382
        %v387 = vmul.f32 %v335, %v382
        %v388 = vmul.f32 %v340, %v382
        %v389 = vmul.f32 %v345, %v382
        %v390 = vmul.f32 %v350, %v382
        %v391 = vmul.f32 %v355, %v382
        %v392 = vmul.f32 %v360, %v382
        %v393 = vmul.f32 %v365, %v382
        %v394 = vmul.f32 %v370, %v382
        %v395 = vmul.f32 %v375, %v382
        %v396 = vmul.f32 %v380, %v382
        %s397 = scalar_lea.vmem %s275, 120
        %v398 = vld [vmem:[%s397] sm:$0x7f]
        %v399 = vld [vmem:[%s397 + $0x8] sm:$0x7f]
        %v400 = vld [vmem:[%s397 + $0x10] sm:$0x7f]
        %v401 = vld [vmem:[%s397 + $0x18] sm:$0x7f]
        %v402 = vld [vmem:[%s397 + $0x20] sm:$0x7f]
        %v403 = vld [vmem:[%s397 + $0x28] sm:$0x7f]
        %v404 = vld [vmem:[%s397 + $0x30] sm:$0x7f]
        %v405 = vld [vmem:[%s397 + $0x38] sm:$0x7f]
        %v406 = vld [vmem:[%s397 + $0x40] sm:$0x7f]
        %v407 = vld [vmem:[%s397 + $0x48] sm:$0x7f]
        %v408 = vld [vmem:[%s397 + $0x50] sm:$0x7f]
        %v409 = vld [vmem:[%s397 + $0x58] sm:$0x7f]
        %v410 = vld [vmem:[%s397 + $0x60] sm:$0x7f]
        %v411 = vld [vmem:[%s397 + $0x68] sm:$0x7f]
        %413 = vset.pattern.permute.xlu0 0
        %414 = vperm.xlu0 %413, %v398
        %v415 = vpop.permute.xlu0 %414
        %418 = vset.pattern.permute.xlu0 0
        %419 = vperm.xlu0 %418, %v399
        %v420 = vpop.permute.xlu0 %419
        %423 = vset.pattern.permute.xlu0 0
        %424 = vperm.xlu0 %423, %v400
        %v425 = vpop.permute.xlu0 %424
        %428 = vset.pattern.permute.xlu0 0
        %429 = vperm.xlu0 %428, %v401
        %v430 = vpop.permute.xlu0 %429
        %433 = vset.pattern.permute.xlu0 0
        %434 = vperm.xlu0 %433, %v402
        %v435 = vpop.permute.xlu0 %434
        %438 = vset.pattern.permute.xlu0 0
        %439 = vperm.xlu0 %438, %v403
        %v440 = vpop.permute.xlu0 %439
        %443 = vset.pattern.permute.xlu0 0
        %444 = vperm.xlu0 %443, %v404
        %v445 = vpop.permute.xlu0 %444
        %448 = vset.pattern.permute.xlu0 0
        %449 = vperm.xlu0 %448, %v405
        %v450 = vpop.permute.xlu0 %449
        %453 = vset.pattern.permute.xlu0 0
        %454 = vperm.xlu0 %453, %v406
        %v455 = vpop.permute.xlu0 %454
        %458 = vset.pattern.permute.xlu0 0
        %459 = vperm.xlu0 %458, %v407
        %v460 = vpop.permute.xlu0 %459
        %463 = vset.pattern.permute.xlu0 0
        %464 = vperm.xlu0 %463, %v408
        %v465 = vpop.permute.xlu0 %464
        %468 = vset.pattern.permute.xlu0 0
        %469 = vperm.xlu0 %468, %v409
        %v470 = vpop.permute.xlu0 %469
        %473 = vset.pattern.permute.xlu0 0
        %474 = vperm.xlu0 %473, %v410
        %v475 = vpop.permute.xlu0 %474
        %478 = vset.pattern.permute.xlu0 0
        %479 = vperm.xlu0 %478, %v411
        %v480 = vpop.permute.xlu0 %479
        %v482 = vperm.slane %v276, 1
        %v483 = vmul.f32 %v415, %v482
        %v484 = vmul.f32 %v420, %v482
        %v485 = vmul.f32 %v425, %v482
        %v486 = vmul.f32 %v430, %v482
        %v487 = vmul.f32 %v435, %v482
        %v488 = vmul.f32 %v440, %v482
        %v489 = vmul.f32 %v445, %v482
        %v490 = vmul.f32 %v450, %v482
        %v491 = vmul.f32 %v455, %v482
        %v492 = vmul.f32 %v460, %v482
        %v493 = vmul.f32 %v465, %v482
        %v494 = vmul.f32 %v470, %v482
        %v495 = vmul.f32 %v475, %v482
        %v496 = vmul.f32 %v480, %v482
        %v497 = vadd.f32 %v383, %v483
        %v498 = vadd.f32 %v384, %v484
        %v499 = vadd.f32 %v385, %v485
        %v500 = vadd.f32 %v386, %v486
        %v501 = vadd.f32 %v387, %v487
        %v502 = vadd.f32 %v388, %v488
        %v503 = vadd.f32 %v389, %v489
        %v504 = vadd.f32 %v390, %v490
        %v505 = vadd.f32 %v391, %v491
        %v506 = vadd.f32 %v392, %v492
        %v507 = vadd.f32 %v393, %v493
        %v508 = vadd.f32 %v394, %v494
        %v509 = vadd.f32 %v395, %v495
        %v510 = vadd.f32 %v396, %v496
        %s511 = scalar_lea.vmem %s275, 240
        %v512 = vld [vmem:[%s511] sm:$0x7f]
        %v513 = vld [vmem:[%s511 + $0x8] sm:$0x7f]
        %v514 = vld [vmem:[%s511 + $0x10] sm:$0x7f]
        %v515 = vld [vmem:[%s511 + $0x18] sm:$0x7f]
        %v516 = vld [vmem:[%s511 + $0x20] sm:$0x7f]
        %v517 = vld [vmem:[%s511 + $0x28] sm:$0x7f]
        %v518 = vld [vmem:[%s511 + $0x30] sm:$0x7f]
        %v519 = vld [vmem:[%s511 + $0x38] sm:$0x7f]
        %v520 = vld [vmem:[%s511 + $0x40] sm:$0x7f]
        %v521 = vld [vmem:[%s511 + $0x48] sm:$0x7f]
        %v522 = vld [vmem:[%s511 + $0x50] sm:$0x7f]
        %v523 = vld [vmem:[%s511 + $0x58] sm:$0x7f]
        %v524 = vld [vmem:[%s511 + $0x60] sm:$0x7f]
        %v525 = vld [vmem:[%s511 + $0x68] sm:$0x7f]
        %527 = vset.pattern.permute.xlu0 0
        %528 = vperm.xlu0 %527, %v512
        %v529 = vpop.permute.xlu0 %528
        %532 = vset.pattern.permute.xlu0 0
        %533 = vperm.xlu0 %532, %v513
        %v534 = vpop.permute.xlu0 %533
        %537 = vset.pattern.permute.xlu0 0
        %538 = vperm.xlu0 %537, %v514
        %v539 = vpop.permute.xlu0 %538
        %542 = vset.pattern.permute.xlu0 0
        %543 = vperm.xlu0 %542, %v515
        %v544 = vpop.permute.xlu0 %543
        %547 = vset.pattern.permute.xlu0 0
        %548 = vperm.xlu0 %547, %v516
        %v549 = vpop.permute.xlu0 %548
        %552 = vset.pattern.permute.xlu0 0
        %553 = vperm.xlu0 %552, %v517
        %v554 = vpop.permute.xlu0 %553
        %557 = vset.pattern.permute.xlu0 0
        %558 = vperm.xlu0 %557, %v518
        %v559 = vpop.permute.xlu0 %558
        %562 = vset.pattern.permute.xlu0 0
        %563 = vperm.xlu0 %562, %v519
        %v564 = vpop.permute.xlu0 %563
        %567 = vset.pattern.permute.xlu0 0
        %568 = vperm.xlu0 %567, %v520
        %v569 = vpop.permute.xlu0 %568
        %572 = vset.pattern.permute.xlu0 0
        %573 = vperm.xlu0 %572, %v521
        %v574 = vpop.permute.xlu0 %573
        %577 = vset.pattern.permute.xlu0 0
        %578 = vperm.xlu0 %577, %v522
        %v579 = vpop.permute.xlu0 %578
        %582 = vset.pattern.permute.xlu0 0
        %583 = vperm.xlu0 %582, %v523
        %v584 = vpop.permute.xlu0 %583
        %587 = vset.pattern.permute.xlu0 0
        %588 = vperm.xlu0 %587, %v524
        %v589 = vpop.permute.xlu0 %588
        %592 = vset.pattern.permute.xlu0 0
        %593 = vperm.xlu0 %592, %v525
        %v594 = vpop.permute.xlu0 %593
        %v596 = vperm.slane %v276, 2
        %v597 = vmul.f32 %v529, %v596
        %v598 = vmul.f32 %v534, %v596
        %v599 = vmul.f32 %v539, %v596
        %v600 = vmul.f32 %v544, %v596
        %v601 = vmul.f32 %v549, %v596
        %v602 = vmul.f32 %v554, %v596
        %v603 = vmul.f32 %v559, %v596
        %v604 = vmul.f32 %v564, %v596
        %v605 = vmul.f32 %v569, %v596
        %v606 = vmul.f32 %v574, %v596
        %v607 = vmul.f32 %v579, %v596
        %v608 = vmul.f32 %v584, %v596
        %v609 = vmul.f32 %v589, %v596
        %v610 = vmul.f32 %v594, %v596
        %v611 = vadd.f32 %v497, %v597
        %v612 = vadd.f32 %v498, %v598
        %v613 = vadd.f32 %v499, %v599
        %v614 = vadd.f32 %v500, %v600
        %v615 = vadd.f32 %v501, %v601
        %v616 = vadd.f32 %v502, %v602
        %v617 = vadd.f32 %v503, %v603
        %v618 = vadd.f32 %v504, %v604
        %v619 = vadd.f32 %v505, %v605
        %v620 = vadd.f32 %v506, %v606
        %v621 = vadd.f32 %v507, %v607
        %v622 = vadd.f32 %v508, %v608
        %v623 = vadd.f32 %v509, %v609
        %v624 = vadd.f32 %v510, %v610
        %s625 = scalar_lea.vmem %s275, 480
        %v626 = vld [vmem:[%s625] sm:$0x7f]
        %v627 = vld [vmem:[%s625 + $0x8] sm:$0x7f]
        %v628 = vld [vmem:[%s625 + $0x10] sm:$0x7f]
        %v629 = vld [vmem:[%s625 + $0x18] sm:$0x7f]
        %v630 = vld [vmem:[%s625 + $0x20] sm:$0x7f]
        %v631 = vld [vmem:[%s625 + $0x28] sm:$0x7f]
        %v632 = vld [vmem:[%s625 + $0x30] sm:$0x7f]
        %v633 = vld [vmem:[%s625 + $0x38] sm:$0x7f]
        %v634 = vld [vmem:[%s625 + $0x40] sm:$0x7f]
        %v635 = vld [vmem:[%s625 + $0x48] sm:$0x7f]
        %v636 = vld [vmem:[%s625 + $0x50] sm:$0x7f]
        %v637 = vld [vmem:[%s625 + $0x58] sm:$0x7f]
        %v638 = vld [vmem:[%s625 + $0x60] sm:$0x7f]
        %v639 = vld [vmem:[%s625 + $0x68] sm:$0x7f]
        %641 = vset.pattern.permute.xlu0 0
        %642 = vperm.xlu0 %641, %v626
        %v643 = vpop.permute.xlu0 %642
        %646 = vset.pattern.permute.xlu0 0
        %647 = vperm.xlu0 %646, %v627
        %v648 = vpop.permute.xlu0 %647
        %651 = vset.pattern.permute.xlu0 0
        %652 = vperm.xlu0 %651, %v628
        %v653 = vpop.permute.xlu0 %652
        %656 = vset.pattern.permute.xlu0 0
        %657 = vperm.xlu0 %656, %v629
        %v658 = vpop.permute.xlu0 %657
        %661 = vset.pattern.permute.xlu0 0
        %662 = vperm.xlu0 %661, %v630
        %v663 = vpop.permute.xlu0 %662
        %666 = vset.pattern.permute.xlu0 0
        %667 = vperm.xlu0 %666, %v631
        %v668 = vpop.permute.xlu0 %667
        %671 = vset.pattern.permute.xlu0 0
        %672 = vperm.xlu0 %671, %v632
        %v673 = vpop.permute.xlu0 %672
        %676 = vset.pattern.permute.xlu0 0
        %677 = vperm.xlu0 %676, %v633
        %v678 = vpop.permute.xlu0 %677
        %681 = vset.pattern.permute.xlu0 0
        %682 = vperm.xlu0 %681, %v634
        %v683 = vpop.permute.xlu0 %682
        %686 = vset.pattern.permute.xlu0 0
        %687 = vperm.xlu0 %686, %v635
        %v688 = vpop.permute.xlu0 %687
        %691 = vset.pattern.permute.xlu0 0
        %692 = vperm.xlu0 %691, %v636
        %v693 = vpop.permute.xlu0 %692
        %696 = vset.pattern.permute.xlu0 0
        %697 = vperm.xlu0 %696, %v637
        %v698 = vpop.permute.xlu0 %697
        %701 = vset.pattern.permute.xlu0 0
        %702 = vperm.xlu0 %701, %v638
        %v703 = vpop.permute.xlu0 %702
        %706 = vset.pattern.permute.xlu0 0
        %707 = vperm.xlu0 %706, %v639
        %v708 = vpop.permute.xlu0 %707
        %v710 = vperm.slane %v276, 3
        %v711 = vmul.f32 %v643, %v710
        %v712 = vmul.f32 %v648, %v710
        %v713 = vmul.f32 %v653, %v710
        %v714 = vmul.f32 %v658, %v710
        %v715 = vmul.f32 %v663, %v710
        %v716 = vmul.f32 %v668, %v710
        %v717 = vmul.f32 %v673, %v710
        %v718 = vmul.f32 %v678, %v710
        %v719 = vmul.f32 %v683, %v710
        %v720 = vmul.f32 %v688, %v710
        %v721 = vmul.f32 %v693, %v710
        %v722 = vmul.f32 %v698, %v710
        %v723 = vmul.f32 %v703, %v710
        %v724 = vmul.f32 %v708, %v710
        %v725 = vadd.f32 %v611, %v711
        %v726 = vadd.f32 %v612, %v712
        %v727 = vadd.f32 %v613, %v713
        %v728 = vadd.f32 %v614, %v714
        %v729 = vadd.f32 %v615, %v715
        %v730 = vadd.f32 %v616, %v716
        %v731 = vadd.f32 %v617, %v717
        %v732 = vadd.f32 %v618, %v718
        %v733 = vadd.f32 %v619, %v719
        %v734 = vadd.f32 %v620, %v720
        %v735 = vadd.f32 %v621, %v721
        %v736 = vadd.f32 %v622, %v722
        %v737 = vadd.f32 %v623, %v723
        %v738 = vadd.f32 %v624, %v724
        %s739 = scalar_lea.vmem %s275, 600
        %v740 = vld [vmem:[%s739] sm:$0x7f]
        %v741 = vld [vmem:[%s739 + $0x8] sm:$0x7f]
        %v742 = vld [vmem:[%s739 + $0x10] sm:$0x7f]
        %v743 = vld [vmem:[%s739 + $0x18] sm:$0x7f]
        %v744 = vld [vmem:[%s739 + $0x20] sm:$0x7f]
        %v745 = vld [vmem:[%s739 + $0x28] sm:$0x7f]
        %v746 = vld [vmem:[%s739 + $0x30] sm:$0x7f]
        %v747 = vld [vmem:[%s739 + $0x38] sm:$0x7f]
        %v748 = vld [vmem:[%s739 + $0x40] sm:$0x7f]
        %v749 = vld [vmem:[%s739 + $0x48] sm:$0x7f]
        %v750 = vld [vmem:[%s739 + $0x50] sm:$0x7f]
        %v751 = vld [vmem:[%s739 + $0x58] sm:$0x7f]
        %v752 = vld [vmem:[%s739 + $0x60] sm:$0x7f]
        %v753 = vld [vmem:[%s739 + $0x68] sm:$0x7f]
        %755 = vset.pattern.permute.xlu0 0
        %756 = vperm.xlu0 %755, %v740
        %v757 = vpop.permute.xlu0 %756
        %760 = vset.pattern.permute.xlu0 0
        %761 = vperm.xlu0 %760, %v741
        %v762 = vpop.permute.xlu0 %761
        %765 = vset.pattern.permute.xlu0 0
        %766 = vperm.xlu0 %765, %v742
        %v767 = vpop.permute.xlu0 %766
        %770 = vset.pattern.permute.xlu0 0
        %771 = vperm.xlu0 %770, %v743
        %v772 = vpop.permute.xlu0 %771
        %775 = vset.pattern.permute.xlu0 0
        %776 = vperm.xlu0 %775, %v744
        %v777 = vpop.permute.xlu0 %776
        %780 = vset.pattern.permute.xlu0 0
        %781 = vperm.xlu0 %780, %v745
        %v782 = vpop.permute.xlu0 %781
        %785 = vset.pattern.permute.xlu0 0
        %786 = vperm.xlu0 %785, %v746
        %v787 = vpop.permute.xlu0 %786
        %790 = vset.pattern.permute.xlu0 0
        %791 = vperm.xlu0 %790, %v747
        %v792 = vpop.permute.xlu0 %791
        %795 = vset.pattern.permute.xlu0 0
        %796 = vperm.xlu0 %795, %v748
        %v797 = vpop.permute.xlu0 %796
        %800 = vset.pattern.permute.xlu0 0
        %801 = vperm.xlu0 %800, %v749
        %v802 = vpop.permute.xlu0 %801
        %805 = vset.pattern.permute.xlu0 0
        %806 = vperm.xlu0 %805, %v750
        %v807 = vpop.permute.xlu0 %806
        %810 = vset.pattern.permute.xlu0 0
        %811 = vperm.xlu0 %810, %v751
        %v812 = vpop.permute.xlu0 %811
        %815 = vset.pattern.permute.xlu0 0
        %816 = vperm.xlu0 %815, %v752
        %v817 = vpop.permute.xlu0 %816
        %820 = vset.pattern.permute.xlu0 0
        %821 = vperm.xlu0 %820, %v753
        %v822 = vpop.permute.xlu0 %821
        %v824 = vperm.slane %v276, 4
        %v825 = vmul.f32 %v757, %v824
        %v826 = vmul.f32 %v762, %v824
        %v827 = vmul.f32 %v767, %v824
        %v828 = vmul.f32 %v772, %v824
        %v829 = vmul.f32 %v777, %v824
        %v830 = vmul.f32 %v782, %v824
        %v831 = vmul.f32 %v787, %v824
        %v832 = vmul.f32 %v792, %v824
        %v833 = vmul.f32 %v797, %v824
        %v834 = vmul.f32 %v802, %v824
        %v835 = vmul.f32 %v807, %v824
        %v836 = vmul.f32 %v812, %v824
        %v837 = vmul.f32 %v817, %v824
        %v838 = vmul.f32 %v822, %v824
        %v839 = vadd.f32 %v725, %v825
        %v840 = vadd.f32 %v726, %v826
        %v841 = vadd.f32 %v727, %v827
        %v842 = vadd.f32 %v728, %v828
        %v843 = vadd.f32 %v729, %v829
        %v844 = vadd.f32 %v730, %v830
        %v845 = vadd.f32 %v731, %v831
        %v846 = vadd.f32 %v732, %v832
        %v847 = vadd.f32 %v733, %v833
        %v848 = vadd.f32 %v734, %v834
        %v849 = vadd.f32 %v735, %v835
        %v850 = vadd.f32 %v736, %v836
        %v851 = vadd.f32 %v737, %v837
        %v852 = vadd.f32 %v738, %v838
        %s853 = scalar_lea.vmem %s275, 720
        %v854 = vld [vmem:[%s853] sm:$0x7f]
        %v855 = vld [vmem:[%s853 + $0x8] sm:$0x7f]
        %v856 = vld [vmem:[%s853 + $0x10] sm:$0x7f]
        %v857 = vld [vmem:[%s853 + $0x18] sm:$0x7f]
        %v858 = vld [vmem:[%s853 + $0x20] sm:$0x7f]
        %v859 = vld [vmem:[%s853 + $0x28] sm:$0x7f]
        %v860 = vld [vmem:[%s853 + $0x30] sm:$0x7f]
        %v861 = vld [vmem:[%s853 + $0x38] sm:$0x7f]
        %v862 = vld [vmem:[%s853 + $0x40] sm:$0x7f]
        %v863 = vld [vmem:[%s853 + $0x48] sm:$0x7f]
        %v864 = vld [vmem:[%s853 + $0x50] sm:$0x7f]
        %v865 = vld [vmem:[%s853 + $0x58] sm:$0x7f]
        %v866 = vld [vmem:[%s853 + $0x60] sm:$0x7f]
        %v867 = vld [vmem:[%s853 + $0x68] sm:$0x7f]
        %869 = vset.pattern.permute.xlu0 0
        %870 = vperm.xlu0 %869, %v854
        %v871 = vpop.permute.xlu0 %870
        %874 = vset.pattern.permute.xlu0 0
        %875 = vperm.xlu0 %874, %v855
        %v876 = vpop.permute.xlu0 %875
        %879 = vset.pattern.permute.xlu0 0
        %880 = vperm.xlu0 %879, %v856
        %v881 = vpop.permute.xlu0 %880
        %884 = vset.pattern.permute.xlu0 0
        %885 = vperm.xlu0 %884, %v857
        %v886 = vpop.permute.xlu0 %885
        %889 = vset.pattern.permute.xlu0 0
        %890 = vperm.xlu0 %889, %v858
        %v891 = vpop.permute.xlu0 %890
        %894 = vset.pattern.permute.xlu0 0
        %895 = vperm.xlu0 %894, %v859
        %v896 = vpop.permute.xlu0 %895
        %899 = vset.pattern.permute.xlu0 0
        %900 = vperm.xlu0 %899, %v860
        %v901 = vpop.permute.xlu0 %900
        %904 = vset.pattern.permute.xlu0 0
        %905 = vperm.xlu0 %904, %v861
        %v906 = vpop.permute.xlu0 %905
        %909 = vset.pattern.permute.xlu0 0
        %910 = vperm.xlu0 %909, %v862
        %v911 = vpop.permute.xlu0 %910
        %914 = vset.pattern.permute.xlu0 0
        %915 = vperm.xlu0 %914, %v863
        %v916 = vpop.permute.xlu0 %915
        %919 = vset.pattern.permute.xlu0 0
        %920 = vperm.xlu0 %919, %v864
        %v921 = vpop.permute.xlu0 %920
        %924 = vset.pattern.permute.xlu0 0
        %925 = vperm.xlu0 %924, %v865
        %v926 = vpop.permute.xlu0 %925
        %929 = vset.pattern.permute.xlu0 0
        %930 = vperm.xlu0 %929, %v866
        %v931 = vpop.permute.xlu0 %930
        %934 = vset.pattern.permute.xlu0 0
        %935 = vperm.xlu0 %934, %v867
        %v936 = vpop.permute.xlu0 %935
        %v938 = vperm.slane %v276, 5
        %v939 = vmul.f32 %v871, %v938
        %v940 = vmul.f32 %v876, %v938
        %v941 = vmul.f32 %v881, %v938
        %v942 = vmul.f32 %v886, %v938
        %v943 = vmul.f32 %v891, %v938
        %v944 = vmul.f32 %v896, %v938
        %v945 = vmul.f32 %v901, %v938
        %v946 = vmul.f32 %v906, %v938
        %v947 = vmul.f32 %v911, %v938
        %v948 = vmul.f32 %v916, %v938
        %v949 = vmul.f32 %v921, %v938
        %v950 = vmul.f32 %v926, %v938
        %v951 = vmul.f32 %v931, %v938
        %v952 = vmul.f32 %v936, %v938
        %v953 = vadd.f32 %v839, %v939
        %v954 = vadd.f32 %v840, %v940
        %v955 = vadd.f32 %v841, %v941
        %v956 = vadd.f32 %v842, %v942
        %v957 = vadd.f32 %v843, %v943
        %v958 = vadd.f32 %v844, %v944
        %v959 = vadd.f32 %v845, %v945
        %v960 = vadd.f32 %v846, %v946
        %v961 = vadd.f32 %v847, %v947
        %v962 = vadd.f32 %v848, %v948
        %v963 = vadd.f32 %v849, %v949
        %v964 = vadd.f32 %v850, %v950
        %v965 = vadd.f32 %v851, %v951
        %v966 = vadd.f32 %v852, %v952
        %s967 = scalar_lea.vmem %s275, 8
        %v968 = vld [vmem:[%s967] sm:$0x7f]
        %v969 = vld [vmem:[%s967 + $0x8] sm:$0x7f]
        %v970 = vld [vmem:[%s967 + $0x10] sm:$0x7f]
        %v971 = vld [vmem:[%s967 + $0x18] sm:$0x7f]
        %v972 = vld [vmem:[%s967 + $0x20] sm:$0x7f]
        %v973 = vld [vmem:[%s967 + $0x28] sm:$0x7f]
        %v974 = vld [vmem:[%s967 + $0x30] sm:$0x7f]
        %v975 = vld [vmem:[%s967 + $0x38] sm:$0x7f]
        %v976 = vld [vmem:[%s967 + $0x40] sm:$0x7f]
        %v977 = vld [vmem:[%s967 + $0x48] sm:$0x7f]
        %v978 = vld [vmem:[%s967 + $0x50] sm:$0x7f]
        %v979 = vld [vmem:[%s967 + $0x58] sm:$0x7f]
        %v980 = vld [vmem:[%s967 + $0x60] sm:$0x7f]
        %v981 = vld [vmem:[%s967 + $0x68] sm:$0x7f]
        %983 = vset.pattern.permute.xlu0 0
        %984 = vperm.xlu0 %983, %v968
        %v985 = vpop.permute.xlu0 %984
        %988 = vset.pattern.permute.xlu0 0
        %989 = vperm.xlu0 %988, %v969
        %v990 = vpop.permute.xlu0 %989
        %993 = vset.pattern.permute.xlu0 0
        %994 = vperm.xlu0 %993, %v970
        %v995 = vpop.permute.xlu0 %994
        %998 = vset.pattern.permute.xlu0 0
        %999 = vperm.xlu0 %998, %v971
        %v1000 = vpop.permute.xlu0 %999
        %1003 = vset.pattern.permute.xlu0 0
        %1004 = vperm.xlu0 %1003, %v972
        %v1005 = vpop.permute.xlu0 %1004
        %1008 = vset.pattern.permute.xlu0 0
        %1009 = vperm.xlu0 %1008, %v973
        %v1010 = vpop.permute.xlu0 %1009
        %1013 = vset.pattern.permute.xlu0 0
        %1014 = vperm.xlu0 %1013, %v974
        %v1015 = vpop.permute.xlu0 %1014
        %1018 = vset.pattern.permute.xlu0 0
        %1019 = vperm.xlu0 %1018, %v975
        %v1020 = vpop.permute.xlu0 %1019
        %1023 = vset.pattern.permute.xlu0 0
        %1024 = vperm.xlu0 %1023, %v976
        %v1025 = vpop.permute.xlu0 %1024
        %1028 = vset.pattern.permute.xlu0 0
        %1029 = vperm.xlu0 %1028, %v977
        %v1030 = vpop.permute.xlu0 %1029
        %1033 = vset.pattern.permute.xlu0 0
        %1034 = vperm.xlu0 %1033, %v978
        %v1035 = vpop.permute.xlu0 %1034
        %1038 = vset.pattern.permute.xlu0 0
        %1039 = vperm.xlu0 %1038, %v979
        %v1040 = vpop.permute.xlu0 %1039
        %1043 = vset.pattern.permute.xlu0 0
        %1044 = vperm.xlu0 %1043, %v980
        %v1045 = vpop.permute.xlu0 %1044
        %1048 = vset.pattern.permute.xlu0 0
        %1049 = vperm.xlu0 %1048, %v981
        %v1050 = vpop.permute.xlu0 %1049
        %v1052 = vperm.slane %v276, 6
        %v1053 = vmul.f32 %v985, %v1052
        %v1054 = vmul.f32 %v990, %v1052
        %v1055 = vmul.f32 %v995, %v1052
        %v1056 = vmul.f32 %v1000, %v1052
        %v1057 = vmul.f32 %v1005, %v1052
        %v1058 = vmul.f32 %v1010, %v1052
        %v1059 = vmul.f32 %v1015, %v1052
        %v1060 = vmul.f32 %v1020, %v1052
        %v1061 = vmul.f32 %v1025, %v1052
        %v1062 = vmul.f32 %v1030, %v1052
        %v1063 = vmul.f32 %v1035, %v1052
        %v1064 = vmul.f32 %v1040, %v1052
        %v1065 = vmul.f32 %v1045, %v1052
        %v1066 = vmul.f32 %v1050, %v1052
        %v1067 = vadd.f32 %v953, %v1053
        %v1068 = vadd.f32 %v954, %v1054
        %v1069 = vadd.f32 %v955, %v1055
        %v1070 = vadd.f32 %v956, %v1056
        %v1071 = vadd.f32 %v957, %v1057
        %v1072 = vadd.f32 %v958, %v1058
        %v1073 = vadd.f32 %v959, %v1059
        %v1074 = vadd.f32 %v960, %v1060
        %v1075 = vadd.f32 %v961, %v1061
        %v1076 = vadd.f32 %v962, %v1062
        %v1077 = vadd.f32 %v963, %v1063
        %v1078 = vadd.f32 %v964, %v1064
        %v1079 = vadd.f32 %v965, %v1065
        %v1080 = vadd.f32 %v966, %v1066
        %s1081 = scalar_lea.vmem %s275, 128
        %v1082 = vld [vmem:[%s1081] sm:$0x7f]
        %v1083 = vld [vmem:[%s1081 + $0x8] sm:$0x7f]
        %v1084 = vld [vmem:[%s1081 + $0x10] sm:$0x7f]
        %v1085 = vld [vmem:[%s1081 + $0x18] sm:$0x7f]
        %v1086 = vld [vmem:[%s1081 + $0x20] sm:$0x7f]
        %v1087 = vld [vmem:[%s1081 + $0x28] sm:$0x7f]
        %v1088 = vld [vmem:[%s1081 + $0x30] sm:$0x7f]
        %v1089 = vld [vmem:[%s1081 + $0x38] sm:$0x7f]
        %v1090 = vld [vmem:[%s1081 + $0x40] sm:$0x7f]
        %v1091 = vld [vmem:[%s1081 + $0x48] sm:$0x7f]
        %v1092 = vld [vmem:[%s1081 + $0x50] sm:$0x7f]
        %v1093 = vld [vmem:[%s1081 + $0x58] sm:$0x7f]
        %v1094 = vld [vmem:[%s1081 + $0x60] sm:$0x7f]
        %v1095 = vld [vmem:[%s1081 + $0x68] sm:$0x7f]
        %1097 = vset.pattern.permute.xlu0 0
        %1098 = vperm.xlu0 %1097, %v1082
        %v1099 = vpop.permute.xlu0 %1098
        %1102 = vset.pattern.permute.xlu0 0
        %1103 = vperm.xlu0 %1102, %v1083
        %v1104 = vpop.permute.xlu0 %1103
        %1107 = vset.pattern.permute.xlu0 0
        %1108 = vperm.xlu0 %1107, %v1084
        %v1109 = vpop.permute.xlu0 %1108
        %1112 = vset.pattern.permute.xlu0 0
        %1113 = vperm.xlu0 %1112, %v1085
        %v1114 = vpop.permute.xlu0 %1113
        %1117 = vset.pattern.permute.xlu0 0
        %1118 = vperm.xlu0 %1117, %v1086
        %v1119 = vpop.permute.xlu0 %1118
        %1122 = vset.pattern.permute.xlu0 0
        %1123 = vperm.xlu0 %1122, %v1087
        %v1124 = vpop.permute.xlu0 %1123
        %1127 = vset.pattern.permute.xlu0 0
        %1128 = vperm.xlu0 %1127, %v1088
        %v1129 = vpop.permute.xlu0 %1128
        %1132 = vset.pattern.permute.xlu0 0
        %1133 = vperm.xlu0 %1132, %v1089
        %v1134 = vpop.permute.xlu0 %1133
        %1137 = vset.pattern.permute.xlu0 0
        %1138 = vperm.xlu0 %1137, %v1090
        %v1139 = vpop.permute.xlu0 %1138
        %1142 = vset.pattern.permute.xlu0 0
        %1143 = vperm.xlu0 %1142, %v1091
        %v1144 = vpop.permute.xlu0 %1143
        %1147 = vset.pattern.permute.xlu0 0
        %1148 = vperm.xlu0 %1147, %v1092
        %v1149 = vpop.permute.xlu0 %1148
        %1152 = vset.pattern.permute.xlu0 0
        %1153 = vperm.xlu0 %1152, %v1093
        %v1154 = vpop.permute.xlu0 %1153
        %1157 = vset.pattern.permute.xlu0 0
        %1158 = vperm.xlu0 %1157, %v1094
        %v1159 = vpop.permute.xlu0 %1158
        %1162 = vset.pattern.permute.xlu0 0
        %1163 = vperm.xlu0 %1162, %v1095
        %v1164 = vpop.permute.xlu0 %1163
        %v1166 = vperm.slane %v276, 7
        %v1167 = vmul.f32 %v1099, %v1166
        %v1168 = vmul.f32 %v1104, %v1166
        %v1169 = vmul.f32 %v1109, %v1166
        %v1170 = vmul.f32 %v1114, %v1166
        %v1171 = vmul.f32 %v1119, %v1166
        %v1172 = vmul.f32 %v1124, %v1166
        %v1173 = vmul.f32 %v1129, %v1166
        %v1174 = vmul.f32 %v1134, %v1166
        %v1175 = vmul.f32 %v1139, %v1166
        %v1176 = vmul.f32 %v1144, %v1166
        %v1177 = vmul.f32 %v1149, %v1166
        %v1178 = vmul.f32 %v1154, %v1166
        %v1179 = vmul.f32 %v1159, %v1166
        %v1180 = vmul.f32 %v1164, %v1166
        %v1181 = vadd.f32 %v1067, %v1167
        %v1182 = vadd.f32 %v1068, %v1168
        %v1183 = vadd.f32 %v1069, %v1169
        %v1184 = vadd.f32 %v1070, %v1170
        %v1185 = vadd.f32 %v1071, %v1171
        %v1186 = vadd.f32 %v1072, %v1172
        %v1187 = vadd.f32 %v1073, %v1173
        %v1188 = vadd.f32 %v1074, %v1174
        %v1189 = vadd.f32 %v1075, %v1175
        %v1190 = vadd.f32 %v1076, %v1176
        %v1191 = vadd.f32 %v1077, %v1177
        %v1192 = vadd.f32 %v1078, %v1178
        %v1193 = vadd.f32 %v1079, %v1179
        %v1194 = vadd.f32 %v1080, %v1180
        %s1195 = scalar_lea.vmem %s275, 248
        %v1196 = vld [vmem:[%s1195] sm:$0x7f]
        %v1197 = vld [vmem:[%s1195 + $0x8] sm:$0x7f]
        %v1198 = vld [vmem:[%s1195 + $0x10] sm:$0x7f]
        %v1199 = vld [vmem:[%s1195 + $0x18] sm:$0x7f]
        %v1200 = vld [vmem:[%s1195 + $0x20] sm:$0x7f]
        %v1201 = vld [vmem:[%s1195 + $0x28] sm:$0x7f]
        %v1202 = vld [vmem:[%s1195 + $0x30] sm:$0x7f]
        %v1203 = vld [vmem:[%s1195 + $0x38] sm:$0x7f]
        %v1204 = vld [vmem:[%s1195 + $0x40] sm:$0x7f]
        %v1205 = vld [vmem:[%s1195 + $0x48] sm:$0x7f]
        %v1206 = vld [vmem:[%s1195 + $0x50] sm:$0x7f]
        %v1207 = vld [vmem:[%s1195 + $0x58] sm:$0x7f]
        %v1208 = vld [vmem:[%s1195 + $0x60] sm:$0x7f]
        %v1209 = vld [vmem:[%s1195 + $0x68] sm:$0x7f]
        %1211 = vset.pattern.permute.xlu0 0
        %1212 = vperm.xlu0 %1211, %v1196
        %v1213 = vpop.permute.xlu0 %1212
        %1216 = vset.pattern.permute.xlu0 0
        %1217 = vperm.xlu0 %1216, %v1197
        %v1218 = vpop.permute.xlu0 %1217
        %1221 = vset.pattern.permute.xlu0 0
        %1222 = vperm.xlu0 %1221, %v1198
        %v1223 = vpop.permute.xlu0 %1222
        %1226 = vset.pattern.permute.xlu0 0
        %1227 = vperm.xlu0 %1226, %v1199
        %v1228 = vpop.permute.xlu0 %1227
        %1231 = vset.pattern.permute.xlu0 0
        %1232 = vperm.xlu0 %1231, %v1200
        %v1233 = vpop.permute.xlu0 %1232
        %1236 = vset.pattern.permute.xlu0 0
        %1237 = vperm.xlu0 %1236, %v1201
        %v1238 = vpop.permute.xlu0 %1237
        %1241 = vset.pattern.permute.xlu0 0
        %1242 = vperm.xlu0 %1241, %v1202
        %v1243 = vpop.permute.xlu0 %1242
        %1246 = vset.pattern.permute.xlu0 0
        %1247 = vperm.xlu0 %1246, %v1203
        %v1248 = vpop.permute.xlu0 %1247
        %1251 = vset.pattern.permute.xlu0 0
        %1252 = vperm.xlu0 %1251, %v1204
        %v1253 = vpop.permute.xlu0 %1252
        %1256 = vset.pattern.permute.xlu0 0
        %1257 = vperm.xlu0 %1256, %v1205
        %v1258 = vpop.permute.xlu0 %1257
        %1261 = vset.pattern.permute.xlu0 0
        %1262 = vperm.xlu0 %1261, %v1206
        %v1263 = vpop.permute.xlu0 %1262
        %1266 = vset.pattern.permute.xlu0 0
        %1267 = vperm.xlu0 %1266, %v1207
        %v1268 = vpop.permute.xlu0 %1267
        %1271 = vset.pattern.permute.xlu0 0
        %1272 = vperm.xlu0 %1271, %v1208
        %v1273 = vpop.permute.xlu0 %1272
        %1276 = vset.pattern.permute.xlu0 0
        %1277 = vperm.xlu0 %1276, %v1209
        %v1278 = vpop.permute.xlu0 %1277
        %v1280 = vperm.slane %v277, 0
        %v1281 = vmul.f32 %v1213, %v1280
        %v1282 = vmul.f32 %v1218, %v1280
        %v1283 = vmul.f32 %v1223, %v1280
        %v1284 = vmul.f32 %v1228, %v1280
        %v1285 = vmul.f32 %v1233, %v1280
        %v1286 = vmul.f32 %v1238, %v1280
        %v1287 = vmul.f32 %v1243, %v1280
        %v1288 = vmul.f32 %v1248, %v1280
        %v1289 = vmul.f32 %v1253, %v1280
        %v1290 = vmul.f32 %v1258, %v1280
        %v1291 = vmul.f32 %v1263, %v1280
        %v1292 = vmul.f32 %v1268, %v1280
        %v1293 = vmul.f32 %v1273, %v1280
        %v1294 = vmul.f32 %v1278, %v1280
        %v1295 = vadd.f32 %v1181, %v1281
        %v1296 = vadd.f32 %v1182, %v1282
        %v1297 = vadd.f32 %v1183, %v1283
        %v1298 = vadd.f32 %v1184, %v1284
        %v1299 = vadd.f32 %v1185, %v1285
        %v1300 = vadd.f32 %v1186, %v1286
        %v1301 = vadd.f32 %v1187, %v1287
        %v1302 = vadd.f32 %v1188, %v1288
        %v1303 = vadd.f32 %v1189, %v1289
        %v1304 = vadd.f32 %v1190, %v1290
        %v1305 = vadd.f32 %v1191, %v1291
        %v1306 = vadd.f32 %v1192, %v1292
        %v1307 = vadd.f32 %v1193, %v1293
        %v1308 = vadd.f32 %v1194, %v1294
        %v1310 = vperm.slane %v278, 0
        %v1312 = vadd.f32 %v1295, %v1310
        %v1313 = vadd.f32 %v1296, %v1310
        %v1314 = vadd.f32 %v1297, %v1310
        %v1315 = vadd.f32 %v1298, %v1310
        %v1316 = vadd.f32 %v1299, %v1310
        %v1317 = vadd.f32 %v1300, %v1310
        %v1318 = vadd.f32 %v1301, %v1310
        %v1319 = vadd.f32 %v1302, %v1310
        %v1320 = vadd.f32 %v1303, %v1310
        %v1321 = vadd.f32 %v1304, %v1310
        %v1322 = vadd.f32 %v1305, %v1310
        %v1323 = vadd.f32 %v1306, %v1310
        %v1324 = vadd.f32 %v1307, %v1310
        %v1325 = vadd.f32 %v1308, %v1310
        %v1326 = vmax.f32 %v1312, 0.0
        %v1327 = vmax.f32 %v1313, 0.0
        %v1328 = vmax.f32 %v1314, 0.0
        %v1329 = vmax.f32 %v1315, 0.0
        %v1330 = vmax.f32 %v1316, 0.0
        %v1331 = vmax.f32 %v1317, 0.0
        %v1332 = vmax.f32 %v1318, 0.0
        %v1333 = vmax.f32 %v1319, 0.0
        %v1334 = vmax.f32 %v1320, 0.0
        %v1335 = vmax.f32 %v1321, 0.0
        %v1336 = vmax.f32 %v1322, 0.0
        %v1337 = vmax.f32 %v1323, 0.0
        %v1338 = vmax.f32 %v1324, 0.0
        %v1339 = vmax.f32 %v1325, 0.0
        %v1340 = vmul.f32 %v529, %v382
        %v1341 = vmul.f32 %v534, %v382
        %v1342 = vmul.f32 %v539, %v382
        %v1343 = vmul.f32 %v544, %v382
        %v1344 = vmul.f32 %v549, %v382
        %v1345 = vmul.f32 %v554, %v382
        %v1346 = vmul.f32 %v559, %v382
        %v1347 = vmul.f32 %v564, %v382
        %v1348 = vmul.f32 %v569, %v382
        %v1349 = vmul.f32 %v574, %v382
        %v1350 = vmul.f32 %v579, %v382
        %v1351 = vmul.f32 %v584, %v382
        %v1352 = vmul.f32 %v589, %v382
        %v1353 = vmul.f32 %v594, %v382
        %s1354 = scalar_lea.vmem %s275, 360
        %v1355 = vld [vmem:[%s1354] sm:$0x7f]
        %v1356 = vld [vmem:[%s1354 + $0x8] sm:$0x7f]
        %v1357 = vld [vmem:[%s1354 + $0x10] sm:$0x7f]
        %v1358 = vld [vmem:[%s1354 + $0x18] sm:$0x7f]
        %v1359 = vld [vmem:[%s1354 + $0x20] sm:$0x7f]
        %v1360 = vld [vmem:[%s1354 + $0x28] sm:$0x7f]
        %v1361 = vld [vmem:[%s1354 + $0x30] sm:$0x7f]
        %v1362 = vld [vmem:[%s1354 + $0x38] sm:$0x7f]
        %v1363 = vld [vmem:[%s1354 + $0x40] sm:$0x7f]
        %v1364 = vld [vmem:[%s1354 + $0x48] sm:$0x7f]
        %v1365 = vld [vmem:[%s1354 + $0x50] sm:$0x7f]
        %v1366 = vld [vmem:[%s1354 + $0x58] sm:$0x7f]
        %v1367 = vld [vmem:[%s1354 + $0x60] sm:$0x7f]
        %v1368 = vld [vmem:[%s1354 + $0x68] sm:$0x7f]
        %1370 = vset.pattern.permute.xlu0 0
        %1371 = vperm.xlu0 %1370, %v1355
        %v1372 = vpop.permute.xlu0 %1371
        %1375 = vset.pattern.permute.xlu0 0
        %1376 = vperm.xlu0 %1375, %v1356
        %v1377 = vpop.permute.xlu0 %1376
        %1380 = vset.pattern.permute.xlu0 0
        %1381 = vperm.xlu0 %1380, %v1357
        %v1382 = vpop.permute.xlu0 %1381
        %1385 = vset.pattern.permute.xlu0 0
        %1386 = vperm.xlu0 %1385, %v1358
        %v1387 = vpop.permute.xlu0 %1386
        %1390 = vset.pattern.permute.xlu0 0
        %1391 = vperm.xlu0 %1390, %v1359
        %v1392 = vpop.permute.xlu0 %1391
        %1395 = vset.pattern.permute.xlu0 0
        %1396 = vperm.xlu0 %1395, %v1360
        %v1397 = vpop.permute.xlu0 %1396
        %1400 = vset.pattern.permute.xlu0 0
        %1401 = vperm.xlu0 %1400, %v1361
        %v1402 = vpop.permute.xlu0 %1401
        %1405 = vset.pattern.permute.xlu0 0
        %1406 = vperm.xlu0 %1405, %v1362
        %v1407 = vpop.permute.xlu0 %1406
        %1410 = vset.pattern.permute.xlu0 0
        %1411 = vperm.xlu0 %1410, %v1363
        %v1412 = vpop.permute.xlu0 %1411
        %1415 = vset.pattern.permute.xlu0 0
        %1416 = vperm.xlu0 %1415, %v1364
        %v1417 = vpop.permute.xlu0 %1416
        %1420 = vset.pattern.permute.xlu0 0
        %1421 = vperm.xlu0 %1420, %v1365
        %v1422 = vpop.permute.xlu0 %1421
        %1425 = vset.pattern.permute.xlu0 0
        %1426 = vperm.xlu0 %1425, %v1366
        %v1427 = vpop.permute.xlu0 %1426
        %1430 = vset.pattern.permute.xlu0 0
        %1431 = vperm.xlu0 %1430, %v1367
        %v1432 = vpop.permute.xlu0 %1431
        %1435 = vset.pattern.permute.xlu0 0
        %1436 = vperm.xlu0 %1435, %v1368
        %v1437 = vpop.permute.xlu0 %1436
        %v1439 = vmul.f32 %v1372, %v482
        %v1440 = vmul.f32 %v1377, %v482
        %v1441 = vmul.f32 %v1382, %v482
        %v1442 = vmul.f32 %v1387, %v482
        %v1443 = vmul.f32 %v1392, %v482
        %v1444 = vmul.f32 %v1397, %v482
        %v1445 = vmul.f32 %v1402, %v482
        %v1446 = vmul.f32 %v1407, %v482
        %v1447 = vmul.f32 %v1412, %v482
        %v1448 = vmul.f32 %v1417, %v482
        %v1449 = vmul.f32 %v1422, %v482
        %v1450 = vmul.f32 %v1427, %v482
        %v1451 = vmul.f32 %v1432, %v482
        %v1452 = vmul.f32 %v1437, %v482
        %v1453 = vadd.f32 %v1340, %v1439
        %v1454 = vadd.f32 %v1341, %v1440
        %v1455 = vadd.f32 %v1342, %v1441
        %v1456 = vadd.f32 %v1343, %v1442
        %v1457 = vadd.f32 %v1344, %v1443
        %v1458 = vadd.f32 %v1345, %v1444
        %v1459 = vadd.f32 %v1346, %v1445
        %v1460 = vadd.f32 %v1347, %v1446
        %v1461 = vadd.f32 %v1348, %v1447
        %v1462 = vadd.f32 %v1349, %v1448
        %v1463 = vadd.f32 %v1350, %v1449
        %v1464 = vadd.f32 %v1351, %v1450
        %v1465 = vadd.f32 %v1352, %v1451
        %v1466 = vadd.f32 %v1353, %v1452
        %v1467 = vld [vmem:[%s275 + $0x1] sm:$0x7f]
        %v1468 = vld [vmem:[%s275 + $0x9] sm:$0x7f]
        %v1469 = vld [vmem:[%s275 + $0x11] sm:$0x7f]
        %v1470 = vld [vmem:[%s275 + $0x19] sm:$0x7f]
        %v1471 = vld [vmem:[%s275 + $0x21] sm:$0x7f]
        %v1472 = vld [vmem:[%s275 + $0x29] sm:$0x7f]
        %v1473 = vld [vmem:[%s275 + $0x31] sm:$0x7f]
        %v1474 = vld [vmem:[%s275 + $0x39] sm:$0x7f]
        %v1475 = vld [vmem:[%s275 + $0x41] sm:$0x7f]
        %v1476 = vld [vmem:[%s275 + $0x49] sm:$0x7f]
        %v1477 = vld [vmem:[%s275 + $0x51] sm:$0x7f]
        %v1478 = vld [vmem:[%s275 + $0x59] sm:$0x7f]
        %v1479 = vld [vmem:[%s275 + $0x61] sm:$0x7f]
        %v1480 = vld [vmem:[%s275 + $0x69] sm:$0x7f]
        %1482 = vset.pattern.permute.xlu0 0
        %1483 = vperm.xlu0 %1482, %v1467
        %v1484 = vpop.permute.xlu0 %1483
        %1487 = vset.pattern.permute.xlu0 0
        %1488 = vperm.xlu0 %1487, %v1468
        %v1489 = vpop.permute.xlu0 %1488
        %1492 = vset.pattern.permute.xlu0 0
        %1493 = vperm.xlu0 %1492, %v1469
        %v1494 = vpop.permute.xlu0 %1493
        %1497 = vset.pattern.permute.xlu0 0
        %1498 = vperm.xlu0 %1497, %v1470
        %v1499 = vpop.permute.xlu0 %1498
        %1502 = vset.pattern.permute.xlu0 0
        %1503 = vperm.xlu0 %1502, %v1471
        %v1504 = vpop.permute.xlu0 %1503
        %1507 = vset.pattern.permute.xlu0 0
        %1508 = vperm.xlu0 %1507, %v1472
        %v1509 = vpop.permute.xlu0 %1508
        %1512 = vset.pattern.permute.xlu0 0
        %1513 = vperm.xlu0 %1512, %v1473
        %v1514 = vpop.permute.xlu0 %1513
        %1517 = vset.pattern.permute.xlu0 0
        %1518 = vperm.xlu0 %1517, %v1474
        %v1519 = vpop.permute.xlu0 %1518
        %1522 = vset.pattern.permute.xlu0 0
        %1523 = vperm.xlu0 %1522, %v1475
        %v1524 = vpop.permute.xlu0 %1523
        %1527 = vset.pattern.permute.xlu0 0
        %1528 = vperm.xlu0 %1527, %v1476
        %v1529 = vpop.permute.xlu0 %1528
        %1532 = vset.pattern.permute.xlu0 0
        %1533 = vperm.xlu0 %1532, %v1477
        %v1534 = vpop.permute.xlu0 %1533
        %1537 = vset.pattern.permute.xlu0 0
        %1538 = vperm.xlu0 %1537, %v1478
        %v1539 = vpop.permute.xlu0 %1538
        %1542 = vset.pattern.permute.xlu0 0
        %1543 = vperm.xlu0 %1542, %v1479
        %v1544 = vpop.permute.xlu0 %1543
        %1547 = vset.pattern.permute.xlu0 0
        %1548 = vperm.xlu0 %1547, %v1480
        %v1549 = vpop.permute.xlu0 %1548
        %v1551 = vmul.f32 %v1484, %v596
        %v1552 = vmul.f32 %v1489, %v596
        %v1553 = vmul.f32 %v1494, %v596
        %v1554 = vmul.f32 %v1499, %v596
        %v1555 = vmul.f32 %v1504, %v596
        %v1556 = vmul.f32 %v1509, %v596
        %v1557 = vmul.f32 %v1514, %v596
        %v1558 = vmul.f32 %v1519, %v596
        %v1559 = vmul.f32 %v1524, %v596
        %v1560 = vmul.f32 %v1529, %v596
        %v1561 = vmul.f32 %v1534, %v596
        %v1562 = vmul.f32 %v1539, %v596
        %v1563 = vmul.f32 %v1544, %v596
        %v1564 = vmul.f32 %v1549, %v596
        %v1565 = vadd.f32 %v1453, %v1551
        %v1566 = vadd.f32 %v1454, %v1552
        %v1567 = vadd.f32 %v1455, %v1553
        %v1568 = vadd.f32 %v1456, %v1554
        %v1569 = vadd.f32 %v1457, %v1555
        %v1570 = vadd.f32 %v1458, %v1556
        %v1571 = vadd.f32 %v1459, %v1557
        %v1572 = vadd.f32 %v1460, %v1558
        %v1573 = vadd.f32 %v1461, %v1559
        %v1574 = vadd.f32 %v1462, %v1560
        %v1575 = vadd.f32 %v1463, %v1561
        %v1576 = vadd.f32 %v1464, %v1562
        %v1577 = vadd.f32 %v1465, %v1563
        %v1578 = vadd.f32 %v1466, %v1564
        %v1579 = vmul.f32 %v871, %v710
        %v1580 = vmul.f32 %v876, %v710
        %v1581 = vmul.f32 %v881, %v710
        %v1582 = vmul.f32 %v886, %v710
        %v1583 = vmul.f32 %v891, %v710
        %v1584 = vmul.f32 %v896, %v710
        %v1585 = vmul.f32 %v901, %v710
        %v1586 = vmul.f32 %v906, %v710
        %v1587 = vmul.f32 %v911, %v710
        %v1588 = vmul.f32 %v916, %v710
        %v1589 = vmul.f32 %v921, %v710
        %v1590 = vmul.f32 %v926, %v710
        %v1591 = vmul.f32 %v931, %v710
        %v1592 = vmul.f32 %v936, %v710
        %v1593 = vadd.f32 %v1565, %v1579
        %v1594 = vadd.f32 %v1566, %v1580
        %v1595 = vadd.f32 %v1567, %v1581
        %v1596 = vadd.f32 %v1568, %v1582
        %v1597 = vadd.f32 %v1569, %v1583
        %v1598 = vadd.f32 %v1570, %v1584
        %v1599 = vadd.f32 %v1571, %v1585
        %v1600 = vadd.f32 %v1572, %v1586
        %v1601 = vadd.f32 %v1573, %v1587
        %v1602 = vadd.f32 %v1574, %v1588
        %v1603 = vadd.f32 %v1575, %v1589
        %v1604 = vadd.f32 %v1576, %v1590
        %v1605 = vadd.f32 %v1577, %v1591
        %v1606 = vadd.f32 %v1578, %v1592
        %s1607 = scalar_lea.vmem %s275, 840
        %v1608 = vld [vmem:[%s1607] sm:$0x7f]
        %v1609 = vld [vmem:[%s1607 + $0x8] sm:$0x7f]
        %v1610 = vld [vmem:[%s1607 + $0x10] sm:$0x7f]
        %v1611 = vld [vmem:[%s1607 + $0x18] sm:$0x7f]
        %v1612 = vld [vmem:[%s1607 + $0x20] sm:$0x7f]
        %v1613 = vld [vmem:[%s1607 + $0x28] sm:$0x7f]
        %v1614 = vld [vmem:[%s1607 + $0x30] sm:$0x7f]
        %v1615 = vld [vmem:[%s1607 + $0x38] sm:$0x7f]
        %v1616 = vld [vmem:[%s1607 + $0x40] sm:$0x7f]
        %v1617 = vld [vmem:[%s1607 + $0x48] sm:$0x7f]
        %v1618 = vld [vmem:[%s1607 + $0x50] sm:$0x7f]
        %v1619 = vld [vmem:[%s1607 + $0x58] sm:$0x7f]
        %v1620 = vld [vmem:[%s1607 + $0x60] sm:$0x7f]
        %v1621 = vld [vmem:[%s1607 + $0x68] sm:$0x7f]
        %1623 = vset.pattern.permute.xlu0 0
        %1624 = vperm.xlu0 %1623, %v1608
        %v1625 = vpop.permute.xlu0 %1624
        %1628 = vset.pattern.permute.xlu0 0
        %1629 = vperm.xlu0 %1628, %v1609
        %v1630 = vpop.permute.xlu0 %1629
        %1633 = vset.pattern.permute.xlu0 0
        %1634 = vperm.xlu0 %1633, %v1610
        %v1635 = vpop.permute.xlu0 %1634
        %1638 = vset.pattern.permute.xlu0 0
        %1639 = vperm.xlu0 %1638, %v1611
        %v1640 = vpop.permute.xlu0 %1639
        %1643 = vset.pattern.permute.xlu0 0
        %1644 = vperm.xlu0 %1643, %v1612
        %v1645 = vpop.permute.xlu0 %1644
        %1648 = vset.pattern.permute.xlu0 0
        %1649 = vperm.xlu0 %1648, %v1613
        %v1650 = vpop.permute.xlu0 %1649
        %1653 = vset.pattern.permute.xlu0 0
        %1654 = vperm.xlu0 %1653, %v1614
        %v1655 = vpop.permute.xlu0 %1654
        %1658 = vset.pattern.permute.xlu0 0
        %1659 = vperm.xlu0 %1658, %v1615
        %v1660 = vpop.permute.xlu0 %1659
        %1663 = vset.pattern.permute.xlu0 0
        %1664 = vperm.xlu0 %1663, %v1616
        %v1665 = vpop.permute.xlu0 %1664
        %1668 = vset.pattern.permute.xlu0 0
        %1669 = vperm.xlu0 %1668, %v1617
        %v1670 = vpop.permute.xlu0 %1669
        %1673 = vset.pattern.permute.xlu0 0
        %1674 = vperm.xlu0 %1673, %v1618
        %v1675 = vpop.permute.xlu0 %1674
        %1678 = vset.pattern.permute.xlu0 0
        %1679 = vperm.xlu0 %1678, %v1619
        %v1680 = vpop.permute.xlu0 %1679
        %1683 = vset.pattern.permute.xlu0 0
        %1684 = vperm.xlu0 %1683, %v1620
        %v1685 = vpop.permute.xlu0 %1684
        %1688 = vset.pattern.permute.xlu0 0
        %1689 = vperm.xlu0 %1688, %v1621
        %v1690 = vpop.permute.xlu0 %1689
        %v1692 = vmul.f32 %v1625, %v824
        %v1693 = vmul.f32 %v1630, %v824
        %v1694 = vmul.f32 %v1635, %v824
        %v1695 = vmul.f32 %v1640, %v824
        %v1696 = vmul.f32 %v1645, %v824
        %v1697 = vmul.f32 %v1650, %v824
        %v1698 = vmul.f32 %v1655, %v824
        %v1699 = vmul.f32 %v1660, %v824
        %v1700 = vmul.f32 %v1665, %v824
        %v1701 = vmul.f32 %v1670, %v824
        %v1702 = vmul.f32 %v1675, %v824
        %v1703 = vmul.f32 %v1680, %v824
        %v1704 = vmul.f32 %v1685, %v824
        %v1705 = vmul.f32 %v1690, %v824
        %v1706 = vadd.f32 %v1593, %v1692
        %v1707 = vadd.f32 %v1594, %v1693
        %v1708 = vadd.f32 %v1595, %v1694
        %v1709 = vadd.f32 %v1596, %v1695
        %v1710 = vadd.f32 %v1597, %v1696
        %v1711 = vadd.f32 %v1598, %v1697
        %v1712 = vadd.f32 %v1599, %v1698
        %v1713 = vadd.f32 %v1600, %v1699
        %v1714 = vadd.f32 %v1601, %v1700
        %v1715 = vadd.f32 %v1602, %v1701
        %v1716 = vadd.f32 %v1603, %v1702
        %v1717 = vadd.f32 %v1604, %v1703
        %v1718 = vadd.f32 %v1605, %v1704
        %v1719 = vadd.f32 %v1606, %v1705
        %v1720 = vld [vmem:[%s625 + $0x1] sm:$0x7f]
        %v1721 = vld [vmem:[%s625 + $0x9] sm:$0x7f]
        %v1722 = vld [vmem:[%s625 + $0x11] sm:$0x7f]
        %v1723 = vld [vmem:[%s625 + $0x19] sm:$0x7f]
        %v1724 = vld [vmem:[%s625 + $0x21] sm:$0x7f]
        %v1725 = vld [vmem:[%s625 + $0x29] sm:$0x7f]
        %v1726 = vld [vmem:[%s625 + $0x31] sm:$0x7f]
        %v1727 = vld [vmem:[%s625 + $0x39] sm:$0x7f]
        %v1728 = vld [vmem:[%s625 + $0x41] sm:$0x7f]
        %v1729 = vld [vmem:[%s625 + $0x49] sm:$0x7f]
        %v1730 = vld [vmem:[%s625 + $0x51] sm:$0x7f]
        %v1731 = vld [vmem:[%s625 + $0x59] sm:$0x7f]
        %v1732 = vld [vmem:[%s625 + $0x61] sm:$0x7f]
        %v1733 = vld [vmem:[%s625 + $0x69] sm:$0x7f]
        %1735 = vset.pattern.permute.xlu0 0
        %1736 = vperm.xlu0 %1735, %v1720
        %v1737 = vpop.permute.xlu0 %1736
        %1740 = vset.pattern.permute.xlu0 0
        %1741 = vperm.xlu0 %1740, %v1721
        %v1742 = vpop.permute.xlu0 %1741
        %1745 = vset.pattern.permute.xlu0 0
        %1746 = vperm.xlu0 %1745, %v1722
        %v1747 = vpop.permute.xlu0 %1746
        %1750 = vset.pattern.permute.xlu0 0
        %1751 = vperm.xlu0 %1750, %v1723
        %v1752 = vpop.permute.xlu0 %1751
        %1755 = vset.pattern.permute.xlu0 0
        %1756 = vperm.xlu0 %1755, %v1724
        %v1757 = vpop.permute.xlu0 %1756
        %1760 = vset.pattern.permute.xlu0 0
        %1761 = vperm.xlu0 %1760, %v1725
        %v1762 = vpop.permute.xlu0 %1761
        %1765 = vset.pattern.permute.xlu0 0
        %1766 = vperm.xlu0 %1765, %v1726
        %v1767 = vpop.permute.xlu0 %1766
        %1770 = vset.pattern.permute.xlu0 0
        %1771 = vperm.xlu0 %1770, %v1727
        %v1772 = vpop.permute.xlu0 %1771
        %1775 = vset.pattern.permute.xlu0 0
        %1776 = vperm.xlu0 %1775, %v1728
        %v1777 = vpop.permute.xlu0 %1776
        %1780 = vset.pattern.permute.xlu0 0
        %1781 = vperm.xlu0 %1780, %v1729
        %v1782 = vpop.permute.xlu0 %1781
        %1785 = vset.pattern.permute.xlu0 0
        %1786 = vperm.xlu0 %1785, %v1730
        %v1787 = vpop.permute.xlu0 %1786
        %1790 = vset.pattern.permute.xlu0 0
        %1791 = vperm.xlu0 %1790, %v1731
        %v1792 = vpop.permute.xlu0 %1791
        %1795 = vset.pattern.permute.xlu0 0
        %1796 = vperm.xlu0 %1795, %v1732
        %v1797 = vpop.permute.xlu0 %1796
        %1800 = vset.pattern.permute.xlu0 0
        %1801 = vperm.xlu0 %1800, %v1733
        %v1802 = vpop.permute.xlu0 %1801
        %v1804 = vmul.f32 %v1737, %v938
        %v1805 = vmul.f32 %v1742, %v938
        %v1806 = vmul.f32 %v1747, %v938
        %v1807 = vmul.f32 %v1752, %v938
        %v1808 = vmul.f32 %v1757, %v938
        %v1809 = vmul.f32 %v1762, %v938
        %v1810 = vmul.f32 %v1767, %v938
        %v1811 = vmul.f32 %v1772, %v938
        %v1812 = vmul.f32 %v1777, %v938
        %v1813 = vmul.f32 %v1782, %v938
        %v1814 = vmul.f32 %v1787, %v938
        %v1815 = vmul.f32 %v1792, %v938
        %v1816 = vmul.f32 %v1797, %v938
        %v1817 = vmul.f32 %v1802, %v938
        %v1818 = vadd.f32 %v1706, %v1804
        %v1819 = vadd.f32 %v1707, %v1805
        %v1820 = vadd.f32 %v1708, %v1806
        %v1821 = vadd.f32 %v1709, %v1807
        %v1822 = vadd.f32 %v1710, %v1808
        %v1823 = vadd.f32 %v1711, %v1809
        %v1824 = vadd.f32 %v1712, %v1810
        %v1825 = vadd.f32 %v1713, %v1811
        %v1826 = vadd.f32 %v1714, %v1812
        %v1827 = vadd.f32 %v1715, %v1813
        %v1828 = vadd.f32 %v1716, %v1814
        %v1829 = vadd.f32 %v1717, %v1815
        %v1830 = vadd.f32 %v1718, %v1816
        %v1831 = vadd.f32 %v1719, %v1817
        %v1832 = vmul.f32 %v1213, %v1052
        %v1833 = vmul.f32 %v1218, %v1052
        %v1834 = vmul.f32 %v1223, %v1052
        %v1835 = vmul.f32 %v1228, %v1052
        %v1836 = vmul.f32 %v1233, %v1052
        %v1837 = vmul.f32 %v1238, %v1052
        %v1838 = vmul.f32 %v1243, %v1052
        %v1839 = vmul.f32 %v1248, %v1052
        %v1840 = vmul.f32 %v1253, %v1052
        %v1841 = vmul.f32 %v1258, %v1052
        %v1842 = vmul.f32 %v1263, %v1052
        %v1843 = vmul.f32 %v1268, %v1052
        %v1844 = vmul.f32 %v1273, %v1052
        %v1845 = vmul.f32 %v1278, %v1052
        %v1846 = vadd.f32 %v1818, %v1832
        %v1847 = vadd.f32 %v1819, %v1833
        %v1848 = vadd.f32 %v1820, %v1834
        %v1849 = vadd.f32 %v1821, %v1835
        %v1850 = vadd.f32 %v1822, %v1836
        %v1851 = vadd.f32 %v1823, %v1837
        %v1852 = vadd.f32 %v1824, %v1838
        %v1853 = vadd.f32 %v1825, %v1839
        %v1854 = vadd.f32 %v1826, %v1840
        %v1855 = vadd.f32 %v1827, %v1841
        %v1856 = vadd.f32 %v1828, %v1842
        %v1857 = vadd.f32 %v1829, %v1843
        %v1858 = vadd.f32 %v1830, %v1844
        %v1859 = vadd.f32 %v1831, %v1845
        %s1860 = scalar_lea.vmem %s275, 368
        %v1861 = vld [vmem:[%s1860] sm:$0x7f]
        %v1862 = vld [vmem:[%s1860 + $0x8] sm:$0x7f]
        %v1863 = vld [vmem:[%s1860 + $0x10] sm:$0x7f]
        %v1864 = vld [vmem:[%s1860 + $0x18] sm:$0x7f]
        %v1865 = vld [vmem:[%s1860 + $0x20] sm:$0x7f]
        %v1866 = vld [vmem:[%s1860 + $0x28] sm:$0x7f]
        %v1867 = vld [vmem:[%s1860 + $0x30] sm:$0x7f]
        %v1868 = vld [vmem:[%s1860 + $0x38] sm:$0x7f]
        %v1869 = vld [vmem:[%s1860 + $0x40] sm:$0x7f]
        %v1870 = vld [vmem:[%s1860 + $0x48] sm:$0x7f]
        %v1871 = vld [vmem:[%s1860 + $0x50] sm:$0x7f]
        %v1872 = vld [vmem:[%s1860 + $0x58] sm:$0x7f]
        %v1873 = vld [vmem:[%s1860 + $0x60] sm:$0x7f]
        %v1874 = vld [vmem:[%s1860 + $0x68] sm:$0x7f]
        %1876 = vset.pattern.permute.xlu0 0
        %1877 = vperm.xlu0 %1876, %v1861
        %v1878 = vpop.permute.xlu0 %1877
        %1881 = vset.pattern.permute.xlu0 0
        %1882 = vperm.xlu0 %1881, %v1862
        %v1883 = vpop.permute.xlu0 %1882
        %1886 = vset.pattern.permute.xlu0 0
        %1887 = vperm.xlu0 %1886, %v1863
        %v1888 = vpop.permute.xlu0 %1887
        %1891 = vset.pattern.permute.xlu0 0
        %1892 = vperm.xlu0 %1891, %v1864
        %v1893 = vpop.permute.xlu0 %1892
        %1896 = vset.pattern.permute.xlu0 0
        %1897 = vperm.xlu0 %1896, %v1865
        %v1898 = vpop.permute.xlu0 %1897
        %1901 = vset.pattern.permute.xlu0 0
        %1902 = vperm.xlu0 %1901, %v1866
        %v1903 = vpop.permute.xlu0 %1902
        %1906 = vset.pattern.permute.xlu0 0
        %1907 = vperm.xlu0 %1906, %v1867
        %v1908 = vpop.permute.xlu0 %1907
        %1911 = vset.pattern.permute.xlu0 0
        %1912 = vperm.xlu0 %1911, %v1868
        %v1913 = vpop.permute.xlu0 %1912
        %1916 = vset.pattern.permute.xlu0 0
        %1917 = vperm.xlu0 %1916, %v1869
        %v1918 = vpop.permute.xlu0 %1917
        %1921 = vset.pattern.permute.xlu0 0
        %1922 = vperm.xlu0 %1921, %v1870
        %v1923 = vpop.permute.xlu0 %1922
        %1926 = vset.pattern.permute.xlu0 0
        %1927 = vperm.xlu0 %1926, %v1871
        %v1928 = vpop.permute.xlu0 %1927
        %1931 = vset.pattern.permute.xlu0 0
        %1932 = vperm.xlu0 %1931, %v1872
        %v1933 = vpop.permute.xlu0 %1932
        %1936 = vset.pattern.permute.xlu0 0
        %1937 = vperm.xlu0 %1936, %v1873
        %v1938 = vpop.permute.xlu0 %1937
        %1941 = vset.pattern.permute.xlu0 0
        %1942 = vperm.xlu0 %1941, %v1874
        %v1943 = vpop.permute.xlu0 %1942
        %v1945 = vmul.f32 %v1878, %v1166
        %v1946 = vmul.f32 %v1883, %v1166
        %v1947 = vmul.f32 %v1888, %v1166
        %v1948 = vmul.f32 %v1893, %v1166
        %v1949 = vmul.f32 %v1898, %v1166
        %v1950 = vmul.f32 %v1903, %v1166
        %v1951 = vmul.f32 %v1908, %v1166
        %v1952 = vmul.f32 %v1913, %v1166
        %v1953 = vmul.f32 %v1918, %v1166
        %v1954 = vmul.f32 %v1923, %v1166
        %v1955 = vmul.f32 %v1928, %v1166
        %v1956 = vmul.f32 %v1933, %v1166
        %v1957 = vmul.f32 %v1938, %v1166
        %v1958 = vmul.f32 %v1943, %v1166
        %v1959 = vadd.f32 %v1846, %v1945
        %v1960 = vadd.f32 %v1847, %v1946
        %v1961 = vadd.f32 %v1848, %v1947
        %v1962 = vadd.f32 %v1849, %v1948
        %v1963 = vadd.f32 %v1850, %v1949
        %v1964 = vadd.f32 %v1851, %v1950
        %v1965 = vadd.f32 %v1852, %v1951
        %v1966 = vadd.f32 %v1853, %v1952
        %v1967 = vadd.f32 %v1854, %v1953
        %v1968 = vadd.f32 %v1855, %v1954
        %v1969 = vadd.f32 %v1856, %v1955
        %v1970 = vadd.f32 %v1857, %v1956
        %v1971 = vadd.f32 %v1858, %v1957
        %v1972 = vadd.f32 %v1859, %v1958
        %v1973 = vld [vmem:[%s967 + $0x1] sm:$0x7f]
        %v1974 = vld [vmem:[%s967 + $0x9] sm:$0x7f]
        %v1975 = vld [vmem:[%s967 + $0x11] sm:$0x7f]
        %v1976 = vld [vmem:[%s967 + $0x19] sm:$0x7f]
        %v1977 = vld [vmem:[%s967 + $0x21] sm:$0x7f]
        %v1978 = vld [vmem:[%s967 + $0x29] sm:$0x7f]
        %v1979 = vld [vmem:[%s967 + $0x31] sm:$0x7f]
        %v1980 = vld [vmem:[%s967 + $0x39] sm:$0x7f]
        %v1981 = vld [vmem:[%s967 + $0x41] sm:$0x7f]
        %v1982 = vld [vmem:[%s967 + $0x49] sm:$0x7f]
        %v1983 = vld [vmem:[%s967 + $0x51] sm:$0x7f]
        %v1984 = vld [vmem:[%s967 + $0x59] sm:$0x7f]
        %v1985 = vld [vmem:[%s967 + $0x61] sm:$0x7f]
        %v1986 = vld [vmem:[%s967 + $0x69] sm:$0x7f]
        %1988 = vset.pattern.permute.xlu0 0
        %1989 = vperm.xlu0 %1988, %v1973
        %v1990 = vpop.permute.xlu0 %1989
        %1993 = vset.pattern.permute.xlu0 0
        %1994 = vperm.xlu0 %1993, %v1974
        %v1995 = vpop.permute.xlu0 %1994
        %1998 = vset.pattern.permute.xlu0 0
        %1999 = vperm.xlu0 %1998, %v1975
        %v2000 = vpop.permute.xlu0 %1999
        %2003 = vset.pattern.permute.xlu0 0
        %2004 = vperm.xlu0 %2003, %v1976
        %v2005 = vpop.permute.xlu0 %2004
        %2008 = vset.pattern.permute.xlu0 0
        %2009 = vperm.xlu0 %2008, %v1977
        %v2010 = vpop.permute.xlu0 %2009
        %2013 = vset.pattern.permute.xlu0 0
        %2014 = vperm.xlu0 %2013, %v1978
        %v2015 = vpop.permute.xlu0 %2014
        %2018 = vset.pattern.permute.xlu0 0
        %2019 = vperm.xlu0 %2018, %v1979
        %v2020 = vpop.permute.xlu0 %2019
        %2023 = vset.pattern.permute.xlu0 0
        %2024 = vperm.xlu0 %2023, %v1980
        %v2025 = vpop.permute.xlu0 %2024
        %2028 = vset.pattern.permute.xlu0 0
        %2029 = vperm.xlu0 %2028, %v1981
        %v2030 = vpop.permute.xlu0 %2029
        %2033 = vset.pattern.permute.xlu0 0
        %2034 = vperm.xlu0 %2033, %v1982
        %v2035 = vpop.permute.xlu0 %2034
        %2038 = vset.pattern.permute.xlu0 0
        %2039 = vperm.xlu0 %2038, %v1983
        %v2040 = vpop.permute.xlu0 %2039
        %2043 = vset.pattern.permute.xlu0 0
        %2044 = vperm.xlu0 %2043, %v1984
        %v2045 = vpop.permute.xlu0 %2044
        %2048 = vset.pattern.permute.xlu0 0
        %2049 = vperm.xlu0 %2048, %v1985
        %v2050 = vpop.permute.xlu0 %2049
        %2053 = vset.pattern.permute.xlu0 0
        %2054 = vperm.xlu0 %2053, %v1986
        %v2055 = vpop.permute.xlu0 %2054
        %v2057 = vmul.f32 %v1990, %v1280
        %v2058 = vmul.f32 %v1995, %v1280
        %v2059 = vmul.f32 %v2000, %v1280
        %v2060 = vmul.f32 %v2005, %v1280
        %v2061 = vmul.f32 %v2010, %v1280
        %v2062 = vmul.f32 %v2015, %v1280
        %v2063 = vmul.f32 %v2020, %v1280
        %v2064 = vmul.f32 %v2025, %v1280
        %v2065 = vmul.f32 %v2030, %v1280
        %v2066 = vmul.f32 %v2035, %v1280
        %v2067 = vmul.f32 %v2040, %v1280
        %v2068 = vmul.f32 %v2045, %v1280
        %v2069 = vmul.f32 %v2050, %v1280
        %v2070 = vmul.f32 %v2055, %v1280
        %v2071 = vadd.f32 %v1959, %v2057
        %v2072 = vadd.f32 %v1960, %v2058
        %v2073 = vadd.f32 %v1961, %v2059
        %v2074 = vadd.f32 %v1962, %v2060
        %v2075 = vadd.f32 %v1963, %v2061
        %v2076 = vadd.f32 %v1964, %v2062
        %v2077 = vadd.f32 %v1965, %v2063
        %v2078 = vadd.f32 %v1966, %v2064
        %v2079 = vadd.f32 %v1967, %v2065
        %v2080 = vadd.f32 %v1968, %v2066
        %v2081 = vadd.f32 %v1969, %v2067
        %v2082 = vadd.f32 %v1970, %v2068
        %v2083 = vadd.f32 %v1971, %v2069
        %v2084 = vadd.f32 %v1972, %v2070
        %v2085 = vadd.f32 %v2071, %v1310
        %v2086 = vadd.f32 %v2072, %v1310
        %v2087 = vadd.f32 %v2073, %v1310
        %v2088 = vadd.f32 %v2074, %v1310
        %v2089 = vadd.f32 %v2075, %v1310
        %v2090 = vadd.f32 %v2076, %v1310
        %v2091 = vadd.f32 %v2077, %v1310
        %v2092 = vadd.f32 %v2078, %v1310
        %v2093 = vadd.f32 %v2079, %v1310
        %v2094 = vadd.f32 %v2080, %v1310
        %v2095 = vadd.f32 %v2081, %v1310
        %v2096 = vadd.f32 %v2082, %v1310
        %v2097 = vadd.f32 %v2083, %v1310
        %v2098 = vadd.f32 %v2084, %v1310
        %v2099 = vmax.f32 %v2085, 0.0
        %v2100 = vmax.f32 %v2086, 0.0
        %v2101 = vmax.f32 %v2087, 0.0
        %v2102 = vmax.f32 %v2088, 0.0
        %v2103 = vmax.f32 %v2089, 0.0
        %v2104 = vmax.f32 %v2090, 0.0
        %v2105 = vmax.f32 %v2091, 0.0
        %v2106 = vmax.f32 %v2092, 0.0
        %v2107 = vmax.f32 %v2093, 0.0
        %v2108 = vmax.f32 %v2094, 0.0
        %v2109 = vmax.f32 %v2095, 0.0
        %v2110 = vmax.f32 %v2096, 0.0
        %v2111 = vmax.f32 %v2097, 0.0
        %v2112 = vmax.f32 %v2098, 0.0
        %2127 = vrot.lane.b32.xlu0 %v2099, 16
        %v2128 = vpop.permute.xlu0 %2127
        %2129 = vrot.lane.b32.xlu0 %v2100, 16
        %v2130 = vpop.permute.xlu0 %2129
        %2131 = vrot.lane.b32.xlu0 %v2101, 16
        %v2132 = vpop.permute.xlu0 %2131
        %2133 = vrot.lane.b32.xlu0 %v2102, 16
        %v2134 = vpop.permute.xlu0 %2133
        %2135 = vrot.lane.b32.xlu0 %v2103, 16
        %v2136 = vpop.permute.xlu0 %2135
        %2137 = vrot.lane.b32.xlu0 %v2104, 16
        %v2138 = vpop.permute.xlu0 %2137
        %2139 = vrot.lane.b32.xlu0 %v2105, 16
        %v2140 = vpop.permute.xlu0 %2139
        %2141 = vrot.lane.b32.xlu0 %v2106, 16
        %v2142 = vpop.permute.xlu0 %2141
        %2143 = vrot.lane.b32.xlu0 %v2107, 16
        %v2144 = vpop.permute.xlu0 %2143
        %2145 = vrot.lane.b32.xlu0 %v2108, 16
        %v2146 = vpop.permute.xlu0 %2145
        %2147 = vrot.lane.b32.xlu0 %v2109, 16
        %v2148 = vpop.permute.xlu0 %2147
        %2149 = vrot.lane.b32.xlu0 %v2110, 16
        %v2150 = vpop.permute.xlu0 %2149
        %2151 = vrot.lane.b32.xlu0 %v2111, 16
        %v2152 = vpop.permute.xlu0 %2151
        %2153 = vrot.lane.b32.xlu0 %v2112, 16
        %v2154 = vpop.permute.xlu0 %2153
        %vm2169 = vcmask 130048
        %v2170 = vsel %vm2169, %v1326, %v2128
        %v2171 = vsel %vm2169, %v1327, %v2130
        %v2172 = vsel %vm2169, %v1328, %v2132
        %v2173 = vsel %vm2169, %v1329, %v2134
        %v2174 = vsel %vm2169, %v1330, %v2136
        %v2175 = vsel %vm2169, %v1331, %v2138
        %v2176 = vsel %vm2169, %v1332, %v2140
        %v2177 = vsel %vm2169, %v1333, %v2142
        %v2178 = vsel %vm2169, %v1334, %v2144
        %v2179 = vsel %vm2169, %v1335, %v2146
        %v2180 = vsel %vm2169, %v1336, %v2148
        %v2181 = vsel %vm2169, %v1337, %v2150
        %v2182 = vsel %vm2169, %v1338, %v2152
        %v2183 = vsel %vm2169, %v1339, %v2154
        %vm2184 = vcmask 261120
        %2185 = vst.msk [vmem:[#allocation2] sm:$0xff] %vm2184, 0.0
        %2186 = vst.msk [vmem:[#allocation2 + $0x8] sm:$0xff] %vm2184, 0.0
        %2187 = vst.msk [vmem:[#allocation2 + $0x10] sm:$0xff] %vm2184, 0.0
        %2188 = vst.msk [vmem:[#allocation2 + $0x18] sm:$0xff] %vm2184, 0.0
        %2189 = vst.msk [vmem:[#allocation2 + $0x20] sm:$0xff] %vm2184, 0.0
        %2190 = vst.msk [vmem:[#allocation2 + $0x28] sm:$0xff] %vm2184, 0.0
        %2191 = vst.msk [vmem:[#allocation2 + $0x30] sm:$0xff] %vm2184, 0.0
        %2192 = vst.msk [vmem:[#allocation2 + $0x38] sm:$0xff] %vm2184, 0.0
        %2193 = vst.msk [vmem:[#allocation2 + $0x40] sm:$0xff] %vm2184, 0.0
        %2194 = vst.msk [vmem:[#allocation2 + $0x48] sm:$0xff] %vm2184, 0.0
        %2195 = vst.msk [vmem:[#allocation2 + $0x50] sm:$0xff] %vm2184, 0.0
        %2196 = vst.msk [vmem:[#allocation2 + $0x58] sm:$0xff] %vm2184, 0.0
        %2197 = vst.msk [vmem:[#allocation2 + $0x60] sm:$0xff] %vm2184, 0.0
        %2198 = vst.msk [vmem:[#allocation2 + $0x68] sm:$0xff] %vm2184, 0.0
        %2199 = vst.msk [vmem:[#allocation2 + $0x70] sm:$0xff] %vm2184, 0.0
        %2200 = vst.msk [vmem:[#allocation2 + $0x78] sm:$0xff] %vm2184, 0.0
        %s2201 = scalar_lea.vmem [#allocation2], 8
        %vm2202 = vcmask 260096
        %2203 = vst.msk [vmem:[%s2201 + $0x1] sm:$0x7f] %vm2202, %v2170
        %2204 = vst.msk [vmem:[%s2201 + $0x9] sm:$0x7f] %vm2202, %v2171
        %2205 = vst.msk [vmem:[%s2201 + $0x11] sm:$0x7f] %vm2202, %v2172
        %2206 = vst.msk [vmem:[%s2201 + $0x19] sm:$0x7f] %vm2202, %v2173
        %2207 = vst.msk [vmem:[%s2201 + $0x21] sm:$0x7f] %vm2202, %v2174
        %2208 = vst.msk [vmem:[%s2201 + $0x29] sm:$0x7f] %vm2202, %v2175
        %2209 = vst.msk [vmem:[%s2201 + $0x31] sm:$0x7f] %vm2202, %v2176
        %2210 = vst.msk [vmem:[%s2201 + $0x39] sm:$0x7f] %vm2202, %v2177
        %2211 = vst.msk [vmem:[%s2201 + $0x41] sm:$0x7f] %vm2202, %v2178
        %2212 = vst.msk [vmem:[%s2201 + $0x49] sm:$0x7f] %vm2202, %v2179
        %2213 = vst.msk [vmem:[%s2201 + $0x51] sm:$0x7f] %vm2202, %v2180
        %2214 = vst.msk [vmem:[%s2201 + $0x59] sm:$0x7f] %vm2202, %v2181
        %2215 = vst.msk [vmem:[%s2201 + $0x61] sm:$0x7f] %vm2202, %v2182
        %2216 = vst.msk [vmem:[%s2201 + $0x69] sm:$0x7f] %vm2202, %v2183
        %v2217 = vld [vmem:[#allocation2] sm:$0xff]
        %v2218 = vld [vmem:[%s2201] sm:$0xff]
        %s2219 = scalar_lea.vmem [#allocation2], 16
        %v2220 = vld [vmem:[%s2219] sm:$0xff]
        %2222 = vrot.lane.b32.xlu0 %v2217, 112
        %v2223 = vpop.permute.xlu0 %2222
        %v2225 = vrot.slane %v2217, 1
        %2226 = vrot.lane.b32.xlu0 %v2225, 16
        %v2227 = vpop.permute.xlu0 %2226
        %2230 = vrot.lane.b32.xlu0 %v2218, 32
        %v2231 = vpop.permute.xlu0 %2230
        %v2233 = vrot.slane %v2218, 1
        %2234 = vrot.lane.b32.xlu0 %v2233, 64
        %v2235 = vpop.permute.xlu0 %2234
        %2238 = vrot.lane.b32.xlu0 %v2220, 80
        %v2239 = vpop.permute.xlu0 %2238
        %v2241 = vrot.slane %v2220, 1
        %2242 = vrot.lane.b32.xlu0 %v2241, 112
        %v2243 = vpop.permute.xlu0 %2242
        %v2245 = vsel %vm2169, %v2223, %v2227
        %v2246 = vsel %vm2184, %v2245, %v2227
        %vm2247 = vcmask 392192
        %v2248 = vsel %vm2247, %v2246, %v2231
        %vm2249 = vcmask 523264
        %v2250 = vsel %vm2249, %v2248, %v2235
        %vm2251 = vcmask 654336
        %v2252 = vsel %vm2251, %v2250, %v2235
        %vm2253 = vcmask 785408
        %v2254 = vsel %vm2253, %v2252, %v2239
        %vm2255 = vcmask 916480
        %v2256 = vsel %vm2255, %v2254, %v2243
        %v2258 = vperm.slane %v297, 0
        %v2260 = vsel %vm2169, %v2243, 0
        %2262 = vmatpush.msra.mxu0 %v294
        %2263 = vmatpush.msra.mxu0 %v293
        %2264 = vmatpush.msra.mxu0 %v292
        %2265 = vmatpush.msra.mxu0 %v291
        %2266 = vmatpush.msra.mxu0 %v290
        %2267 = vmatpush.msra.mxu0 %v289
        %2268 = vmatpush.msra.mxu0 %v288
        %2269 = vmatpush.msra.mxu0 %v287
        %2270 = vmatpush.msra.mxu0 %v286
        %2271 = vmatpush.msra.mxu0 %v285
        %2272 = vmatpush.msra.mxu0 %v284
        %2273 = vmatpush.msra.mxu0 %v283
        %2274 = vmatpush.msra.mxu0 %v282
        %2275 = vmatpush.msra.mxu0 %v281
        %2276 = vmatpush.msra.mxu0 %v280
        %2277 = vmatpush.msra.mxu0 %v279
        %2278 = vmatmul.f32.gmra.mxu0 %v2256
        %v2279 = vpop.f32.mrf.mxu0
        %v2280 = vadd.f32 %v2258, %v2279
        %2281 = vdwg.mxu0
        %2282 = vmatpush.msra.mxu0 0.0
        %2283 = vmatpush.msra.mxu0 0.0
        %2284 = vmatpush.msra.mxu0 0.0
        %2285 = vmatpush.msra.mxu0 0.0
        %2286 = vmatpush.msra.mxu0 0.0
        %2287 = vmatpush.msra.mxu0 0.0
        %2288 = vmatpush.msra.mxu0 0.0
        %2289 = vmatpush.msra.mxu0 0.0
        %2290 = vmatpush.msra.mxu0 0.0
        %2291 = vmatpush.msra.mxu0 0.0
        %2292 = vmatpush.msra.mxu0 0.0
        %2293 = vmatpush.msra.mxu0 0.0
        %2294 = vmatpush.msra.mxu0 0.0
        %2295 = vmatpush.msra.mxu0 0.0
        %2296 = vmatpush.msra.mxu0 %v296
        %2297 = vmatpush.msra.mxu0 %v295
        %2298 = vmatmul.f32.gmra.mxu0 %v2260
        %v2299 = vpop.f32.mrf.mxu0
        %v2300 = vadd.f32 %v2280, %v2299
        %2301 = vdwg.mxu0
        %v2302 = vmax.f32 %v2300, 0.0
        %s2303 = scalar_lea.vmem [#allocation2], 24
        %v2304 = vld [vmem:[%s2303] sm:$0xff]
        %s2305 = scalar_lea.vmem [#allocation2], 32
        %v2306 = vld [vmem:[%s2305] sm:$0xff]
        %2307 = vrot.lane.b32.xlu0 %v2220, 112
        %v2308 = vpop.permute.xlu0 %2307
        %2310 = vrot.lane.b32.xlu0 %v2241, 16
        %v2311 = vpop.permute.xlu0 %2310
        %2314 = vrot.lane.b32.xlu0 %v2304, 32
        %v2315 = vpop.permute.xlu0 %2314
        %v2317 = vrot.slane %v2304, 1
        %2318 = vrot.lane.b32.xlu0 %v2317, 64
        %v2319 = vpop.permute.xlu0 %2318
        %2322 = vrot.lane.b32.xlu0 %v2306, 80
        %v2323 = vpop.permute.xlu0 %2322
        %v2325 = vrot.slane %v2306, 1
        %2326 = vrot.lane.b32.xlu0 %v2325, 112
        %v2327 = vpop.permute.xlu0 %2326
        %v2329 = vsel %vm2169, %v2308, %v2311
        %v2330 = vsel %vm2184, %v2329, %v2311
        %v2331 = vsel %vm2247, %v2330, %v2315
        %v2332 = vsel %vm2249, %v2331, %v2319
        %v2333 = vsel %vm2251, %v2332, %v2319
        %v2334 = vsel %vm2253, %v2333, %v2323
        %v2335 = vsel %vm2255, %v2334, %v2327
        %v2336 = vsel %vm2169, %v2327, 0
        %2338 = vmatpush.msra.mxu0 %v294
        %2339 = vmatpush.msra.mxu0 %v293
        %2340 = vmatpush.msra.mxu0 %v292
        %2341 = vmatpush.msra.mxu0 %v291
        %2342 = vmatpush.msra.mxu0 %v290
        %2343 = vmatpush.msra.mxu0 %v289
        %2344 = vmatpush.msra.mxu0 %v288
        %2345 = vmatpush.msra.mxu0 %v287
        %2346 = vmatpush.msra.mxu0 %v286
        %2347 = vmatpush.msra.mxu0 %v285
        %2348 = vmatpush.msra.mxu0 %v284
        %2349 = vmatpush.msra.mxu0 %v283
        %2350 = vmatpush.msra.mxu0 %v282
        %2351 = vmatpush.msra.mxu0 %v281
        %2352 = vmatpush.msra.mxu0 %v280
        %2353 = vmatpush.msra.mxu0 %v279
        %2354 = vmatmul.f32.gmra.mxu0 %v2335
        %v2355 = vpop.f32.mrf.mxu0
        %v2356 = vadd.f32 %v2258, %v2355
        %2357 = vdwg.mxu0
        %2358 = vmatpush.msra.mxu0 0.0
        %2359 = vmatpush.msra.mxu0 0.0
        %2360 = vmatpush.msra.mxu0 0.0
        %2361 = vmatpush.msra.mxu0 0.0
        %2362 = vmatpush.msra.mxu0 0.0
        %2363 = vmatpush.msra.mxu0 0.0
        %2364 = vmatpush.msra.mxu0 0.0
        %2365 = vmatpush.msra.mxu0 0.0
        %2366 = vmatpush.msra.mxu0 0.0
        %2367 = vmatpush.msra.mxu0 0.0
        %2368 = vmatpush.msra.mxu0 0.0
        %2369 = vmatpush.msra.mxu0 0.0
        %2370 = vmatpush.msra.mxu0 0.0
        %2371 = vmatpush.msra.mxu0 0.0
        %2372 = vmatpush.msra.mxu0 %v296
        %2373 = vmatpush.msra.mxu0 %v295
        %2374 = vmatmul.f32.gmra.mxu0 %v2336
        %v2375 = vpop.f32.mrf.mxu0
        %v2376 = vadd.f32 %v2356, %v2375
        %2377 = vdwg.mxu0
        %v2378 = vmax.f32 %v2376, 0.0
        %s2379 = scalar_lea.vmem [#allocation2], 40
        %v2380 = vld [vmem:[%s2379] sm:$0xff]
        %s2381 = scalar_lea.vmem [#allocation2], 48
        %v2382 = vld [vmem:[%s2381] sm:$0xff]
        %2383 = vrot.lane.b32.xlu0 %v2306, 112
        %v2384 = vpop.permute.xlu0 %2383
        %2386 = vrot.lane.b32.xlu0 %v2325, 16
        %v2387 = vpop.permute.xlu0 %2386
        %2390 = vrot.lane.b32.xlu0 %v2380, 32
        %v2391 = vpop.permute.xlu0 %2390
        %v2393 = vrot.slane %v2380, 1
        %2394 = vrot.lane.b32.xlu0 %v2393, 64
        %v2395 = vpop.permute.xlu0 %2394
        %2398 = vrot.lane.b32.xlu0 %v2382, 80
        %v2399 = vpop.permute.xlu0 %2398
        %v2401 = vrot.slane %v2382, 1
        %2402 = vrot.lane.b32.xlu0 %v2401, 112
        %v2403 = vpop.permute.xlu0 %2402
        %v2405 = vsel %vm2169, %v2384, %v2387
        %v2406 = vsel %vm2184, %v2405, %v2387
        %v2407 = vsel %vm2247, %v2406, %v2391
        %v2408 = vsel %vm2249, %v2407, %v2395
        %v2409 = vsel %vm2251, %v2408, %v2395
        %v2410 = vsel %vm2253, %v2409, %v2399
        %v2411 = vsel %vm2255, %v2410, %v2403
        %v2412 = vsel %vm2169, %v2403, 0
        %2414 = vmatpush.msra.mxu0 %v294
        %2415 = vmatpush.msra.mxu0 %v293
        %2416 = vmatpush.msra.mxu0 %v292
        %2417 = vmatpush.msra.mxu0 %v291
        %2418 = vmatpush.msra.mxu0 %v290
        %2419 = vmatpush.msra.mxu0 %v289
        %2420 = vmatpush.msra.mxu0 %v288
        %2421 = vmatpush.msra.mxu0 %v287
        %2422 = vmatpush.msra.mxu0 %v286
        %2423 = vmatpush.msra.mxu0 %v285
        %2424 = vmatpush.msra.mxu0 %v284
        %2425 = vmatpush.msra.mxu0 %v283
        %2426 = vmatpush.msra.mxu0 %v282
        %2427 = vmatpush.msra.mxu0 %v281
        %2428 = vmatpush.msra.mxu0 %v280
        %2429 = vmatpush.msra.mxu0 %v279
        %2430 = vmatmul.f32.gmra.mxu0 %v2411
        %v2431 = vpop.f32.mrf.mxu0
        %v2432 = vadd.f32 %v2258, %v2431
        %2433 = vdwg.mxu0
        %2434 = vmatpush.msra.mxu0 0.0
        %2435 = vmatpush.msra.mxu0 0.0
        %2436 = vmatpush.msra.mxu0 0.0
        %2437 = vmatpush.msra.mxu0 0.0
        %2438 = vmatpush.msra.mxu0 0.0
        %2439 = vmatpush.msra.mxu0 0.0
        %2440 = vmatpush.msra.mxu0 0.0
        %2441 = vmatpush.msra.mxu0 0.0
        %2442 = vmatpush.msra.mxu0 0.0
        %2443 = vmatpush.msra.mxu0 0.0
        %2444 = vmatpush.msra.mxu0 0.0
        %2445 = vmatpush.msra.mxu0 0.0
        %2446 = vmatpush.msra.mxu0 0.0
        %2447 = vmatpush.msra.mxu0 0.0
        %2448 = vmatpush.msra.mxu0 %v296
        %2449 = vmatpush.msra.mxu0 %v295
        %2450 = vmatmul.f32.gmra.mxu0 %v2412
        %v2451 = vpop.f32.mrf.mxu0
        %v2452 = vadd.f32 %v2432, %v2451
        %2453 = vdwg.mxu0
        %v2454 = vmax.f32 %v2452, 0.0
        %s2455 = scalar_lea.vmem [#allocation2], 56
        %v2456 = vld [vmem:[%s2455] sm:$0xff]
        %s2457 = scalar_lea.vmem [#allocation2], 64
        %v2458 = vld [vmem:[%s2457] sm:$0xff]
        %2459 = vrot.lane.b32.xlu0 %v2382, 112
        %v2460 = vpop.permute.xlu0 %2459
        %2462 = vrot.lane.b32.xlu0 %v2401, 16
        %v2463 = vpop.permute.xlu0 %2462
        %2466 = vrot.lane.b32.xlu0 %v2456, 32
        %v2467 = vpop.permute.xlu0 %2466
        %v2469 = vrot.slane %v2456, 1
        %2470 = vrot.lane.b32.xlu0 %v2469, 64
        %v2471 = vpop.permute.xlu0 %2470
        %2474 = vrot.lane.b32.xlu0 %v2458, 80
        %v2475 = vpop.permute.xlu0 %2474
        %v2477 = vrot.slane %v2458, 1
        %2478 = vrot.lane.b32.xlu0 %v2477, 112
        %v2479 = vpop.permute.xlu0 %2478
        %v2481 = vsel %vm2169, %v2460, %v2463
        %v2482 = vsel %vm2184, %v2481, %v2463
        %v2483 = vsel %vm2247, %v2482, %v2467
        %v2484 = vsel %vm2249, %v2483, %v2471
        %v2485 = vsel %vm2251, %v2484, %v2471
        %v2486 = vsel %vm2253, %v2485, %v2475
        %v2487 = vsel %vm2255, %v2486, %v2479
        %v2488 = vsel %vm2169, %v2479, 0
        %2490 = vmatpush.msra.mxu0 %v294
        %2491 = vmatpush.msra.mxu0 %v293
        %2492 = vmatpush.msra.mxu0 %v292
        %2493 = vmatpush.msra.mxu0 %v291
        %2494 = vmatpush.msra.mxu0 %v290
        %2495 = vmatpush.msra.mxu0 %v289
        %2496 = vmatpush.msra.mxu0 %v288
        %2497 = vmatpush.msra.mxu0 %v287
        %2498 = vmatpush.msra.mxu0 %v286
        %2499 = vmatpush.msra.mxu0 %v285
        %2500 = vmatpush.msra.mxu0 %v284
        %2501 = vmatpush.msra.mxu0 %v283
        %2502 = vmatpush.msra.mxu0 %v282
        %2503 = vmatpush.msra.mxu0 %v281
        %2504 = vmatpush.msra.mxu0 %v280
        %2505 = vmatpush.msra.mxu0 %v279
        %2506 = vmatmul.f32.gmra.mxu0 %v2487
        %v2507 = vpop.f32.mrf.mxu0
        %v2508 = vadd.f32 %v2258, %v2507
        %2509 = vdwg.mxu0
        %2510 = vmatpush.msra.mxu0 0.0
        %2511 = vmatpush.msra.mxu0 0.0
        %2512 = vmatpush.msra.mxu0 0.0
        %2513 = vmatpush.msra.mxu0 0.0
        %2514 = vmatpush.msra.mxu0 0.0
        %2515 = vmatpush.msra.mxu0 0.0
        %2516 = vmatpush.msra.mxu0 0.0
        %2517 = vmatpush.msra.mxu0 0.0
        %2518 = vmatpush.msra.mxu0 0.0
        %2519 = vmatpush.msra.mxu0 0.0
        %2520 = vmatpush.msra.mxu0 0.0
        %2521 = vmatpush.msra.mxu0 0.0
        %2522 = vmatpush.msra.mxu0 0.0
        %2523 = vmatpush.msra.mxu0 0.0
        %2524 = vmatpush.msra.mxu0 %v296
        %2525 = vmatpush.msra.mxu0 %v295
        %2526 = vmatmul.f32.gmra.mxu0 %v2488
        %v2527 = vpop.f32.mrf.mxu0
        %v2528 = vadd.f32 %v2508, %v2527
        %2529 = vdwg.mxu0
        %v2530 = vmax.f32 %v2528, 0.0
        %s2531 = scalar_lea.vmem [#allocation2], 72
        %v2532 = vld [vmem:[%s2531] sm:$0xff]
        %s2533 = scalar_lea.vmem [#allocation2], 80
        %v2534 = vld [vmem:[%s2533] sm:$0xff]
        %2535 = vrot.lane.b32.xlu0 %v2458, 112
        %v2536 = vpop.permute.xlu0 %2535
        %2538 = vrot.lane.b32.xlu0 %v2477, 16
        %v2539 = vpop.permute.xlu0 %2538
        %2542 = vrot.lane.b32.xlu0 %v2532, 32
        %v2543 = vpop.permute.xlu0 %2542
        %v2545 = vrot.slane %v2532, 1
        %2546 = vrot.lane.b32.xlu0 %v2545, 64
        %v2547 = vpop.permute.xlu0 %2546
        %2550 = vrot.lane.b32.xlu0 %v2534, 80
        %v2551 = vpop.permute.xlu0 %2550
        %v2553 = vrot.slane %v2534, 1
        %2554 = vrot.lane.b32.xlu0 %v2553, 112
        %v2555 = vpop.permute.xlu0 %2554
        %v2557 = vsel %vm2169, %v2536, %v2539
        %v2558 = vsel %vm2184, %v2557, %v2539
        %v2559 = vsel %vm2247, %v2558, %v2543
        %v2560 = vsel %vm2249, %v2559, %v2547
        %v2561 = vsel %vm2251, %v2560, %v2547
        %v2562 = vsel %vm2253, %v2561, %v2551
        %v2563 = vsel %vm2255, %v2562, %v2555
        %v2564 = vsel %vm2169, %v2555, 0
        %2566 = vmatpush.msra.mxu0 %v294
        %2567 = vmatpush.msra.mxu0 %v293
        %2568 = vmatpush.msra.mxu0 %v292
        %2569 = vmatpush.msra.mxu0 %v291
        %2570 = vmatpush.msra.mxu0 %v290
        %2571 = vmatpush.msra.mxu0 %v289
        %2572 = vmatpush.msra.mxu0 %v288
        %2573 = vmatpush.msra.mxu0 %v287
        %2574 = vmatpush.msra.mxu0 %v286
        %2575 = vmatpush.msra.mxu0 %v285
        %2576 = vmatpush.msra.mxu0 %v284
        %2577 = vmatpush.msra.mxu0 %v283
        %2578 = vmatpush.msra.mxu0 %v282
        %2579 = vmatpush.msra.mxu0 %v281
        %2580 = vmatpush.msra.mxu0 %v280
        %2581 = vmatpush.msra.mxu0 %v279
        %2582 = vmatmul.f32.gmra.mxu0 %v2563
        %v2583 = vpop.f32.mrf.mxu0
        %v2584 = vadd.f32 %v2258, %v2583
        %2585 = vdwg.mxu0
        %2586 = vmatpush.msra.mxu0 0.0
        %2587 = vmatpush.msra.mxu0 0.0
        %2588 = vmatpush.msra.mxu0 0.0
        %2589 = vmatpush.msra.mxu0 0.0
        %2590 = vmatpush.msra.mxu0 0.0
        %2591 = vmatpush.msra.mxu0 0.0
        %2592 = vmatpush.msra.mxu0 0.0
        %2593 = vmatpush.msra.mxu0 0.0
        %2594 = vmatpush.msra.mxu0 0.0
        %2595 = vmatpush.msra.mxu0 0.0
        %2596 = vmatpush.msra.mxu0 0.0
        %2597 = vmatpush.msra.mxu0 0.0
        %2598 = vmatpush.msra.mxu0 0.0
        %2599 = vmatpush.msra.mxu0 0.0
        %2600 = vmatpush.msra.mxu0 %v296
        %2601 = vmatpush.msra.mxu0 %v295
        %2602 = vmatmul.f32.gmra.mxu0 %v2564
        %v2603 = vpop.f32.mrf.mxu0
        %v2604 = vadd.f32 %v2584, %v2603
        %2605 = vdwg.mxu0
        %v2606 = vmax.f32 %v2604, 0.0
        %s2607 = scalar_lea.vmem [#allocation2], 88
        %v2608 = vld [vmem:[%s2607] sm:$0xff]
        %s2609 = scalar_lea.vmem [#allocation2], 96
        %v2610 = vld [vmem:[%s2609] sm:$0xff]
        %2611 = vrot.lane.b32.xlu0 %v2534, 112
        %v2612 = vpop.permute.xlu0 %2611
        %2614 = vrot.lane.b32.xlu0 %v2553, 16
        %v2615 = vpop.permute.xlu0 %2614
        %2618 = vrot.lane.b32.xlu0 %v2608, 32
        %v2619 = vpop.permute.xlu0 %2618
        %v2621 = vrot.slane %v2608, 1
        %2622 = vrot.lane.b32.xlu0 %v2621, 64
        %v2623 = vpop.permute.xlu0 %2622
        %2626 = vrot.lane.b32.xlu0 %v2610, 80
        %v2627 = vpop.permute.xlu0 %2626
        %v2629 = vrot.slane %v2610, 1
        %2630 = vrot.lane.b32.xlu0 %v2629, 112
        %v2631 = vpop.permute.xlu0 %2630
        %v2633 = vsel %vm2169, %v2612, %v2615
        %v2634 = vsel %vm2184, %v2633, %v2615
        %v2635 = vsel %vm2247, %v2634, %v2619
        %v2636 = vsel %vm2249, %v2635, %v2623
        %v2637 = vsel %vm2251, %v2636, %v2623
        %v2638 = vsel %vm2253, %v2637, %v2627
        %v2639 = vsel %vm2255, %v2638, %v2631
        %v2640 = vsel %vm2169, %v2631, 0
        %2642 = vmatpush.msra.mxu0 %v294
        %2643 = vmatpush.msra.mxu0 %v293
        %2644 = vmatpush.msra.mxu0 %v292
        %2645 = vmatpush.msra.mxu0 %v291
        %2646 = vmatpush.msra.mxu0 %v290
        %2647 = vmatpush.msra.mxu0 %v289
        %2648 = vmatpush.msra.mxu0 %v288
        %2649 = vmatpush.msra.mxu0 %v287
        %2650 = vmatpush.msra.mxu0 %v286
        %2651 = vmatpush.msra.mxu0 %v285
        %2652 = vmatpush.msra.mxu0 %v284
        %2653 = vmatpush.msra.mxu0 %v283
        %2654 = vmatpush.msra.mxu0 %v282
        %2655 = vmatpush.msra.mxu0 %v281
        %2656 = vmatpush.msra.mxu0 %v280
        %2657 = vmatpush.msra.mxu0 %v279
        %2658 = vmatmul.f32.gmra.mxu0 %v2639
        %v2659 = vpop.f32.mrf.mxu0
        %v2660 = vadd.f32 %v2258, %v2659
        %2661 = vdwg.mxu0
        %2662 = vmatpush.msra.mxu0 0.0
        %2663 = vmatpush.msra.mxu0 0.0
        %2664 = vmatpush.msra.mxu0 0.0
        %2665 = vmatpush.msra.mxu0 0.0
        %2666 = vmatpush.msra.mxu0 0.0
        %2667 = vmatpush.msra.mxu0 0.0
        %2668 = vmatpush.msra.mxu0 0.0
        %2669 = vmatpush.msra.mxu0 0.0
        %2670 = vmatpush.msra.mxu0 0.0
        %2671 = vmatpush.msra.mxu0 0.0
        %2672 = vmatpush.msra.mxu0 0.0
        %2673 = vmatpush.msra.mxu0 0.0
        %2674 = vmatpush.msra.mxu0 0.0
        %2675 = vmatpush.msra.mxu0 0.0
        %2676 = vmatpush.msra.mxu0 %v296
        %2677 = vmatpush.msra.mxu0 %v295
        %2678 = vmatmul.f32.gmra.mxu0 %v2640
        %v2679 = vpop.f32.mrf.mxu0
        %v2680 = vadd.f32 %v2660, %v2679
        %2681 = vdwg.mxu0
        %v2682 = vmax.f32 %v2680, 0.0
        %s2683 = scalar_lea.vmem [#allocation2], 104
        %v2684 = vld [vmem:[%s2683] sm:$0xff]
        %s2685 = scalar_lea.vmem [#allocation2], 112
        %v2686 = vld [vmem:[%s2685] sm:$0xff]
        %2687 = vrot.lane.b32.xlu0 %v2610, 112
        %v2688 = vpop.permute.xlu0 %2687
        %2690 = vrot.lane.b32.xlu0 %v2629, 16
        %v2691 = vpop.permute.xlu0 %2690
        %2694 = vrot.lane.b32.xlu0 %v2684, 32
        %v2695 = vpop.permute.xlu0 %2694
        %v2697 = vrot.slane %v2684, 1
        %2698 = vrot.lane.b32.xlu0 %v2697, 64
        %v2699 = vpop.permute.xlu0 %2698
        %2702 = vrot.lane.b32.xlu0 %v2686, 80
        %v2703 = vpop.permute.xlu0 %2702
        %v2705 = vrot.slane %v2686, 1
        %2706 = vrot.lane.b32.xlu0 %v2705, 112
        %v2707 = vpop.permute.xlu0 %2706
        %v2709 = vsel %vm2169, %v2688, %v2691
        %v2710 = vsel %vm2184, %v2709, %v2691
        %v2711 = vsel %vm2247, %v2710, %v2695
        %v2712 = vsel %vm2249, %v2711, %v2699
        %v2713 = vsel %vm2251, %v2712, %v2699
        %v2714 = vsel %vm2253, %v2713, %v2703
        %v2715 = vsel %vm2255, %v2714, %v2707
        %v2716 = vsel %vm2169, %v2707, 0
        %2718 = vmatpush.msra.mxu0 %v294
        %2719 = vmatpush.msra.mxu0 %v293
        %2720 = vmatpush.msra.mxu0 %v292
        %2721 = vmatpush.msra.mxu0 %v291
        %2722 = vmatpush.msra.mxu0 %v290
        %2723 = vmatpush.msra.mxu0 %v289
        %2724 = vmatpush.msra.mxu0 %v288
        %2725 = vmatpush.msra.mxu0 %v287
        %2726 = vmatpush.msra.mxu0 %v286
        %2727 = vmatpush.msra.mxu0 %v285
        %2728 = vmatpush.msra.mxu0 %v284
        %2729 = vmatpush.msra.mxu0 %v283
        %2730 = vmatpush.msra.mxu0 %v282
        %2731 = vmatpush.msra.mxu0 %v281
        %2732 = vmatpush.msra.mxu0 %v280
        %2733 = vmatpush.msra.mxu0 %v279
        %2734 = vmatmul.f32.gmra.mxu0 %v2715
        %v2735 = vpop.f32.mrf.mxu0
        %v2736 = vadd.f32 %v2258, %v2735
        %2737 = vdwg.mxu0
        %2738 = vmatpush.msra.mxu0 0.0
        %2739 = vmatpush.msra.mxu0 0.0
        %2740 = vmatpush.msra.mxu0 0.0
        %2741 = vmatpush.msra.mxu0 0.0
        %2742 = vmatpush.msra.mxu0 0.0
        %2743 = vmatpush.msra.mxu0 0.0
        %2744 = vmatpush.msra.mxu0 0.0
        %2745 = vmatpush.msra.mxu0 0.0
        %2746 = vmatpush.msra.mxu0 0.0
        %2747 = vmatpush.msra.mxu0 0.0
        %2748 = vmatpush.msra.mxu0 0.0
        %2749 = vmatpush.msra.mxu0 0.0
        %2750 = vmatpush.msra.mxu0 0.0
        %2751 = vmatpush.msra.mxu0 0.0
        %2752 = vmatpush.msra.mxu0 %v296
        %2753 = vmatpush.msra.mxu0 %v295
        %2754 = vmatmul.f32.gmra.mxu0 %v2716
        %v2755 = vpop.f32.mrf.mxu0
        %v2756 = vadd.f32 %v2736, %v2755
        %2757 = vdwg.mxu0
        %v2758 = vmax.f32 %v2756, 0.0
        %v2760 = vrot.slane %v2302, 1
        %2761 = vrot.lane.b32.xlu0 %v2760, 32
        %v2762 = vpop.permute.xlu0 %2761
        %v2764 = vrot.slane %v2302, 2
        %2765 = vrot.lane.b32.xlu0 %v2764, 64
        %v2766 = vpop.permute.xlu0 %2765
        %v2768 = vrot.slane %v2302, 3
        %2769 = vrot.lane.b32.xlu0 %v2768, 96
        %v2770 = vpop.permute.xlu0 %2769
        %v2772 = vrot.slane %v2302, 4
        %v2774 = vrot.slane %v2302, 5
        %2775 = vrot.lane.b32.xlu0 %v2774, 32
        %v2776 = vpop.permute.xlu0 %2775
        %v2778 = vrot.slane %v2302, 6
        %2779 = vrot.lane.b32.xlu0 %v2778, 64
        %v2780 = vpop.permute.xlu0 %2779
        %2783 = vrot.lane.b32.xlu0 %v2378, 96
        %v2784 = vpop.permute.xlu0 %2783
        %v2786 = vrot.slane %v2378, 1
        %v2788 = vrot.slane %v2378, 2
        %2789 = vrot.lane.b32.xlu0 %v2788, 32
        %v2790 = vpop.permute.xlu0 %2789
        %v2792 = vrot.slane %v2378, 3
        %2793 = vrot.lane.b32.xlu0 %v2792, 64
        %v2794 = vpop.permute.xlu0 %2793
        %v2796 = vrot.slane %v2378, 4
        %2797 = vrot.lane.b32.xlu0 %v2796, 96
        %v2798 = vpop.permute.xlu0 %2797
        %v2800 = vrot.slane %v2378, 5
        %v2802 = vrot.slane %v2378, 6
        %2803 = vrot.lane.b32.xlu0 %v2802, 32
        %v2804 = vpop.permute.xlu0 %2803
        %2807 = vrot.lane.b32.xlu0 %v2454, 64
        %v2808 = vpop.permute.xlu0 %2807
        %v2810 = vrot.slane %v2454, 1
        %2811 = vrot.lane.b32.xlu0 %v2810, 96
        %v2812 = vpop.permute.xlu0 %2811
        %v2814 = vsel %vm2184, %v2302, %v2762
        %v2815 = vsel %vm2249, %v2814, %v2766
        %v2816 = vsel %vm2253, %v2815, %v2770
        %v2817 = vsel %vm2184, %v2772, %v2776
        %v2818 = vsel %vm2249, %v2817, %v2780
        %v2819 = vsel %vm2253, %v2818, %v2784
        %v2820 = vsel %vm2184, %v2786, %v2790
        %v2821 = vsel %vm2249, %v2820, %v2794
        %v2822 = vsel %vm2253, %v2821, %v2798
        %v2823 = vsel %vm2184, %v2800, %v2804
        %v2824 = vsel %vm2249, %v2823, %v2808
        %v2825 = vsel %vm2253, %v2824, %v2812
        %2826 = vrot.lane.b32.xlu0 %v2810, 32
        %v2827 = vpop.permute.xlu0 %2826
        %v2829 = vrot.slane %v2454, 2
        %2830 = vrot.lane.b32.xlu0 %v2829, 64
        %v2831 = vpop.permute.xlu0 %2830
        %v2833 = vrot.slane %v2454, 3
        %2834 = vrot.lane.b32.xlu0 %v2833, 96
        %v2835 = vpop.permute.xlu0 %2834
        %v2837 = vrot.slane %v2454, 4
        %v2840 = vrot.slane %v2530, 6
        %2841 = vrot.lane.b32.xlu0 %v2840, 32
        %v2842 = vpop.permute.xlu0 %2841
        %v2844 = vrot.slane %v2530, 7
        %2845 = vrot.lane.b32.xlu0 %v2844, 64
        %v2846 = vpop.permute.xlu0 %2845
        %2848 = vrot.lane.b32.xlu0 %v2530, 96
        %v2849 = vpop.permute.xlu0 %2848
        %v2851 = vrot.slane %v2530, 1
        %v2853 = vrot.slane %v2530, 2
        %2854 = vrot.lane.b32.xlu0 %v2853, 32
        %v2855 = vpop.permute.xlu0 %2854
        %v2857 = vrot.slane %v2530, 3
        %2858 = vrot.lane.b32.xlu0 %v2857, 64
        %v2859 = vpop.permute.xlu0 %2858
        %v2861 = vrot.slane %v2530, 4
        %2862 = vrot.lane.b32.xlu0 %v2861, 96
        %v2863 = vpop.permute.xlu0 %2862
        %v2866 = vrot.slane %v2606, 6
        %v2868 = vrot.slane %v2606, 7
        %2869 = vrot.lane.b32.xlu0 %v2868, 32
        %v2870 = vpop.permute.xlu0 %2869
        %2872 = vrot.lane.b32.xlu0 %v2606, 64
        %v2873 = vpop.permute.xlu0 %2872
        %v2875 = vrot.slane %v2606, 1
        %2876 = vrot.lane.b32.xlu0 %v2875, 96
        %v2877 = vpop.permute.xlu0 %2876
        %v2879 = vsel %vm2184, %v2454, %v2827
        %v2880 = vsel %vm2249, %v2879, %v2831
        %v2881 = vsel %vm2253, %v2880, %v2835
        %v2882 = vsel %vm2184, %v2837, %v2842
        %v2883 = vsel %vm2249, %v2882, %v2846
        %v2884 = vsel %vm2253, %v2883, %v2849
        %v2885 = vsel %vm2184, %v2851, %v2855
        %v2886 = vsel %vm2249, %v2885, %v2859
        %v2887 = vsel %vm2253, %v2886, %v2863
        %v2888 = vsel %vm2184, %v2866, %v2870
        %v2889 = vsel %vm2249, %v2888, %v2873
        %v2890 = vsel %vm2253, %v2889, %v2877
        %2891 = vrot.lane.b32.xlu0 %v2875, 32
        %v2892 = vpop.permute.xlu0 %2891
        %v2894 = vrot.slane %v2606, 2
        %2895 = vrot.lane.b32.xlu0 %v2894, 64
        %v2896 = vpop.permute.xlu0 %2895
        %v2899 = vrot.slane %v2682, 4
        %2900 = vrot.lane.b32.xlu0 %v2899, 96
        %v2901 = vpop.permute.xlu0 %2900
        %v2903 = vrot.slane %v2682, 5
        %v2905 = vrot.slane %v2682, 6
        %2906 = vrot.lane.b32.xlu0 %v2905, 32
        %v2907 = vpop.permute.xlu0 %2906
        %v2909 = vrot.slane %v2682, 7
        %2910 = vrot.lane.b32.xlu0 %v2909, 64
        %v2911 = vpop.permute.xlu0 %2910
        %2913 = vrot.lane.b32.xlu0 %v2682, 96
        %v2914 = vpop.permute.xlu0 %2913
        %v2916 = vrot.slane %v2682, 1
        %v2918 = vrot.slane %v2682, 2
        %2919 = vrot.lane.b32.xlu0 %v2918, 32
        %v2920 = vpop.permute.xlu0 %2919
        %v2923 = vrot.slane %v2758, 4
        %2924 = vrot.lane.b32.xlu0 %v2923, 64
        %v2925 = vpop.permute.xlu0 %2924
        %v2927 = vrot.slane %v2758, 5
        %2928 = vrot.lane.b32.xlu0 %v2927, 96
        %v2929 = vpop.permute.xlu0 %2928
        %v2931 = vrot.slane %v2758, 6
        %v2933 = vrot.slane %v2758, 7
        %2934 = vrot.lane.b32.xlu0 %v2933, 32
        %v2935 = vpop.permute.xlu0 %2934
        %2937 = vrot.lane.b32.xlu0 %v2758, 64
        %v2938 = vpop.permute.xlu0 %2937
        %v2940 = vrot.slane %v2758, 1
        %2941 = vrot.lane.b32.xlu0 %v2940, 96
        %v2942 = vpop.permute.xlu0 %2941
        %v2944 = vsel %vm2184, %v2606, %v2892
        %v2945 = vsel %vm2249, %v2944, %v2896
        %v2946 = vsel %vm2253, %v2945, %v2901
        %v2947 = vsel %vm2184, %v2903, %v2907
        %v2948 = vsel %vm2249, %v2947, %v2911
        %v2949 = vsel %vm2253, %v2948, %v2914
        %v2950 = vsel %vm2184, %v2916, %v2920
        %v2951 = vsel %vm2249, %v2950, %v2925
        %v2952 = vsel %vm2253, %v2951, %v2929
        %v2953 = vsel %vm2184, %v2931, %v2935
        %v2954 = vsel %vm2249, %v2953, %v2938
        %v2955 = vsel %vm2253, %v2954, %v2942
        %v2960 = vrot.slane %v2881, 2
        %v2961 = vrot.slane %v2884, 2
        %v2962 = vrot.slane %v2887, 2
        %v2963 = vrot.slane %v2890, 2
        %v2972 = vrot.slane %v2946, 4
        %v2973 = vrot.slane %v2949, 4
        %v2974 = vrot.slane %v2952, 4
        %v2975 = vrot.slane %v2955, 4
        %v2980 = vld [vmem:[%s5] sm:$0xff]
        %v2981 = vld [vmem:[%s5 + $0x8] sm:$0xff]
        %v2982 = vld [vmem:[%s5 + $0x10] sm:$0xff]
        %v2983 = vld [vmem:[%s5 + $0x18] sm:$0xff]
        %v2984 = vld [vmem:[%s5 + $0x20] sm:$0xff]
        %v2985 = vld [vmem:[%s5 + $0x28] sm:$0xff]
        %v2986 = vld [vmem:[%s5 + $0x30] sm:$0xff]
        %v2987 = vld [vmem:[%s5 + $0x38] sm:$0xff]
        %v2988 = vld [vmem:[%s5 + $0x40] sm:$0xff]
        %v2989 = vld [vmem:[%s5 + $0x48] sm:$0xff]
        %v2990 = vld [vmem:[%s5 + $0x50] sm:$0xff]
        %v2991 = vld [vmem:[%s5 + $0x58] sm:$0xff]
        %v2992 = vld [vmem:[%s5 + $0x60] sm:$0xff]
        %v2993 = vld [vmem:[%s5 + $0x68] sm:$0xff]
        %v2994 = vld [vmem:[%s5 + $0x70] sm:$0xff]
        %v2995 = vld [vmem:[%s5 + $0x78] sm:$0xff]
        %v2996 = vld [vmem:[%s5 + $0x80] sm:$0xff]
        %v2997 = vld [vmem:[%s5 + $0x88] sm:$0xff]
        %v2998 = vld [vmem:[%s5 + $0x90] sm:$0xff]
        %v2999 = vld [vmem:[%s5 + $0x98] sm:$0xff]
        %v3000 = vld [vmem:[%s5 + $0xa0] sm:$0xff]
        %v3001 = vld [vmem:[%s5 + $0xa8] sm:$0xff]
        %v3002 = vld [vmem:[%s5 + $0xb0] sm:$0xff]
        %v3003 = vld [vmem:[%s5 + $0xb8] sm:$0xff]
        %v3004 = vld [vmem:[%s5 + $0xc0] sm:$0xff]
        %v3005 = vld [vmem:[%s5 + $0xc8] sm:$0xff]
        %v3006 = vld [vmem:[%s5 + $0xd0] sm:$0xff]
        %v3007 = vld [vmem:[%s5 + $0xd8] sm:$0xff]
        %v3008 = vld [vmem:[%s5 + $0xe0] sm:$0xff]
        %v3009 = vld [vmem:[%s5 + $0xe8] sm:$0xff]
        %v3010 = vld [vmem:[%s5 + $0xf0] sm:$0xff]
        %v3011 = vld [vmem:[%s5 + $0xf8] sm:$0xff]
        %v3012 = vld [vmem:[%s5 + $0x100] sm:$0xff]
        %v3013 = vld [vmem:[%s5 + $0x108] sm:$0xff]
        %v3014 = vld [vmem:[%s5 + $0x110] sm:$0xff]
        %v3015 = vld [vmem:[%s5 + $0x118] sm:$0xff]
        %v3016 = vld [vmem:[%s5 + $0x120] sm:$0xff]
        %v3017 = vld [vmem:[%s5 + $0x128] sm:$0xff]
        %v3018 = vld [vmem:[%s5 + $0x130] sm:$0xff]
        %v3019 = vld [vmem:[%s5 + $0x138] sm:$0xff]
        %v3020 = vld [vmem:[%s5 + $0x140] sm:$0xff]
        %v3021 = vld [vmem:[%s5 + $0x148] sm:$0xff]
        %v3022 = vld [vmem:[%s5 + $0x150] sm:$0xff]
        %v3023 = vld [vmem:[%s5 + $0x158] sm:$0xff]
        %v3024 = vld [vmem:[%s5 + $0x160] sm:$0xff]
        %v3025 = vld [vmem:[%s5 + $0x168] sm:$0xff]
        %v3026 = vld [vmem:[%s5 + $0x170] sm:$0xff]
        %v3027 = vld [vmem:[%s5 + $0x178] sm:$0xff]
        %v3028 = vld [vmem:[%s5 + $0x180] sm:$0xff]
        %v3029 = vld [vmem:[%s5 + $0x188] sm:$0xff]
        %v3030 = vld [vmem:[%s5 + $0x190] sm:$0xff]
        %v3031 = vld [vmem:[%s5 + $0x198] sm:$0xff]
        %v3032 = vld [vmem:[%s5 + $0x1a0] sm:$0xff]
        %v3033 = vld [vmem:[%s5 + $0x1a8] sm:$0xff]
        %v3034 = vld [vmem:[%s5 + $0x1b0] sm:$0xff]
        %v3035 = vld [vmem:[%s5 + $0x1b8] sm:$0xff]
        %v3036 = vld [vmem:[%s5 + $0x1c0] sm:$0xff]
        %v3037 = vld [vmem:[%s5 + $0x1c8] sm:$0xff]
        %v3038 = vld [vmem:[%s5 + $0x1d0] sm:$0xff]
        %v3039 = vld [vmem:[%s5 + $0x1d8] sm:$0xff]
        %v3040 = vld [vmem:[%s5 + $0x1e0] sm:$0xff]
        %v3041 = vld [vmem:[%s5 + $0x1e8] sm:$0xff]
        %v3042 = vld [vmem:[%s5 + $0x1f0] sm:$0xff]
        %v3043 = vld [vmem:[%s5 + $0x1f8] sm:$0xff]
        %v3044 = vld [vmem:[%s5 + $0x200] sm:$0xff]
        %v3045 = vld [vmem:[%s5 + $0x208] sm:$0xff]
        %v3046 = vld [vmem:[%s5 + $0x210] sm:$0xff]
        %v3047 = vld [vmem:[%s5 + $0x218] sm:$0xff]
        %v3048 = vld [vmem:[%s5 + $0x220] sm:$0xff]
        %v3049 = vld [vmem:[%s5 + $0x228] sm:$0xff]
        %v3050 = vld [vmem:[%s5 + $0x230] sm:$0xff]
        %v3051 = vld [vmem:[%s5 + $0x238] sm:$0xff]
        %v3052 = vld [vmem:[%s5 + $0x240] sm:$0xff]
        %v3053 = vld [vmem:[%s5 + $0x248] sm:$0xff]
        %v3054 = vld [vmem:[%s5 + $0x250] sm:$0xff]
        %v3055 = vld [vmem:[%s5 + $0x258] sm:$0xff]
        %v3056 = vld [vmem:[%s5 + $0x260] sm:$0xff]
        %v3057 = vld [vmem:[%s5 + $0x268] sm:$0xff]
        %v3058 = vld [vmem:[%s5 + $0x270] sm:$0xff]
        %v3059 = vld [vmem:[%s5 + $0x278] sm:$0xff]
        %v3060 = vld [vmem:[%s5 + $0x280] sm:$0xff]
        %v3061 = vld [vmem:[%s5 + $0x288] sm:$0xff]
        %v3062 = vld [vmem:[%s5 + $0x290] sm:$0xff]
        %v3063 = vld [vmem:[%s5 + $0x298] sm:$0xff]
        %v3064 = vld [vmem:[%s5 + $0x2a0] sm:$0xff]
        %v3065 = vld [vmem:[%s5 + $0x2a8] sm:$0xff]
        %v3066 = vld [vmem:[%s5 + $0x2b0] sm:$0xff]
        %v3067 = vld [vmem:[%s5 + $0x2b8] sm:$0xff]
        %v3068 = vld [vmem:[%s5 + $0x2c0] sm:$0xff]
        %v3069 = vld [vmem:[%s5 + $0x2c8] sm:$0xff]
        %v3070 = vld [vmem:[%s5 + $0x2d0] sm:$0xff]
        %v3071 = vld [vmem:[%s5 + $0x2d8] sm:$0xff]
        %v3072 = vld [vmem:[%s5 + $0x2e0] sm:$0xff]
        %v3073 = vld [vmem:[%s5 + $0x2e8] sm:$0xff]
        %v3074 = vld [vmem:[%s5 + $0x2f0] sm:$0xff]
        %v3075 = vld [vmem:[%s5 + $0x2f8] sm:$0xff]
        %v3076 = vld [vmem:[%s5 + $0x300] sm:$0xff]
        %v3077 = vld [vmem:[%s5 + $0x308] sm:$0xff]
        %v3078 = vld [vmem:[%s5 + $0x310] sm:$0xff]
        %v3079 = vld [vmem:[%s5 + $0x318] sm:$0xff]
        %v3080 = vld [vmem:[%s5 + $0x320] sm:$0xff]
        %v3081 = vld [vmem:[%s5 + $0x328] sm:$0xff]
        %v3082 = vld [vmem:[%s5 + $0x330] sm:$0xff]
        %v3083 = vld [vmem:[%s5 + $0x338] sm:$0xff]
        %v3084 = vld [vmem:[%s5 + $0x340] sm:$0xff]
        %v3085 = vld [vmem:[%s5 + $0x348] sm:$0xff]
        %v3086 = vld [vmem:[%s5 + $0x350] sm:$0xff]
        %v3087 = vld [vmem:[%s5 + $0x358] sm:$0xff]
        %v3088 = vld [vmem:[%s5 + $0x360] sm:$0xff]
        %v3089 = vld [vmem:[%s5 + $0x368] sm:$0xff]
        %v3090 = vld [vmem:[%s5 + $0x370] sm:$0xff]
        %v3091 = vld [vmem:[%s5 + $0x378] sm:$0xff]
        %v3092 = vld [vmem:[%s5 + $0x380] sm:$0xff]
        %v3093 = vld [vmem:[%s5 + $0x388] sm:$0xff]
        %v3094 = vld [vmem:[%s5 + $0x390] sm:$0xff]
        %v3095 = vld [vmem:[%s5 + $0x398] sm:$0xff]
        %v3096 = vld [vmem:[%s5 + $0x3a0] sm:$0xff]
        %v3097 = vld [vmem:[%s5 + $0x3a8] sm:$0xff]
        %v3098 = vld [vmem:[%s5 + $0x3b0] sm:$0xff]
        %v3099 = vld [vmem:[%s5 + $0x3b8] sm:$0xff]
        %v3100 = vld [vmem:[%s5 + $0x3c0] sm:$0xff]
        %v3101 = vld [vmem:[%s5 + $0x3c8] sm:$0xff]
        %v3102 = vld [vmem:[%s5 + $0x3d0] sm:$0xff]
        %v3103 = vld [vmem:[%s5 + $0x3d8] sm:$0xff]
        %v3104 = vld [vmem:[%s5 + $0x3e0] sm:$0xff]
        %v3105 = vld [vmem:[%s5 + $0x3e8] sm:$0xff]
        %v3106 = vld [vmem:[%s5 + $0x3f0] sm:$0xff]
        %v3107 = vld [vmem:[%s5 + $0x3f8] sm:$0xff]
        %v3108 = vld [vmem:[%s5 + $0x400] sm:$0xff]
        %v3109 = vld [vmem:[%s5 + $0x408] sm:$0xff]
        %v3110 = vld [vmem:[%s5 + $0x410] sm:$0xff]
        %v3111 = vld [vmem:[%s5 + $0x418] sm:$0xff]
        %v3112 = vld [vmem:[%s5 + $0x420] sm:$0xff]
        %v3113 = vld [vmem:[%s5 + $0x428] sm:$0xff]
        %v3114 = vld [vmem:[%s5 + $0x430] sm:$0xff]
        %v3115 = vld [vmem:[%s5 + $0x438] sm:$0xff]
        %v3116 = vld [vmem:[%s5 + $0x440] sm:$0xff]
        %v3117 = vld [vmem:[%s5 + $0x448] sm:$0xff]
        %v3118 = vld [vmem:[%s5 + $0x450] sm:$0xff]
        %v3119 = vld [vmem:[%s5 + $0x458] sm:$0xff]
        %v3120 = vld [vmem:[%s5 + $0x460] sm:$0xff]
        %v3121 = vld [vmem:[%s5 + $0x468] sm:$0xff]
        %v3122 = vld [vmem:[%s5 + $0x470] sm:$0xff]
        %v3123 = vld [vmem:[%s5 + $0x478] sm:$0xff]
        %v3124 = vld [vmem:[%s5 + $0x480] sm:$0xff]
        %v3125 = vld [vmem:[%s5 + $0x488] sm:$0xff]
        %v3126 = vld [vmem:[%s5 + $0x490] sm:$0xff]
        %v3127 = vld [vmem:[%s5 + $0x498] sm:$0xff]
        %v3128 = vld [vmem:[%s5 + $0x4a0] sm:$0xff]
        %v3129 = vld [vmem:[%s5 + $0x4a8] sm:$0xff]
        %v3130 = vld [vmem:[%s5 + $0x4b0] sm:$0xff]
        %v3131 = vld [vmem:[%s5 + $0x4b8] sm:$0xff]
        %v3132 = vld [vmem:[%s5 + $0x4c0] sm:$0xff]
        %v3133 = vld [vmem:[%s5 + $0x4c8] sm:$0xff]
        %v3134 = vld [vmem:[%s5 + $0x4d0] sm:$0xff]
        %v3135 = vld [vmem:[%s5 + $0x4d8] sm:$0xff]
        %v3136 = vld [vmem:[%s5 + $0x4e0] sm:$0xff]
        %v3137 = vld [vmem:[%s5 + $0x4e8] sm:$0xff]
        %v3138 = vld [vmem:[%s5 + $0x4f0] sm:$0xff]
        %v3139 = vld [vmem:[%s5 + $0x4f8] sm:$0xff]
        %v3140 = vld [vmem:[%s5 + $0x500] sm:$0xff]
        %v3141 = vld [vmem:[%s5 + $0x508] sm:$0xff]
        %v3142 = vld [vmem:[%s5 + $0x510] sm:$0xff]
        %v3143 = vld [vmem:[%s5 + $0x518] sm:$0xff]
        %v3144 = vld [vmem:[%s5 + $0x520] sm:$0xff]
        %v3145 = vld [vmem:[%s5 + $0x528] sm:$0xff]
        %v3146 = vld [vmem:[%s5 + $0x530] sm:$0xff]
        %v3147 = vld [vmem:[%s5 + $0x538] sm:$0xff]
        %v3148 = vld [vmem:[%s5 + $0x540] sm:$0xff]
        %v3149 = vld [vmem:[%s5 + $0x548] sm:$0xff]
        %v3150 = vld [vmem:[%s5 + $0x550] sm:$0xff]
        %v3151 = vld [vmem:[%s5 + $0x558] sm:$0xff]
        %v3152 = vld [vmem:[%s5 + $0x560] sm:$0xff]
        %v3153 = vld [vmem:[%s5 + $0x568] sm:$0xff]
        %v3154 = vld [vmem:[%s5 + $0x570] sm:$0xff]
        %v3155 = vld [vmem:[%s5 + $0x578] sm:$0xff]
        %v3156 = vld [vmem:[%s5 + $0x580] sm:$0xff]
        %v3157 = vld [vmem:[%s5 + $0x588] sm:$0xff]
        %v3158 = vld [vmem:[%s5 + $0x590] sm:$0xff]
        %v3159 = vld [vmem:[%s5 + $0x598] sm:$0xff]
        %v3160 = vld [vmem:[%s5 + $0x5a0] sm:$0xff]
        %v3161 = vld [vmem:[%s5 + $0x5a8] sm:$0xff]
        %v3162 = vld [vmem:[%s5 + $0x5b0] sm:$0xff]
        %v3163 = vld [vmem:[%s5 + $0x5b8] sm:$0xff]
        %v3164 = vld [vmem:[%s5 + $0x5c0] sm:$0xff]
        %v3165 = vld [vmem:[%s5 + $0x5c8] sm:$0xff]
        %v3166 = vld [vmem:[%s5 + $0x5d0] sm:$0xff]
        %v3167 = vld [vmem:[%s5 + $0x5d8] sm:$0xff]
        %v3168 = vld [vmem:[%s5 + $0x5e0] sm:$0xff]
        %v3169 = vld [vmem:[%s5 + $0x5e8] sm:$0xff]
        %v3170 = vld [vmem:[%s5 + $0x5f0] sm:$0xff]
        %v3171 = vld [vmem:[%s5 + $0x5f8] sm:$0xff]
        %v3172 = vld [vmem:[%s5 + $0x600] sm:$0xff]
        %v3173 = vld [vmem:[%s5 + $0x608] sm:$0xff]
        %v3174 = vld [vmem:[%s5 + $0x610] sm:$0xff]
        %v3175 = vld [vmem:[%s5 + $0x618] sm:$0xff]
        %v3176 = vld [vmem:[%s6] sm:$0x1]
        %v3177 = vsel %vm2184, %v2931, 0
        %3179 = vmatpush.msra.mxu0 %v2995
        %3180 = vmatpush.msra.mxu0 %v2994
        %3181 = vmatpush.msra.mxu0 %v2993
        %3182 = vmatpush.msra.mxu0 %v2992
        %3183 = vmatpush.msra.mxu0 %v2991
        %3184 = vmatpush.msra.mxu0 %v2990
        %3185 = vmatpush.msra.mxu0 %v2989
        %3186 = vmatpush.msra.mxu0 %v2988
        %3187 = vmatpush.msra.mxu0 %v2987
        %3188 = vmatpush.msra.mxu0 %v2986
        %3189 = vmatpush.msra.mxu0 %v2985
        %3190 = vmatpush.msra.mxu0 %v2984
        %3191 = vmatpush.msra.mxu0 %v2983
        %3192 = vmatpush.msra.mxu0 %v2982
        %3193 = vmatpush.msra.mxu0 %v2981
        %3194 = vmatpush.msra.mxu0 %v2980
        %3195 = vmatmul.f32.gmra.mxu0 %v2816
        %v3196 = vpop.f32.mrf.mxu0
        %v3197 = vadd.f32 %v3176, %v3196
        %3198 = vdwg.mxu0
        %3199 = vmatpush.msra.mxu0 %v3011
        %3200 = vmatpush.msra.mxu0 %v3010
        %3201 = vmatpush.msra.mxu0 %v3009
        %3202 = vmatpush.msra.mxu0 %v3008
        %3203 = vmatpush.msra.mxu0 %v3007
        %3204 = vmatpush.msra.mxu0 %v3006
        %3205 = vmatpush.msra.mxu0 %v3005
        %3206 = vmatpush.msra.mxu0 %v3004
        %3207 = vmatpush.msra.mxu0 %v3003
        %3208 = vmatpush.msra.mxu0 %v3002
        %3209 = vmatpush.msra.mxu0 %v3001
        %3210 = vmatpush.msra.mxu0 %v3000
        %3211 = vmatpush.msra.mxu0 %v2999
        %3212 = vmatpush.msra.mxu0 %v2998
        %3213 = vmatpush.msra.mxu0 %v2997
        %3214 = vmatpush.msra.mxu0 %v2996
        %3215 = vmatmul.f32.gmra.mxu0 %v2819
        %v3216 = vpop.f32.mrf.mxu0
        %v3217 = vadd.f32 %v3197, %v3216
        %3218 = vdwg.mxu0
        %3219 = vmatpush.msra.mxu0 %v3027
        %3220 = vmatpush.msra.mxu0 %v3026
        %3221 = vmatpush.msra.mxu0 %v3025
        %3222 = vmatpush.msra.mxu0 %v3024
        %3223 = vmatpush.msra.mxu0 %v3023
        %3224 = vmatpush.msra.mxu0 %v3022
        %3225 = vmatpush.msra.mxu0 %v3021
        %3226 = vmatpush.msra.mxu0 %v3020
        %3227 = vmatpush.msra.mxu0 %v3019
        %3228 = vmatpush.msra.mxu0 %v3018
        %3229 = vmatpush.msra.mxu0 %v3017
        %3230 = vmatpush.msra.mxu0 %v3016
        %3231 = vmatpush.msra.mxu0 %v3015
        %3232 = vmatpush.msra.mxu0 %v3014
        %3233 = vmatpush.msra.mxu0 %v3013
        %3234 = vmatpush.msra.mxu0 %v3012
        %3235 = vmatmul.f32.gmra.mxu0 %v2822
        %v3236 = vpop.f32.mrf.mxu0
        %v3237 = vadd.f32 %v3217, %v3236
        %3238 = vdwg.mxu0
        %3239 = vmatpush.msra.mxu0 %v3043
        %3240 = vmatpush.msra.mxu0 %v3042
        %3241 = vmatpush.msra.mxu0 %v3041
        %3242 = vmatpush.msra.mxu0 %v3040
        %3243 = vmatpush.msra.mxu0 %v3039
        %3244 = vmatpush.msra.mxu0 %v3038
        %3245 = vmatpush.msra.mxu0 %v3037
        %3246 = vmatpush.msra.mxu0 %v3036
        %3247 = vmatpush.msra.mxu0 %v3035
        %3248 = vmatpush.msra.mxu0 %v3034
        %3249 = vmatpush.msra.mxu0 %v3033
        %3250 = vmatpush.msra.mxu0 %v3032
        %3251 = vmatpush.msra.mxu0 %v3031
        %3252 = vmatpush.msra.mxu0 %v3030
        %3253 = vmatpush.msra.mxu0 %v3029
        %3254 = vmatpush.msra.mxu0 %v3028
        %3255 = vmatmul.f32.gmra.mxu0 %v2825
        %v3256 = vpop.f32.mrf.mxu0
        %v3257 = vadd.f32 %v3237, %v3256
        %3258 = vdwg.mxu0
        %3259 = vmatpush.msra.mxu0 %v3059
        %3260 = vmatpush.msra.mxu0 %v3058
        %3261 = vmatpush.msra.mxu0 %v3057
        %3262 = vmatpush.msra.mxu0 %v3056
        %3263 = vmatpush.msra.mxu0 %v3055
        %3264 = vmatpush.msra.mxu0 %v3054
        %3265 = vmatpush.msra.mxu0 %v3053
        %3266 = vmatpush.msra.mxu0 %v3052
        %3267 = vmatpush.msra.mxu0 %v3051
        %3268 = vmatpush.msra.mxu0 %v3050
        %3269 = vmatpush.msra.mxu0 %v3049
        %3270 = vmatpush.msra.mxu0 %v3048
        %3271 = vmatpush.msra.mxu0 %v3047
        %3272 = vmatpush.msra.mxu0 %v3046
        %3273 = vmatpush.msra.mxu0 %v3045
        %3274 = vmatpush.msra.mxu0 %v3044
        %3275 = vmatmul.f32.gmra.mxu0 %v2960
        %v3276 = vpop.f32.mrf.mxu0
        %v3277 = vadd.f32 %v3257, %v3276
        %3278 = vdwg.mxu0
        %3279 = vmatpush.msra.mxu0 %v3075
        %3280 = vmatpush.msra.mxu0 %v3074
        %3281 = vmatpush.msra.mxu0 %v3073
        %3282 = vmatpush.msra.mxu0 %v3072
        %3283 = vmatpush.msra.mxu0 %v3071
        %3284 = vmatpush.msra.mxu0 %v3070
        %3285 = vmatpush.msra.mxu0 %v3069
        %3286 = vmatpush.msra.mxu0 %v3068
        %3287 = vmatpush.msra.mxu0 %v3067
        %3288 = vmatpush.msra.mxu0 %v3066
        %3289 = vmatpush.msra.mxu0 %v3065
        %3290 = vmatpush.msra.mxu0 %v3064
        %3291 = vmatpush.msra.mxu0 %v3063
        %3292 = vmatpush.msra.mxu0 %v3062
        %3293 = vmatpush.msra.mxu0 %v3061
        %3294 = vmatpush.msra.mxu0 %v3060
        %3295 = vmatmul.f32.gmra.mxu0 %v2961
        %v3296 = vpop.f32.mrf.mxu0
        %v3297 = vadd.f32 %v3277, %v3296
        %3298 = vdwg.mxu0
        %3299 = vmatpush.msra.mxu0 %v3091
        %3300 = vmatpush.msra.mxu0 %v3090
        %3301 = vmatpush.msra.mxu0 %v3089
        %3302 = vmatpush.msra.mxu0 %v3088
        %3303 = vmatpush.msra.mxu0 %v3087
        %3304 = vmatpush.msra.mxu0 %v3086
        %3305 = vmatpush.msra.mxu0 %v3085
        %3306 = vmatpush.msra.mxu0 %v3084
        %3307 = vmatpush.msra.mxu0 %v3083
        %3308 = vmatpush.msra.mxu0 %v3082
        %3309 = vmatpush.msra.mxu0 %v3081
        %3310 = vmatpush.msra.mxu0 %v3080
        %3311 = vmatpush.msra.mxu0 %v3079
        %3312 = vmatpush.msra.mxu0 %v3078
        %3313 = vmatpush.msra.mxu0 %v3077
        %3314 = vmatpush.msra.mxu0 %v3076
        %3315 = vmatmul.f32.gmra.mxu0 %v2962
        %v3316 = vpop.f32.mrf.mxu0
        %v3317 = vadd.f32 %v3297, %v3316
        %3318 = vdwg.mxu0
        %3319 = vmatpush.msra.mxu0 %v3107
        %3320 = vmatpush.msra.mxu0 %v3106
        %3321 = vmatpush.msra.mxu0 %v3105
        %3322 = vmatpush.msra.mxu0 %v3104
        %3323 = vmatpush.msra.mxu0 %v3103
        %3324 = vmatpush.msra.mxu0 %v3102
        %3325 = vmatpush.msra.mxu0 %v3101
        %3326 = vmatpush.msra.mxu0 %v3100
        %3327 = vmatpush.msra.mxu0 %v3099
        %3328 = vmatpush.msra.mxu0 %v3098
        %3329 = vmatpush.msra.mxu0 %v3097
        %3330 = vmatpush.msra.mxu0 %v3096
        %3331 = vmatpush.msra.mxu0 %v3095
        %3332 = vmatpush.msra.mxu0 %v3094
        %3333 = vmatpush.msra.mxu0 %v3093
        %3334 = vmatpush.msra.mxu0 %v3092
        %3335 = vmatmul.f32.gmra.mxu0 %v2963
        %v3336 = vpop.f32.mrf.mxu0
        %v3337 = vadd.f32 %v3317, %v3336
        %3338 = vdwg.mxu0
        %3339 = vmatpush.msra.mxu0 %v3123
        %3340 = vmatpush.msra.mxu0 %v3122
        %3341 = vmatpush.msra.mxu0 %v3121
        %3342 = vmatpush.msra.mxu0 %v3120
        %3343 = vmatpush.msra.mxu0 %v3119
        %3344 = vmatpush.msra.mxu0 %v3118
        %3345 = vmatpush.msra.mxu0 %v3117
        %3346 = vmatpush.msra.mxu0 %v3116
        %3347 = vmatpush.msra.mxu0 %v3115
        %3348 = vmatpush.msra.mxu0 %v3114
        %3349 = vmatpush.msra.mxu0 %v3113
        %3350 = vmatpush.msra.mxu0 %v3112
        %3351 = vmatpush.msra.mxu0 %v3111
        %3352 = vmatpush.msra.mxu0 %v3110
        %3353 = vmatpush.msra.mxu0 %v3109
        %3354 = vmatpush.msra.mxu0 %v3108
        %3355 = vmatmul.f32.gmra.mxu0 %v2972
        %v3356 = vpop.f32.mrf.mxu0
        %v3357 = vadd.f32 %v3337, %v3356
        %3358 = vdwg.mxu0
        %3359 = vmatpush.msra.mxu0 %v3139
        %3360 = vmatpush.msra.mxu0 %v3138
        %3361 = vmatpush.msra.mxu0 %v3137
        %3362 = vmatpush.msra.mxu0 %v3136
        %3363 = vmatpush.msra.mxu0 %v3135
        %3364 = vmatpush.msra.mxu0 %v3134
        %3365 = vmatpush.msra.mxu0 %v3133
        %3366 = vmatpush.msra.mxu0 %v3132
        %3367 = vmatpush.msra.mxu0 %v3131
        %3368 = vmatpush.msra.mxu0 %v3130
        %3369 = vmatpush.msra.mxu0 %v3129
        %3370 = vmatpush.msra.mxu0 %v3128
        %3371 = vmatpush.msra.mxu0 %v3127
        %3372 = vmatpush.msra.mxu0 %v3126
        %3373 = vmatpush.msra.mxu0 %v3125
        %3374 = vmatpush.msra.mxu0 %v3124
        %3375 = vmatmul.f32.gmra.mxu0 %v2973
        %v3376 = vpop.f32.mrf.mxu0
        %v3377 = vadd.f32 %v3357, %v3376
        %3378 = vdwg.mxu0
        %3379 = vmatpush.msra.mxu0 %v3155
        %3380 = vmatpush.msra.mxu0 %v3154
        %3381 = vmatpush.msra.mxu0 %v3153
        %3382 = vmatpush.msra.mxu0 %v3152
        %3383 = vmatpush.msra.mxu0 %v3151
        %3384 = vmatpush.msra.mxu0 %v3150
        %3385 = vmatpush.msra.mxu0 %v3149
        %3386 = vmatpush.msra.mxu0 %v3148
        %3387 = vmatpush.msra.mxu0 %v3147
        %3388 = vmatpush.msra.mxu0 %v3146
        %3389 = vmatpush.msra.mxu0 %v3145
        %3390 = vmatpush.msra.mxu0 %v3144
        %3391 = vmatpush.msra.mxu0 %v3143
        %3392 = vmatpush.msra.mxu0 %v3142
        %3393 = vmatpush.msra.mxu0 %v3141
        %3394 = vmatpush.msra.mxu0 %v3140
        %3395 = vmatmul.f32.gmra.mxu0 %v2974
        %v3396 = vpop.f32.mrf.mxu0
        %v3397 = vadd.f32 %v3377, %v3396
        %3398 = vdwg.mxu0
        %3399 = vmatpush.msra.mxu0 %v3171
        %3400 = vmatpush.msra.mxu0 %v3170
        %3401 = vmatpush.msra.mxu0 %v3169
        %3402 = vmatpush.msra.mxu0 %v3168
        %3403 = vmatpush.msra.mxu0 %v3167
        %3404 = vmatpush.msra.mxu0 %v3166
        %3405 = vmatpush.msra.mxu0 %v3165
        %3406 = vmatpush.msra.mxu0 %v3164
        %3407 = vmatpush.msra.mxu0 %v3163
        %3408 = vmatpush.msra.mxu0 %v3162
        %3409 = vmatpush.msra.mxu0 %v3161
        %3410 = vmatpush.msra.mxu0 %v3160
        %3411 = vmatpush.msra.mxu0 %v3159
        %3412 = vmatpush.msra.mxu0 %v3158
        %3413 = vmatpush.msra.mxu0 %v3157
        %3414 = vmatpush.msra.mxu0 %v3156
        %3415 = vmatmul.f32.gmra.mxu0 %v2975
        %v3416 = vpop.f32.mrf.mxu0
        %v3417 = vadd.f32 %v3397, %v3416
        %3418 = vdwg.mxu0
        %3419 = vmatpush.msra.mxu0 0.0
        %3420 = vmatpush.msra.mxu0 0.0
        %3421 = vmatpush.msra.mxu0 0.0
        %3422 = vmatpush.msra.mxu0 0.0
        %3423 = vmatpush.msra.mxu0 0.0
        %3424 = vmatpush.msra.mxu0 0.0
        %3425 = vmatpush.msra.mxu0 0.0
        %3426 = vmatpush.msra.mxu0 0.0
        %3427 = vmatpush.msra.mxu0 0.0
        %3428 = vmatpush.msra.mxu0 0.0
        %3429 = vmatpush.msra.mxu0 0.0
        %3430 = vmatpush.msra.mxu0 0.0
        %3431 = vmatpush.msra.mxu0 %v3175
        %3432 = vmatpush.msra.mxu0 %v3174
        %3433 = vmatpush.msra.mxu0 %v3173
        %3434 = vmatpush.msra.mxu0 %v3172
        %3435 = vmatmul.f32.gmra.mxu0 %v3177
        %v3436 = vpop.f32.mrf.mxu0
        %v3437 = vadd.f32 %v3417, %v3436
        %3438 = vdwg.mxu0
        %v3439 = vmax.f32 %v3437, 0.0
        %vm3440 = vcmask 253952
        %3441 = vst.msk [vmem:[%s270] sm:$0x1] %vm3440, %v3439
        %s3442 = sand.u32 %s181, 1
        %s3443 = scalar_lea.sflag [#allocation4], %s3442
        %s3444 = sand.u32 %s181, 1
        %s3445 = scalar_lea.vmem [#allocation3], %s3444
        // Predicated region
        $region49: #{encoder_forward.1} parent=47 // pred_check
          %p3446 = pneg %p191
        $region50: #{encoder_forward.1} parent=47 // pred_check_branch
          %3448 = sbr.rel (%p3446) target = $region52
        $region51: #{encoder_forward.1} parent=47 // pred_region
          %3450 = vsyncadd %s3443, 0
          %s3451 = scalar_lea.hbm %s7, %s21
          %s3453 = sshll.u32 %s3445, 4
          %s3454 = int_to_ptr.vmem [resolvable:$true] %s3453
          %s3455 = sshll.u32 %s3451, 4
          %s3456 = int_to_ptr.hbm [resolvable:$true] %s3455
          %3458 = dma.vmem_to_hbm [thread:$0]  %s3454, 16, %s3456, %s3443
        $region52: #{encoder_forward.1} parent=47 // pred_fallthru
          _
      $region48: #{encoder_forward.1} parent=5 // pred_fallthru
        _
      %p3459 = scmp.le.s32.totalorder 2, %s16
      // Predicated region
      $region53: #{encoder_forward.1} parent=5 // pred_check
        %p3460 = pneg %p3459
      $region54: #{encoder_forward.1} parent=5 // pred_check_branch
        %3462 = sbr.rel (%p3460) target = $region56
      $region55: #{encoder_forward.1} parent=5 // pred_region
        %s3463 = ssub.s32 %s16, 2
        // Predicated region
        $region57: #{encoder_forward.1} parent=55 // pred_check
          %p3464 = pneg %p197
        $region58: #{encoder_forward.1} parent=55 // pred_check_branch
          %3466 = sbr.rel (%p3464) target = $region60
        $region59: #{encoder_forward.1} parent=55 // pred_region
          %s3467 = sand.u32 %s182, 1
          %s3468 = scalar_lea.sflag [#allocation4], %s3467
          %s3469 = sand.u32 %s182, 1
          %s3470 = scalar_lea.vmem [#allocation3], %s3469
          %3472 = dma.done %s3468, 16
        $region60: #{encoder_forward.1} parent=55 // pred_fallthru
          _
      $region56: #{encoder_forward.1} parent=5 // pred_fallthru
        _
    $region6: #{encoder_forward.1} parent=1 // loop_footer
      %s20 = sadd.s32 1, %s16
    $region7: #{encoder_forward.1} parent=1 // loop_footer_branch
      %15 = sbr.rel target = $region3
    $region8: #{encoder_forward.1} parent=1 // loop_exit
      _
    %3473 = vsyncpa [#allocation4], 1
    %s3474 = scalar_lea.sflag [#allocation4], 1
    %3475 = vsyncpa %s3474, 1

</llo_original>
